<compile_context>
chip_gen: v7x
topology: tpu7x:2x2x1
jax: 0.10.0
libtpu: 0.0.40
codegen_flags: <defaults>
</compile_context>

<pallas_src>
import math
import functools

import jax
import jax.numpy as jnp
from jax.experimental import pallas as pl
from jax.experimental.pallas import tpu as pltpu

EPS = 1e-6  # RMSNorm epsilon


def _rms_norm(x, eps=EPS):
    # x * rsqrt(mean(x^2, -1) + eps)   (no learnable gain; RMSNorm at init)
    return x * jax.lax.rsqrt(jnp.mean(x * x, axis=-1, keepdims=True) + eps)


def _attn_kernel(x_ref, wqkv_ref, hsum_ref, wo_ref, out_ref, *,
                 seq_len, n_heads, head_dim):
    # x_ref    : (rows, D)   f32   rows = (batch rows in this block) * seq_len
    # wqkv_ref : (D, 3D)     bf16  fused, pre-transposed [Wq^T | Wk^T | Wv^T]
    # hsum_ref : (2D, 2D)    f32   block-diag ones (per-head sum of squares)
    # wo_ref   : (D, D)      bf16  Wo^T with per-output scale folded in
    # out_ref  : (rows, D)   f32
    rows, D = x_ref.shape
    L = seq_len
    nb = rows // L

    x = x_ref[...]                                            # (rows, D) f32

    # ---- in_norm (RMSNorm over D), f32 elementwise --------------------------
    xn = _rms_norm(x)

    # ---- fused QKV projection: single bf16 MXU matmul, f32 accumulation -----
    qkv = jnp.dot(xn.astype(jnp.bfloat16), wqkv_ref[...],
                  preferred_element_type=jnp.float32)         # (rows, 3D) f32

    # ---- qk_norm (RMSNorm over head_dim) for q AND k in one f32 matmul ------
    # per-head sum-of-squares of the [q | k] lane block via one matmul against
    # a block-diagonal ones matrix (MXU), rsqrt on the EUP.  f32 operands keep
    # the norm denominators accurate (the old bf16 ssq cast forced a loose
    # tolerance); an f32 MXU pass is negligible at this size.
    qk = qkv[:, :2 * D]                                       # (rows, 2D) f32
    ssq = jnp.dot(qk * qk, hsum_ref[...],
                  preferred_element_type=jnp.float32)         # (rows, 2D)
    qkn = qk * jax.lax.rsqrt(ssq * (1.0 / head_dim) + EPS)    # RMS-normed q|k

    q = qkn[:, :D] * (1.0 / math.sqrt(head_dim))   # SDPA scale folded into q
    k = qkn[:, D:]
    v = qkv[:, 2 * D:]

    # (rows, D) -> (nb, L, D): leading-dim split only (no relayout).  Heads
    # are taken as static lane slices below — no XLU transposes anywhere.
    qb = q.astype(jnp.bfloat16).reshape(nb, L, D)
    kb = k.astype(jnp.bfloat16).reshape(nb, L, D)
    vb = v.astype(jnp.bfloat16).reshape(nb, L, D)

    # ---- attention, one head at a time (static lane slice of width d) -------
    # NOTE: softmax max-subtraction is intentionally dropped: qk RMSNorm plus
    # the folded 1/sqrt(head_dim) bound |logits| <= sqrt(head_dim) ~ 2.83, so
    # exp cannot overflow in f32.  Only valid while qk_norm is always applied
    # and there is no additive (-inf) mask.
    # TODO(synk): head_dim=8 leaves the attention-matmul K-dim at 8 (MXU
    # under-utilized); packing >=2 heads per slab (block-diag K / masked
    # scores) was judged not worth the extra relayout at these tiny shapes.
    head_outs = []
    for h in range(n_heads):
        sl = slice(h * head_dim, (h + 1) * head_dim)
        qh, kh, vh = qb[:, :, sl], kb[:, :, sl], vb[:, :, sl]  # (nb, L, d)
        s = jnp.einsum("bld,bmd->blm", qh, kh,
                       preferred_element_type=jnp.float32)     # (nb, L, L)
        p = jnp.exp(s)
        p = p * pl.reciprocal(jnp.sum(p, axis=-1, keepdims=True), approx=True)
        head_outs.append(
            jnp.einsum("blm,bmd->bld", p.astype(jnp.bfloat16), vh,
                       preferred_element_type=jnp.float32))    # (nb, L, d)

    # merge heads: lane concat back to (rows, D); column order matches "h d"
    om = jnp.concatenate(head_outs, axis=-1).reshape(rows, D)  # f32

    # ---- o_proj (per-output scale pre-folded into wo) + residual ------------
    # TODO(synk): the (rows, 32) output store is lane-masked (32/128 lanes);
    # a lane-dense (…,128) out layout needs an in-kernel lane relayout whose
    # win is modest at these shapes — revisit if N*L*D grows.
    proj = jnp.dot(om.astype(jnp.bfloat16), wo_ref[...],
                   preferred_element_type=jnp.float32)         # (rows, D)
    out_ref[...] = (x + proj).astype(out_ref.dtype)


def encoder_self_attention(x_NHWD, qkv_weight, wo, oscale, head_dim,
                           batch_split=1):
    N, H, W, D = x_NHWD.shape
    assert D % head_dim == 0
    L = H * W
    n_heads = D // head_dim
    R = N * L

    # --- one-time wrapper-side weight precompute -----------------------------
    # Fused, pre-transposed QKV weight: y = x @ [Wq^T | Wk^T | Wv^T]  -> (D, 3D)
    wqkv_t = jnp.concatenate(
        [qkv_weight[0].T, qkv_weight[1].T, qkv_weight[2].T],
        axis=1).astype(jnp.bfloat16)
    # o_proj: pre-transpose and fold the per-output scale into the weight.
    wo_t = (wo.T * oscale).astype(jnp.bfloat16)                       # (D, D)
    # Block-diagonal ones matrix (2D, 2D): (z*z) @ hsum gives the per-head
    # sum of squares of q and k simultaneously, broadcast back across each
    # head's columns.  Kept in f32 for accurate RMSNorm denominators.
    head_id = jnp.arange(2 * D) // head_dim
    hsum = (head_id[:, None] == head_id[None, :]).astype(jnp.float32)

    x2 = x_NHWD.reshape(R, D)   # free wrapper-side reshape to (rows, D)

    # Grid: G=1 -> one step, all batch rows in one big block (best on
    # single-TC v5e/v6e).  batch_split=2 can be benchmarked on v7x to use
    # both TensorCores; keep only if it measurably wins at these tiny shapes.
    G = batch_split
    assert N % G == 0 and G >= 1
    rows = R // G

    # With G=1 there is no cross-step pipelining, so the default
    # double-buffering of the resident weights is irrelevant at D=32; if D is
    # ever scaled up, single-buffer the grid-invariant weights
    # (pipeline_mode=pl.Buffered(1)) and/or set vmem_limit_bytes.
    kernel = functools.partial(_attn_kernel, seq_len=L, n_heads=n_heads,
                               head_dim=head_dim)
    out = pl.pallas_call(
        kernel,
        out_shape=jax.ShapeDtypeStruct((R, D), x2.dtype),
        grid=(G,),
        in_specs=[
            pl.BlockSpec((rows, D), lambda g: (g, 0)),        # x (row chunk)
            pl.BlockSpec((D, 3 * D), lambda g: (0, 0)),       # fused QKV^T
            pl.BlockSpec((2 * D, 2 * D), lambda g: (0, 0)),   # head-sum ones
            pl.BlockSpec((D, D), lambda g: (0, 0)),           # Wo^T * scale
        ],
        out_specs=pl.BlockSpec((rows, D), lambda g: (g, 0)),
        compiler_params=pltpu.CompilerParams(
            dimension_semantics=("parallel",) if G > 1 else ("arbitrary",)),
    )(x2, wqkv_t, hsum, wo_t)
    return out.reshape(N, H, W, D)


def reference(x_NHWD, qkv_weight, wo, oscale, head_dim):
    # pure-f32 JAX reference of the module's forward pass (correctness check)
    N, H, W, D = x_NHWD.shape
    L = H * W
    n_heads = D // head_dim
    x = x_NHWD.reshape(N, L, D)
    xn = _rms_norm(x)
    wqkv = qkv_weight.reshape(3 * D, D)
    qkv = xn @ wqkv.T                                         # (N, L, 3D)
    q = qkv[..., 0 * D:1 * D].reshape(N, L, n_heads, head_dim)
    k = qkv[..., 1 * D:2 * D].reshape(N, L, n_heads, head_dim)
    v = qkv[..., 2 * D:3 * D].reshape(N, L, n_heads, head_dim)
    q, k = _rms_norm(q), _rms_norm(k)
    q = jnp.transpose(q, (0, 2, 1, 3))
    k = jnp.transpose(k, (0, 2, 1, 3))
    v = jnp.transpose(v, (0, 2, 1, 3))
    s = jnp.einsum("nhld,nhmd->nhlm", q, k) / math.sqrt(head_dim)
    p = jax.nn.softmax(s, axis=-1)
    o = jnp.einsum("nhlm,nhmd->nhld", p, v)
    o = jnp.transpose(o, (0, 2, 1, 3)).reshape(N, L, D)
    o = (o @ wo.T) * oscale
    return (x + o).reshape(N, H, W, D)


if __name__ == "__main__":
    # Small shapes: N=4, H=W=8 (L=64), dim=32, head_dim=8 -> n_heads=4
    N, H, W, D = 4, 8, 8, 32
    head_dim = 8

    key = jax.random.PRNGKey(0)
    kx, kqkv, kwo, ks = jax.random.split(key, 4)

    x = jax.random.normal(kx, (N, H, W, D), dtype=jnp.float32)
    # qkv_weight: randn(3, dim, dim) / sqrt(dim) / 2   (module init)
    qkv_weight = (jax.random.normal(kqkv, (3, D, D), dtype=jnp.float32)
                  / math.sqrt(D) / 2.0)
    # o_proj weight (module uses zero_init; random here to exercise the kernel)
    wo = jax.random.normal(kwo, (D, D), dtype=jnp.float32) / math.sqrt(D)
    # o_proj per-output scale (FusedLinear scale=True)
    oscale = 1.0 + 0.1 * jax.random.normal(ks, (1, D), dtype=jnp.float32)

    out = encoder_self_attention(x, qkv_weight, wo, oscale, head_dim)
    out = jax.block_until_ready(out)

    ref = reference(x, qkv_weight, wo, oscale, head_dim)
    assert out.shape == (N, H, W, D)
    # Remaining error sources (documented): bf16 MXU operands in the QKV /
    # attention / o_proj matmuls (f32 accumulation) and the EUP approximate
    # reciprocal in the softmax; the qk-norm sum-of-squares is now exact f32.
    assert jnp.allclose(out, ref, atol=2.5e-2, rtol=2.5e-2), "mismatch vs reference"

    print("KERNEL_OK")
</pallas_src>

<mosaic_0001>
module attributes {stable_mosaic.version = 11 : i64} {
  func.func @_attn_kernel(%arg0: i32, %arg1: memref<256x32xf32, #tpu.memory_space<vmem>>, %arg2: memref<32x96xbf16, #tpu.memory_space<vmem>>, %arg3: memref<64x64xf32, #tpu.memory_space<vmem>>, %arg4: memref<32x32xbf16, #tpu.memory_space<vmem>>, %arg5: memref<256x32xf32, #tpu.memory_space<vmem>>) attributes {dimension_semantics = [#tpu.dimension_semantics<arbitrary>], iteration_bounds = array<i64: 1>, scalar_prefetch = 0 : i64, scratch_operands = 0 : i64, tpu.core_type = #tpu.core_type<tc>, window_params = [{transform_indices = @transform_0, window_bounds = array<i64: 256, 32>}, {pipeline_mode = #tpu.pipeline_mode<synchronous>, transform_indices = @transform_1, window_bounds = array<i64: 32, 96>}, {pipeline_mode = #tpu.pipeline_mode<synchronous>, transform_indices = @transform_2, window_bounds = array<i64: 64, 64>}, {pipeline_mode = #tpu.pipeline_mode<synchronous>, transform_indices = @transform_3, window_bounds = array<i64: 32, 32>}, {transform_indices = @transform_4, window_bounds = array<i64: 256, 32>}]} {
    %c0 = arith.constant 0 : index
    %c0_0 = arith.constant 0 : index
    %0 = vector.load %arg1[%c0, %c0_0] : memref<256x32xf32, #tpu.memory_space<vmem>>, vector<256x32xf32>
    %1 = arith.mulf %0, %0 : vector<256x32xf32>
    %cst = arith.constant dense<0.000000e+00> : vector<256xf32>
    %2 = vector.multi_reduction <add>, %1, %cst [1] : vector<256x32xf32> to vector<256xf32>
    %3 = vector.shape_cast %2 : vector<256xf32> to vector<256x1xf32>
    %cst_1 = arith.constant 3.200000e+01 : f32
    %4 = vector.broadcast %cst_1 : f32 to vector<256x1xf32>
    %5 = arith.divf %3, %4 : vector<256x1xf32>
    %cst_2 = arith.constant 9.99999997E-7 : f32
    %6 = vector.broadcast %cst_2 : f32 to vector<256x1xf32>
    %7 = arith.addf %5, %6 : vector<256x1xf32>
    %8 = math.rsqrt %7 : vector<256x1xf32>
    %9 = vector.broadcast %8 : vector<256x1xf32> to vector<256x32xf32>
    %10 = arith.mulf %0, %9 : vector<256x32xf32>
    %11 = arith.truncf %10 : vector<256x32xf32> to vector<256x32xbf16>
    %c0_3 = arith.constant 0 : index
    %c0_4 = arith.constant 0 : index
    %12 = vector.load %arg2[%c0_3, %c0_4] : memref<32x96xbf16, #tpu.memory_space<vmem>>, vector<32x96xbf16>
    %cst_5 = arith.constant dense<0.000000e+00> : vector<256x96xf32>
    %13 = tpu.matmul %11, %12, %cst_5 {dimension_numbers = #tpu.dot_dimension_numbers<[1], [0], [0], [1], [0, 0, 1, 1], [], []>} : vector<256x32xbf16>, vector<32x96xbf16>, vector<256x96xf32> -> vector<256x96xf32>
    %14 = vector.extract_strided_slice %13 {offsets = [0, 0], sizes = [256, 64], strides = [1, 1]} : vector<256x96xf32> to vector<256x64xf32>
    %15 = arith.mulf %14, %14 : vector<256x64xf32>
    %c0_6 = arith.constant 0 : index
    %c0_7 = arith.constant 0 : index
    %16 = vector.load %arg3[%c0_6, %c0_7] : memref<64x64xf32, #tpu.memory_space<vmem>>, vector<64x64xf32>
    %cst_8 = arith.constant dense<0.000000e+00> : vector<256x64xf32>
    %17 = tpu.matmul %15, %16, %cst_8 {dimension_numbers = #tpu.dot_dimension_numbers<[1], [0], [0], [1], [0, 0, 1, 1], [], []>} : vector<256x64xf32>, vector<64x64xf32>, vector<256x64xf32> -> vector<256x64xf32>
    %cst_9 = arith.constant 1.250000e-01 : f32
    %18 = vector.broadcast %cst_9 : f32 to vector<256x64xf32>
    %19 = arith.mulf %17, %18 : vector<256x64xf32>
    %cst_10 = arith.constant 9.99999997E-7 : f32
    %20 = vector.broadcast %cst_10 : f32 to vector<256x64xf32>
    %21 = arith.addf %19, %20 : vector<256x64xf32>
    %22 = math.rsqrt %21 : vector<256x64xf32>
    %23 = arith.mulf %14, %22 : vector<256x64xf32>
    %24 = vector.extract_strided_slice %23 {offsets = [0, 0], sizes = [256, 32], strides = [1, 1]} : vector<256x64xf32> to vector<256x32xf32>
    %cst_11 = arith.constant 0.353553385 : f32
    %25 = vector.broadcast %cst_11 : f32 to vector<256x32xf32>
    %26 = arith.mulf %24, %25 : vector<256x32xf32>
    %27 = vector.extract_strided_slice %23 {offsets = [0, 32], sizes = [256, 32], strides = [1, 1]} : vector<256x64xf32> to vector<256x32xf32>
    %28 = vector.extract_strided_slice %13 {offsets = [0, 64], sizes = [256, 32], strides = [1, 1]} : vector<256x96xf32> to vector<256x32xf32>
    %29 = arith.truncf %26 : vector<256x32xf32> to vector<256x32xbf16>
    %30 = vector.shape_cast %29 : vector<256x32xbf16> to vector<4x64x32xbf16>
    %31 = arith.truncf %27 : vector<256x32xf32> to vector<256x32xbf16>
    %32 = vector.shape_cast %31 : vector<256x32xbf16> to vector<4x64x32xbf16>
    %33 = arith.truncf %28 : vector<256x32xf32> to vector<256x32xbf16>
    %34 = vector.shape_cast %33 : vector<256x32xbf16> to vector<4x64x32xbf16>
    %35 = vector.extract_strided_slice %30 {offsets = [0, 0, 0], sizes = [4, 64, 8], strides = [1, 1, 1]} : vector<4x64x32xbf16> to vector<4x64x8xbf16>
    %36 = vector.extract_strided_slice %32 {offsets = [0, 0, 0], sizes = [4, 64, 8], strides = [1, 1, 1]} : vector<4x64x32xbf16> to vector<4x64x8xbf16>
    %37 = vector.extract_strided_slice %34 {offsets = [0, 0, 0], sizes = [4, 64, 8], strides = [1, 1, 1]} : vector<4x64x32xbf16> to vector<4x64x8xbf16>
    "tpu.trace_start"() <{level = 10 : i32, message = "bld,bmd->blm"}> : () -> ()
    %cst_12 = arith.constant dense<0.000000e+00> : vector<4x64x64xf32>
    %38 = tpu.matmul %35, %36, %cst_12 {dimension_numbers = #tpu.dot_dimension_numbers<[2], [2], [1], [1], [0, 0, 0, 1, 1, 1], [0], [0]>} : vector<4x64x8xbf16>, vector<4x64x8xbf16>, vector<4x64x64xf32> -> vector<4x64x64xf32>
    "tpu.trace_stop"() : () -> ()
    %39 = math.exp %38 : vector<4x64x64xf32>
    %cst_13 = arith.constant dense<0.000000e+00> : vector<4x64xf32>
    %40 = vector.multi_reduction <add>, %39, %cst_13 [2] : vector<4x64x64xf32> to vector<4x64xf32>
    %41 = vector.shape_cast %40 : vector<4x64xf32> to vector<4x64x1xf32>
    %42 = tpu.reciprocal %41 {approx = true} : vector<4x64x1xf32> -> vector<4x64x1xf32>
    %43 = vector.broadcast %42 : vector<4x64x1xf32> to vector<4x64x64xf32>
    %44 = arith.mulf %39, %43 : vector<4x64x64xf32>
    %45 = arith.truncf %44 : vector<4x64x64xf32> to vector<4x64x64xbf16>
    "tpu.trace_start"() <{level = 10 : i32, message = "blm,bmd->bld"}> : () -> ()
    %cst_14 = arith.constant dense<0.000000e+00> : vector<4x64x8xf32>
    %46 = tpu.matmul %45, %37, %cst_14 {dimension_numbers = #tpu.dot_dimension_numbers<[2], [1], [1], [2], [0, 0, 0, 1, 1, 2], [0], [0]>} : vector<4x64x64xbf16>, vector<4x64x8xbf16>, vector<4x64x8xf32> -> vector<4x64x8xf32>
    "tpu.trace_stop"() : () -> ()
    %47 = vector.extract_strided_slice %30 {offsets = [0, 0, 8], sizes = [4, 64, 8], strides = [1, 1, 1]} : vector<4x64x32xbf16> to vector<4x64x8xbf16>
    %48 = vector.extract_strided_slice %32 {offsets = [0, 0, 8], sizes = [4, 64, 8], strides = [1, 1, 1]} : vector<4x64x32xbf16> to vector<4x64x8xbf16>
    %49 = vector.extract_strided_slice %34 {offsets = [0, 0, 8], sizes = [4, 64, 8], strides = [1, 1, 1]} : vector<4x64x32xbf16> to vector<4x64x8xbf16>
    "tpu.trace_start"() <{level = 10 : i32, message = "bld,bmd->blm"}> : () -> ()
    %cst_15 = arith.constant dense<0.000000e+00> : vector<4x64x64xf32>
    %50 = tpu.matmul %47, %48, %cst_15 {dimension_numbers = #tpu.dot_dimension_numbers<[2], [2], [1], [1], [0, 0, 0, 1, 1, 1], [0], [0]>} : vector<4x64x8xbf16>, vector<4x64x8xbf16>, vector<4x64x64xf32> -> vector<4x64x64xf32>
    "tpu.trace_stop"() : () -> ()
    %51 = math.exp %50 : vector<4x64x64xf32>
    %cst_16 = arith.constant dense<0.000000e+00> : vector<4x64xf32>
    %52 = vector.multi_reduction <add>, %51, %cst_16 [2] : vector<4x64x64xf32> to vector<4x64xf32>
    %53 = vector.shape_cast %52 : vector<4x64xf32> to vector<4x64x1xf32>
    %54 = tpu.reciprocal %53 {approx = true} : vector<4x64x1xf32> -> vector<4x64x1xf32>
    %55 = vector.broadcast %54 : vector<4x64x1xf32> to vector<4x64x64xf32>
    %56 = arith.mulf %51, %55 : vector<4x64x64xf32>
    %57 = arith.truncf %56 : vector<4x64x64xf32> to vector<4x64x64xbf16>
    "tpu.trace_start"() <{level = 10 : i32, message = "blm,bmd->bld"}> : () -> ()
    %cst_17 = arith.constant dense<0.000000e+00> : vector<4x64x8xf32>
    %58 = tpu.matmul %57, %49, %cst_17 {dimension_numbers = #tpu.dot_dimension_numbers<[2], [1], [1], [2], [0, 0, 0, 1, 1, 2], [0], [0]>} : vector<4x64x64xbf16>, vector<4x64x8xbf16>, vector<4x64x8xf32> -> vector<4x64x8xf32>
    "tpu.trace_stop"() : () -> ()
    %59 = vector.extract_strided_slice %30 {offsets = [0, 0, 16], sizes = [4, 64, 8], strides = [1, 1, 1]} : vector<4x64x32xbf16> to vector<4x64x8xbf16>
    %60 = vector.extract_strided_slice %32 {offsets = [0, 0, 16], sizes = [4, 64, 8], strides = [1, 1, 1]} : vector<4x64x32xbf16> to vector<4x64x8xbf16>
    %61 = vector.extract_strided_slice %34 {offsets = [0, 0, 16], sizes = [4, 64, 8], strides = [1, 1, 1]} : vector<4x64x32xbf16> to vector<4x64x8xbf16>
    "tpu.trace_start"() <{level = 10 : i32, message = "bld,bmd->blm"}> : () -> ()
    %cst_18 = arith.constant dense<0.000000e+00> : vector<4x64x64xf32>
    %62 = tpu.matmul %59, %60, %cst_18 {dimension_numbers = #tpu.dot_dimension_numbers<[2], [2], [1], [1], [0, 0, 0, 1, 1, 1], [0], [0]>} : vector<4x64x8xbf16>, vector<4x64x8xbf16>, vector<4x64x64xf32> -> vector<4x64x64xf32>
    "tpu.trace_stop"() : () -> ()
    %63 = math.exp %62 : vector<4x64x64xf32>
    %cst_19 = arith.constant dense<0.000000e+00> : vector<4x64xf32>
    %64 = vector.multi_reduction <add>, %63, %cst_19 [2] : vector<4x64x64xf32> to vector<4x64xf32>
    %65 = vector.shape_cast %64 : vector<4x64xf32> to vector<4x64x1xf32>
    %66 = tpu.reciprocal %65 {approx = true} : vector<4x64x1xf32> -> vector<4x64x1xf32>
    %67 = vector.broadcast %66 : vector<4x64x1xf32> to vector<4x64x64xf32>
    %68 = arith.mulf %63, %67 : vector<4x64x64xf32>
    %69 = arith.truncf %68 : vector<4x64x64xf32> to vector<4x64x64xbf16>
    "tpu.trace_start"() <{level = 10 : i32, message = "blm,bmd->bld"}> : () -> ()
    %cst_20 = arith.constant dense<0.000000e+00> : vector<4x64x8xf32>
    %70 = tpu.matmul %69, %61, %cst_20 {dimension_numbers = #tpu.dot_dimension_numbers<[2], [1], [1], [2], [0, 0, 0, 1, 1, 2], [0], [0]>} : vector<4x64x64xbf16>, vector<4x64x8xbf16>, vector<4x64x8xf32> -> vector<4x64x8xf32>
    "tpu.trace_stop"() : () -> ()
    %71 = vector.extract_strided_slice %30 {offsets = [0, 0, 24], sizes = [4, 64, 8], strides = [1, 1, 1]} : vector<4x64x32xbf16> to vector<4x64x8xbf16>
    %72 = vector.extract_strided_slice %32 {offsets = [0, 0, 24], sizes = [4, 64, 8], strides = [1, 1, 1]} : vector<4x64x32xbf16> to vector<4x64x8xbf16>
    %73 = vector.extract_strided_slice %34 {offsets = [0, 0, 24], sizes = [4, 64, 8], strides = [1, 1, 1]} : vector<4x64x32xbf16> to vector<4x64x8xbf16>
    "tpu.trace_start"() <{level = 10 : i32, message = "bld,bmd->blm"}> : () -> ()
    %cst_21 = arith.constant dense<0.000000e+00> : vector<4x64x64xf32>
    %74 = tpu.matmul %71, %72, %cst_21 {dimension_numbers = #tpu.dot_dimension_numbers<[2], [2], [1], [1], [0, 0, 0, 1, 1, 1], [0], [0]>} : vector<4x64x8xbf16>, vector<4x64x8xbf16>, vector<4x64x64xf32> -> vector<4x64x64xf32>
    "tpu.trace_stop"() : () -> ()
    %75 = math.exp %74 : vector<4x64x64xf32>
    %cst_22 = arith.constant dense<0.000000e+00> : vector<4x64xf32>
    %76 = vector.multi_reduction <add>, %75, %cst_22 [2] : vector<4x64x64xf32> to vector<4x64xf32>
    %77 = vector.shape_cast %76 : vector<4x64xf32> to vector<4x64x1xf32>
    %78 = tpu.reciprocal %77 {approx = true} : vector<4x64x1xf32> -> vector<4x64x1xf32>
    %79 = vector.broadcast %78 : vector<4x64x1xf32> to vector<4x64x64xf32>
    %80 = arith.mulf %75, %79 : vector<4x64x64xf32>
    %81 = arith.truncf %80 : vector<4x64x64xf32> to vector<4x64x64xbf16>
    "tpu.trace_start"() <{level = 10 : i32, message = "blm,bmd->bld"}> : () -> ()
    %cst_23 = arith.constant dense<0.000000e+00> : vector<4x64x8xf32>
    %82 = tpu.matmul %81, %73, %cst_23 {dimension_numbers = #tpu.dot_dimension_numbers<[2], [1], [1], [2], [0, 0, 0, 1, 1, 2], [0], [0]>} : vector<4x64x64xbf16>, vector<4x64x8xbf16>, vector<4x64x8xf32> -> vector<4x64x8xf32>
    "tpu.trace_stop"() : () -> ()
    %83 = tpu.concatenate %46, %58, %70, %82 in 2 : vector<4x64x8xf32>, vector<4x64x8xf32>, vector<4x64x8xf32>, vector<4x64x8xf32> -> vector<4x64x32xf32>
    %84 = vector.shape_cast %83 : vector<4x64x32xf32> to vector<256x32xf32>
    %85 = arith.truncf %84 : vector<256x32xf32> to vector<256x32xbf16>
    %c0_24 = arith.constant 0 : index
    %c0_25 = arith.constant 0 : index
    %86 = vector.load %arg4[%c0_24, %c0_25] : memref<32x32xbf16, #tpu.memory_space<vmem>>, vector<32x32xbf16>
    %cst_26 = arith.constant dense<0.000000e+00> : vector<256x32xf32>
    %87 = tpu.matmul %85, %86, %cst_26 {dimension_numbers = #tpu.dot_dimension_numbers<[1], [0], [0], [1], [0, 0, 1, 1], [], []>} : vector<256x32xbf16>, vector<32x32xbf16>, vector<256x32xf32> -> vector<256x32xf32>
    %88 = arith.addf %0, %87 : vector<256x32xf32>
    %c0_27 = arith.constant 0 : index
    %c0_28 = arith.constant 0 : index
    %89 = vector.load %arg5[%c0_27, %c0_28] : memref<256x32xf32, #tpu.memory_space<vmem>>, vector<256x32xf32>
    tpu.vector_store %arg5[%c0_27, %c0_28], %88 {strides = array<i32>} : memref<256x32xf32, #tpu.memory_space<vmem>>, vector<256x32xf32>,
    return
  }
  func.func @transform_0(%arg0: i32) -> (i32, i32) {
    %c0_i32 = arith.constant 0 : i32
    %c0_i32_0 = arith.constant 0 : i32
    return %arg0, %c0_i32 : i32, i32
  }
  func.func @transform_1(%arg0: i32) -> (i32, i32) {
    %c0_i32 = arith.constant 0 : i32
    %c0_i32_0 = arith.constant 0 : i32
    %c0_i32_1 = arith.constant 0 : i32
    return %c0_i32, %c0_i32_0 : i32, i32
  }
  func.func @transform_2(%arg0: i32) -> (i32, i32) {
    %c0_i32 = arith.constant 0 : i32
    %c0_i32_0 = arith.constant 0 : i32
    %c0_i32_1 = arith.constant 0 : i32
    return %c0_i32, %c0_i32_0 : i32, i32
  }
  func.func @transform_3(%arg0: i32) -> (i32, i32) {
    %c0_i32 = arith.constant 0 : i32
    %c0_i32_0 = arith.constant 0 : i32
    %c0_i32_1 = arith.constant 0 : i32
    return %c0_i32, %c0_i32_0 : i32, i32
  }
  func.func @transform_4(%arg0: i32) -> (i32, i32) {
    %c0_i32 = arith.constant 0 : i32
    %c0_i32_0 = arith.constant 0 : i32
    return %arg0, %c0_i32 : i32, i32
  }
}

</mosaic_0001>

<llo_original>
// kernel: tpu_custom_call.1
$region0: #{tpu_custom_call.1}
  #allocation0 [shape = 'u32[]', space=smem, size = 0x4, offset = 0x4, fixed_abs, tag = 'smem constant byte address 0x4 - core index']
  #allocation1 [shape = 'u32[144,128]{1,0:T(1,128)}', space=vmem, size = 0x12000, scoped, tag = 'internal scratch']
  %s0 = inlined_call_operand.vmem [shape: f32[256,32], index: 0, kind: input, shape index: {}]
  %s1 = inlined_call_operand.vmem [shape: bf16[32,96], index: 1, kind: input, shape index: {}]
  %s2 = inlined_call_operand.vmem [shape: f32[64,64], index: 2, kind: input, shape index: {}]
  %s3 = inlined_call_operand.vmem [shape: bf16[32,32], index: 3, kind: input, shape index: {}]
  %s4 = inlined_call_operand.vmem [shape: f32[256,32], index: 4, kind: output, shape index: {}]
  %s5 = sld [smem:[#allocation0]]
  $region26: #{tpu_custom_call.1} parent=0
    _
  %s7 = ssub.s32 1, %s5
  %s8 = scalar_select 0, %s7, %s5
  // Predicated region
  $region2: #{tpu_custom_call.1} parent=0 // pred_check
    _
  $region3: #{tpu_custom_call.1} parent=0 // pred_check_branch
    %10 = sbr.rel (0) target = $region5
  $region4: #{tpu_custom_call.1} parent=0 // pred_region
    _
  $region5: #{tpu_custom_call.1} parent=0 // pred_fallthru
    _
  // Predicated region
  $region6: #{tpu_custom_call.1} parent=0 // pred_check
    _
  $region7: #{tpu_custom_call.1} parent=0 // pred_check_branch
    %12 = sbr.rel (0) target = $region9
  $region8: #{tpu_custom_call.1} parent=0 // pred_region
    _
  $region9: #{tpu_custom_call.1} parent=0 // pred_fallthru
    _
  // Predicated region
  $region10: #{tpu_custom_call.1} parent=0 // pred_check
    _
  $region11: #{tpu_custom_call.1} parent=0 // pred_check_branch
    %14 = sbr.rel (0) target = $region13
  $region12: #{tpu_custom_call.1} parent=0 // pred_region
    _
  $region13: #{tpu_custom_call.1} parent=0 // pred_fallthru
    _
  // Predicated region
  $region14: #{tpu_custom_call.1} parent=0 // pred_check
    _
  $region15: #{tpu_custom_call.1} parent=0 // pred_check_branch
    %16 = sbr.rel (0) target = $region17
  $region16: #{tpu_custom_call.1} parent=0 // pred_region
    _
  $region17: #{tpu_custom_call.1} parent=0 // pred_fallthru
    _
  %v18 = vld [vmem:[%s0] sm:$0xff]
  %v19 = vld [vmem:[%s0 + $0x8] sm:$0xff]
  %v20 = vld [vmem:[%s0 + $0x10] sm:$0xff]
  %v21 = vld [vmem:[%s0 + $0x18] sm:$0xff]
  %v22 = vld [vmem:[%s0 + $0x20] sm:$0xff]
  %v23 = vld [vmem:[%s0 + $0x28] sm:$0xff]
  %v24 = vld [vmem:[%s0 + $0x30] sm:$0xff]
  %v25 = vld [vmem:[%s0 + $0x38] sm:$0xff]
  %v26 = vld [vmem:[%s0 + $0x40] sm:$0xff]
  %v27 = vld [vmem:[%s0 + $0x48] sm:$0xff]
  %v28 = vld [vmem:[%s0 + $0x50] sm:$0xff]
  %v29 = vld [vmem:[%s0 + $0x58] sm:$0xff]
  %v30 = vld [vmem:[%s0 + $0x60] sm:$0xff]
  %v31 = vld [vmem:[%s0 + $0x68] sm:$0xff]
  %v32 = vld [vmem:[%s0 + $0x70] sm:$0xff]
  %v33 = vld [vmem:[%s0 + $0x78] sm:$0xff]
  %v34 = vld [vmem:[%s0 + $0x80] sm:$0xff]
  %v35 = vld [vmem:[%s0 + $0x88] sm:$0xff]
  %v36 = vld [vmem:[%s0 + $0x90] sm:$0xff]
  %v37 = vld [vmem:[%s0 + $0x98] sm:$0xff]
  %v38 = vld [vmem:[%s0 + $0xa0] sm:$0xff]
  %v39 = vld [vmem:[%s0 + $0xa8] sm:$0xff]
  %v40 = vld [vmem:[%s0 + $0xb0] sm:$0xff]
  %v41 = vld [vmem:[%s0 + $0xb8] sm:$0xff]
  %v42 = vld [vmem:[%s0 + $0xc0] sm:$0xff]
  %v43 = vld [vmem:[%s0 + $0xc8] sm:$0xff]
  %v44 = vld [vmem:[%s0 + $0xd0] sm:$0xff]
  %v45 = vld [vmem:[%s0 + $0xd8] sm:$0xff]
  %v46 = vld [vmem:[%s0 + $0xe0] sm:$0xff]
  %v47 = vld [vmem:[%s0 + $0xe8] sm:$0xff]
  %v48 = vld [vmem:[%s0 + $0xf0] sm:$0xff]
  %v49 = vld [vmem:[%s0 + $0xf8] sm:$0xff]
  %v50 = vmul.f32 %v18, %v18
  %v51 = vmul.f32 %v19, %v19
  %v52 = vmul.f32 %v20, %v20
  %v53 = vmul.f32 %v21, %v21
  %v54 = vmul.f32 %v22, %v22
  %v55 = vmul.f32 %v23, %v23
  %v56 = vmul.f32 %v24, %v24
  %v57 = vmul.f32 %v25, %v25
  %v58 = vmul.f32 %v26, %v26
  %v59 = vmul.f32 %v27, %v27
  %v60 = vmul.f32 %v28, %v28
  %v61 = vmul.f32 %v29, %v29
  %v62 = vmul.f32 %v30, %v30
  %v63 = vmul.f32 %v31, %v31
  %v64 = vmul.f32 %v32, %v32
  %v65 = vmul.f32 %v33, %v33
  %v66 = vmul.f32 %v34, %v34
  %v67 = vmul.f32 %v35, %v35
  %v68 = vmul.f32 %v36, %v36
  %v69 = vmul.f32 %v37, %v37
  %v70 = vmul.f32 %v38, %v38
  %v71 = vmul.f32 %v39, %v39
  %v72 = vmul.f32 %v40, %v40
  %v73 = vmul.f32 %v41, %v41
  %v74 = vmul.f32 %v42, %v42
  %v75 = vmul.f32 %v43, %v43
  %v76 = vmul.f32 %v44, %v44
  %v77 = vmul.f32 %v45, %v45
  %v78 = vmul.f32 %v46, %v46
  %v79 = vmul.f32 %v47, %v47
  %v80 = vmul.f32 %v48, %v48
  %v81 = vmul.f32 %v49, %v49
  %vm82 = vcmask 261120
  %v83 = vsel %vm82, %v50, 0.0
  %84 = vadd.xlane.f32.xlu0 %v83
  %v85 = vpop.xlane.xlu0 %84
  %v86 = vsel %vm82, %v51, 0.0
  %87 = vadd.xlane.f32.xlu0 %v86
  %v88 = vpop.xlane.xlu0 %87
  %v89 = vsel %vm82, %v52, 0.0
  %90 = vadd.xlane.f32.xlu0 %v89
  %v91 = vpop.xlane.xlu0 %90
  %v92 = vsel %vm82, %v53, 0.0
  %93 = vadd.xlane.f32.xlu0 %v92
  %v94 = vpop.xlane.xlu0 %93
  %v95 = vsel %vm82, %v54, 0.0
  %96 = vadd.xlane.f32.xlu0 %v95
  %v97 = vpop.xlane.xlu0 %96
  %v98 = vsel %vm82, %v55, 0.0
  %99 = vadd.xlane.f32.xlu0 %v98
  %v100 = vpop.xlane.xlu0 %99
  %v101 = vsel %vm82, %v56, 0.0
  %102 = vadd.xlane.f32.xlu0 %v101
  %v103 = vpop.xlane.xlu0 %102
  %v104 = vsel %vm82, %v57, 0.0
  %105 = vadd.xlane.f32.xlu0 %v104
  %v106 = vpop.xlane.xlu0 %105
  %v107 = vsel %vm82, %v58, 0.0
  %108 = vadd.xlane.f32.xlu0 %v107
  %v109 = vpop.xlane.xlu0 %108
  %v110 = vsel %vm82, %v59, 0.0
  %111 = vadd.xlane.f32.xlu0 %v110
  %v112 = vpop.xlane.xlu0 %111
  %v113 = vsel %vm82, %v60, 0.0
  %114 = vadd.xlane.f32.xlu0 %v113
  %v115 = vpop.xlane.xlu0 %114
  %v116 = vsel %vm82, %v61, 0.0
  %117 = vadd.xlane.f32.xlu0 %v116
  %v118 = vpop.xlane.xlu0 %117
  %v119 = vsel %vm82, %v62, 0.0
  %120 = vadd.xlane.f32.xlu0 %v119
  %v121 = vpop.xlane.xlu0 %120
  %v122 = vsel %vm82, %v63, 0.0
  %123 = vadd.xlane.f32.xlu0 %v122
  %v124 = vpop.xlane.xlu0 %123
  %v125 = vsel %vm82, %v64, 0.0
  %126 = vadd.xlane.f32.xlu0 %v125
  %v127 = vpop.xlane.xlu0 %126
  %v128 = vsel %vm82, %v65, 0.0
  %129 = vadd.xlane.f32.xlu0 %v128
  %v130 = vpop.xlane.xlu0 %129
  %v131 = vsel %vm82, %v66, 0.0
  %132 = vadd.xlane.f32.xlu0 %v131
  %v133 = vpop.xlane.xlu0 %132
  %v134 = vsel %vm82, %v67, 0.0
  %135 = vadd.xlane.f32.xlu0 %v134
  %v136 = vpop.xlane.xlu0 %135
  %v137 = vsel %vm82, %v68, 0.0
  %138 = vadd.xlane.f32.xlu0 %v137
  %v139 = vpop.xlane.xlu0 %138
  %v140 = vsel %vm82, %v69, 0.0
  %141 = vadd.xlane.f32.xlu0 %v140
  %v142 = vpop.xlane.xlu0 %141
  %v143 = vsel %vm82, %v70, 0.0
  %144 = vadd.xlane.f32.xlu0 %v143
  %v145 = vpop.xlane.xlu0 %144
  %v146 = vsel %vm82, %v71, 0.0
  %147 = vadd.xlane.f32.xlu0 %v146
  %v148 = vpop.xlane.xlu0 %147
  %v149 = vsel %vm82, %v72, 0.0
  %150 = vadd.xlane.f32.xlu0 %v149
  %v151 = vpop.xlane.xlu0 %150
  %v152 = vsel %vm82, %v73, 0.0
  %153 = vadd.xlane.f32.xlu0 %v152
  %v154 = vpop.xlane.xlu0 %153
  %v155 = vsel %vm82, %v74, 0.0
  %156 = vadd.xlane.f32.xlu0 %v155
  %v157 = vpop.xlane.xlu0 %156
  %v158 = vsel %vm82, %v75, 0.0
  %159 = vadd.xlane.f32.xlu0 %v158
  %v160 = vpop.xlane.xlu0 %159
  %v161 = vsel %vm82, %v76, 0.0
  %162 = vadd.xlane.f32.xlu0 %v161
  %v163 = vpop.xlane.xlu0 %162
  %v164 = vsel %vm82, %v77, 0.0
  %165 = vadd.xlane.f32.xlu0 %v164
  %v166 = vpop.xlane.xlu0 %165
  %v167 = vsel %vm82, %v78, 0.0
  %168 = vadd.xlane.f32.xlu0 %v167
  %v169 = vpop.xlane.xlu0 %168
  %v170 = vsel %vm82, %v79, 0.0
  %171 = vadd.xlane.f32.xlu0 %v170
  %v172 = vpop.xlane.xlu0 %171
  %v173 = vsel %vm82, %v80, 0.0
  %174 = vadd.xlane.f32.xlu0 %v173
  %v175 = vpop.xlane.xlu0 %174
  %v176 = vsel %vm82, %v81, 0.0
  %177 = vadd.xlane.f32.xlu0 %v176
  %v178 = vpop.xlane.xlu0 %177
  %v179 = vrcp.pop 32.0
  %v180 = vmul.f32 %v85, %v179
  %v181 = vmul.f32 %v88, %v179
  %v182 = vmul.f32 %v91, %v179
  %v183 = vmul.f32 %v94, %v179
  %v184 = vmul.f32 %v97, %v179
  %v185 = vmul.f32 %v100, %v179
  %v186 = vmul.f32 %v103, %v179
  %v187 = vmul.f32 %v106, %v179
  %v188 = vmul.f32 %v109, %v179
  %v189 = vmul.f32 %v112, %v179
  %v190 = vmul.f32 %v115, %v179
  %v191 = vmul.f32 %v118, %v179
  %v192 = vmul.f32 %v121, %v179
  %v193 = vmul.f32 %v124, %v179
  %v194 = vmul.f32 %v127, %v179
  %v195 = vmul.f32 %v130, %v179
  %v196 = vmul.f32 %v133, %v179
  %v197 = vmul.f32 %v136, %v179
  %v198 = vmul.f32 %v139, %v179
  %v199 = vmul.f32 %v142, %v179
  %v200 = vmul.f32 %v145, %v179
  %v201 = vmul.f32 %v148, %v179
  %v202 = vmul.f32 %v151, %v179
  %v203 = vmul.f32 %v154, %v179
  %v204 = vmul.f32 %v157, %v179
  %v205 = vmul.f32 %v160, %v179
  %v206 = vmul.f32 %v163, %v179
  %v207 = vmul.f32 %v166, %v179
  %v208 = vmul.f32 %v169, %v179
  %v209 = vmul.f32 %v172, %v179
  %v210 = vmul.f32 %v175, %v179
  %v211 = vmul.f32 %v178, %v179
  %v212 = vadd.f32 %v180, 1e-06
  %v213 = vadd.f32 %v181, 1e-06
  %v214 = vadd.f32 %v182, 1e-06
  %v215 = vadd.f32 %v183, 1e-06
  %v216 = vadd.f32 %v184, 1e-06
  %v217 = vadd.f32 %v185, 1e-06
  %v218 = vadd.f32 %v186, 1e-06
  %v219 = vadd.f32 %v187, 1e-06
  %v220 = vadd.f32 %v188, 1e-06
  %v221 = vadd.f32 %v189, 1e-06
  %v222 = vadd.f32 %v190, 1e-06
  %v223 = vadd.f32 %v191, 1e-06
  %v224 = vadd.f32 %v192, 1e-06
  %v225 = vadd.f32 %v193, 1e-06
  %v226 = vadd.f32 %v194, 1e-06
  %v227 = vadd.f32 %v195, 1e-06
  %v228 = vadd.f32 %v196, 1e-06
  %v229 = vadd.f32 %v197, 1e-06
  %v230 = vadd.f32 %v198, 1e-06
  %v231 = vadd.f32 %v199, 1e-06
  %v232 = vadd.f32 %v200, 1e-06
  %v233 = vadd.f32 %v201, 1e-06
  %v234 = vadd.f32 %v202, 1e-06
  %v235 = vadd.f32 %v203, 1e-06
  %v236 = vadd.f32 %v204, 1e-06
  %v237 = vadd.f32 %v205, 1e-06
  %v238 = vadd.f32 %v206, 1e-06
  %v239 = vadd.f32 %v207, 1e-06
  %v240 = vadd.f32 %v208, 1e-06
  %v241 = vadd.f32 %v209, 1e-06
  %v242 = vadd.f32 %v210, 1e-06
  %v243 = vadd.f32 %v211, 1e-06
  %v244 = vrsqrt.pop %v212
  %v245 = vrsqrt.pop %v213
  %v246 = vrsqrt.pop %v214
  %v247 = vrsqrt.pop %v215
  %v248 = vrsqrt.pop %v216
  %v249 = vrsqrt.pop %v217
  %v250 = vrsqrt.pop %v218
  %v251 = vrsqrt.pop %v219
  %v252 = vrsqrt.pop %v220
  %v253 = vrsqrt.pop %v221
  %v254 = vrsqrt.pop %v222
  %v255 = vrsqrt.pop %v223
  %v256 = vrsqrt.pop %v224
  %v257 = vrsqrt.pop %v225
  %v258 = vrsqrt.pop %v226
  %v259 = vrsqrt.pop %v227
  %v260 = vrsqrt.pop %v228
  %v261 = vrsqrt.pop %v229
  %v262 = vrsqrt.pop %v230
  %v263 = vrsqrt.pop %v231
  %v264 = vrsqrt.pop %v232
  %v265 = vrsqrt.pop %v233
  %v266 = vrsqrt.pop %v234
  %v267 = vrsqrt.pop %v235
  %v268 = vrsqrt.pop %v236
  %v269 = vrsqrt.pop %v237
  %v270 = vrsqrt.pop %v238
  %v271 = vrsqrt.pop %v239
  %v272 = vrsqrt.pop %v240
  %v273 = vrsqrt.pop %v241
  %v274 = vrsqrt.pop %v242
  %v275 = vrsqrt.pop %v243
  %v276 = vmul.f32 %v18, %v244
  %v277 = vmul.f32 %v19, %v245
  %v278 = vmul.f32 %v20, %v246
  %v279 = vmul.f32 %v21, %v247
  %v280 = vmul.f32 %v22, %v248
  %v281 = vmul.f32 %v23, %v249
  %v282 = vmul.f32 %v24, %v250
  %v283 = vmul.f32 %v25, %v251
  %v284 = vmul.f32 %v26, %v252
  %v285 = vmul.f32 %v27, %v253
  %v286 = vmul.f32 %v28, %v254
  %v287 = vmul.f32 %v29, %v255
  %v288 = vmul.f32 %v30, %v256
  %v289 = vmul.f32 %v31, %v257
  %v290 = vmul.f32 %v32, %v258
  %v291 = vmul.f32 %v33, %v259
  %v292 = vmul.f32 %v34, %v260
  %v293 = vmul.f32 %v35, %v261
  %v294 = vmul.f32 %v36, %v262
  %v295 = vmul.f32 %v37, %v263
  %v296 = vmul.f32 %v38, %v264
  %v297 = vmul.f32 %v39, %v265
  %v298 = vmul.f32 %v40, %v266
  %v299 = vmul.f32 %v41, %v267
  %v300 = vmul.f32 %v42, %v268
  %v301 = vmul.f32 %v43, %v269
  %v302 = vmul.f32 %v44, %v270
  %v303 = vmul.f32 %v45, %v271
  %v304 = vmul.f32 %v46, %v272
  %v305 = vmul.f32 %v47, %v273
  %v306 = vmul.f32 %v48, %v274
  %v307 = vmul.f32 %v49, %v275
  %v308 = vpack.c.bf16 %v277, %v276
  %v309 = vpack.c.bf16 %v279, %v278
  %v310 = vpack.c.bf16 %v281, %v280
  %v311 = vpack.c.bf16 %v283, %v282
  %v312 = vpack.c.bf16 %v285, %v284
  %v313 = vpack.c.bf16 %v287, %v286
  %v314 = vpack.c.bf16 %v289, %v288
  %v315 = vpack.c.bf16 %v291, %v290
  %v316 = vpack.c.bf16 %v293, %v292
  %v317 = vpack.c.bf16 %v295, %v294
  %v318 = vpack.c.bf16 %v297, %v296
  %v319 = vpack.c.bf16 %v299, %v298
  %v320 = vpack.c.bf16 %v301, %v300
  %v321 = vpack.c.bf16 %v303, %v302
  %v322 = vpack.c.bf16 %v305, %v304
  %v323 = vpack.c.bf16 %v307, %v306
  %v324 = vld [vmem:[%s1] sm:$0xf]
  %v325 = vld [vmem:[%s1 + $0x4] sm:$0xf]
  %v326 = vld [vmem:[%s1 + $0x8] sm:$0xf]
  %v327 = vld [vmem:[%s1 + $0xc] sm:$0xf]
  %v332 = vunpack.c.l.b16 %v324
  %v333 = vunpack.c.l.b16 %v325
  %v334 = vunpack.c.l.b16 %v326
  %v335 = vunpack.c.l.b16 %v327
  %v336 = vpack.c.b16 %v333, %v332
  %v337 = vpack.c.b16 %v335, %v334
  %v341 = vsel %vm82, %v308, 0
  %v344 = vsel %vm82, %v309, 0
  %v347 = vsel %vm82, %v310, 0
  %v350 = vsel %vm82, %v311, 0
  %v353 = vsel %vm82, %v312, 0
  %v356 = vsel %vm82, %v313, 0
  %v359 = vsel %vm82, %v314, 0
  %v362 = vsel %vm82, %v315, 0
  %v365 = vsel %vm82, %v316, 0
  %v368 = vsel %vm82, %v317, 0
  %v371 = vsel %vm82, %v318, 0
  %v374 = vsel %vm82, %v319, 0
  %v377 = vsel %vm82, %v320, 0
  %v380 = vsel %vm82, %v321, 0
  %v383 = vsel %vm82, %v322, 0
  %v386 = vsel %vm82, %v323, 0
  %388 = vmatprep.subr.bf16.mxu0 0
  %389 = vmatpush1.bf16.msra.mxu0 %v336
  %390 = vmatprep.subr.bf16.mxu0 0
  %391 = vmatpush1.bf16.msra.mxu0 %v337
  %392 = vmatprep.subr.bf16.mxu0 0
  %393 = vmatpush1.bf16.msra.mxu0 0
  %394 = vmatprep.subr.bf16.mxu0 0
  %395 = vmatpush1.bf16.msra.mxu0 0
  %396 = vmatprep.subr.bf16.mxu0 0
  %397 = vmatpush1.bf16.msra.mxu0 0
  %398 = vmatprep.subr.bf16.mxu0 0
  %399 = vmatpush1.bf16.msra.mxu0 0
  %400 = vmatprep.subr.bf16.mxu0 0
  %401 = vmatpush1.bf16.msra.mxu0 0
  %402 = vmatprep.subr.bf16.mxu0 0
  %403 = vmatpush1.bf16.msra.mxu0 0
  %404 = vmatprep.subr.bf16.mxu0 0
  %405 = vmatpush1.bf16.msra.mxu0 0
  %406 = vmatprep.subr.bf16.mxu0 0
  %407 = vmatpush1.bf16.msra.mxu0 0
  %408 = vmatprep.subr.bf16.mxu0 0
  %409 = vmatpush1.bf16.msra.mxu0 0
  %410 = vmatprep.subr.bf16.mxu0 0
  %411 = vmatpush1.bf16.msra.mxu0 0
  %412 = vmatprep.subr.bf16.mxu0 0
  %413 = vmatpush1.bf16.msra.mxu0 0
  %414 = vmatprep.subr.bf16.mxu0 0
  %415 = vmatpush1.bf16.msra.mxu0 0
  %416 = vmatprep.subr.bf16.mxu0 0
  %417 = vmatpush1.bf16.msra.mxu0 0
  %418 = vmatprep.subr.bf16.mxu0 0
  %419 = vmatpush1.bf16.msra.mxu0 0
  %420 = vmatprep.mubr.bf16.mxu0 0
  %421 = vmatmul.mubr.bf16.gmra.mrb[0].mxu0 %v341
  %v422 = vpop.f32.mrb[0].mxu0
  %v423 = vadd.f32 0.0, %v422
  %v424 = vpop.f32.mrb[0].mxu0
  %v425 = vpop.f32.mrb[0].mxu0
  %v426 = vadd.f32 0.0, %v425
  %v427 = vpop.f32.mrb[0].mxu0
  %428 = vmatprep.mubr.bf16.mxu0 0
  %429 = vmatmul.mubr.bf16.gmra.mrb[0].mxu0 %v344
  %v430 = vpop.f32.mrb[0].mxu0
  %v431 = vadd.f32 0.0, %v430
  %v432 = vpop.f32.mrb[0].mxu0
  %v433 = vpop.f32.mrb[0].mxu0
  %v434 = vadd.f32 0.0, %v433
  %v435 = vpop.f32.mrb[0].mxu0
  %436 = vmatprep.mubr.bf16.mxu0 0
  %437 = vmatmul.mubr.bf16.gmra.mrb[0].mxu0 %v347
  %v438 = vpop.f32.mrb[0].mxu0
  %v439 = vadd.f32 0.0, %v438
  %v440 = vpop.f32.mrb[0].mxu0
  %v441 = vpop.f32.mrb[0].mxu0
  %v442 = vadd.f32 0.0, %v441
  %v443 = vpop.f32.mrb[0].mxu0
  %444 = vmatprep.mubr.bf16.mxu0 0
  %445 = vmatmul.mubr.bf16.gmra.mrb[0].mxu0 %v350
  %v446 = vpop.f32.mrb[0].mxu0
  %v447 = vadd.f32 0.0, %v446
  %v448 = vpop.f32.mrb[0].mxu0
  %v449 = vpop.f32.mrb[0].mxu0
  %v450 = vadd.f32 0.0, %v449
  %v451 = vpop.f32.mrb[0].mxu0
  %452 = vmatprep.mubr.bf16.mxu0 0
  %453 = vmatmul.mubr.bf16.gmra.mrb[0].mxu0 %v353
  %v454 = vpop.f32.mrb[0].mxu0
  %v455 = vadd.f32 0.0, %v454
  %v456 = vpop.f32.mrb[0].mxu0
  %v457 = vpop.f32.mrb[0].mxu0
  %v458 = vadd.f32 0.0, %v457
  %v459 = vpop.f32.mrb[0].mxu0
  %460 = vmatprep.mubr.bf16.mxu0 0
  %461 = vmatmul.mubr.bf16.gmra.mrb[0].mxu0 %v356
  %v462 = vpop.f32.mrb[0].mxu0
  %v463 = vadd.f32 0.0, %v462
  %v464 = vpop.f32.mrb[0].mxu0
  %v465 = vpop.f32.mrb[0].mxu0
  %v466 = vadd.f32 0.0, %v465
  %v467 = vpop.f32.mrb[0].mxu0
  %468 = vmatprep.mubr.bf16.mxu0 0
  %469 = vmatmul.mubr.bf16.gmra.mrb[0].mxu0 %v359
  %v470 = vpop.f32.mrb[0].mxu0
  %v471 = vadd.f32 0.0, %v470
  %v472 = vpop.f32.mrb[0].mxu0
  %v473 = vpop.f32.mrb[0].mxu0
  %v474 = vadd.f32 0.0, %v473
  %v475 = vpop.f32.mrb[0].mxu0
  %476 = vmatprep.mubr.bf16.mxu0 0
  %477 = vmatmul.mubr.bf16.gmra.mrb[0].mxu0 %v362
  %v478 = vpop.f32.mrb[0].mxu0
  %v479 = vadd.f32 0.0, %v478
  %v480 = vpop.f32.mrb[0].mxu0
  %v481 = vpop.f32.mrb[0].mxu0
  %v482 = vadd.f32 0.0, %v481
  %v483 = vpop.f32.mrb[0].mxu0
  %484 = vmatprep.mubr.bf16.mxu0 0
  %485 = vmatmul.mubr.bf16.gmra.mrb[0].mxu0 %v365
  %v486 = vpop.f32.mrb[0].mxu0
  %v487 = vadd.f32 0.0, %v486
  %v488 = vpop.f32.mrb[0].mxu0
  %v489 = vpop.f32.mrb[0].mxu0
  %v490 = vadd.f32 0.0, %v489
  %v491 = vpop.f32.mrb[0].mxu0
  %492 = vmatprep.mubr.bf16.mxu0 0
  %493 = vmatmul.mubr.bf16.gmra.mrb[0].mxu0 %v368
  %v494 = vpop.f32.mrb[0].mxu0
  %v495 = vadd.f32 0.0, %v494
  %v496 = vpop.f32.mrb[0].mxu0
  %v497 = vpop.f32.mrb[0].mxu0
  %v498 = vadd.f32 0.0, %v497
  %v499 = vpop.f32.mrb[0].mxu0
  %500 = vmatprep.mubr.bf16.mxu0 0
  %501 = vmatmul.mubr.bf16.gmra.mrb[0].mxu0 %v371
  %v502 = vpop.f32.mrb[0].mxu0
  %v503 = vadd.f32 0.0, %v502
  %v504 = vpop.f32.mrb[0].mxu0
  %v505 = vpop.f32.mrb[0].mxu0
  %v506 = vadd.f32 0.0, %v505
  %v507 = vpop.f32.mrb[0].mxu0
  %508 = vmatprep.mubr.bf16.mxu0 0
  %509 = vmatmul.mubr.bf16.gmra.mrb[0].mxu0 %v374
  %v510 = vpop.f32.mrb[0].mxu0
  %v511 = vadd.f32 0.0, %v510
  %v512 = vpop.f32.mrb[0].mxu0
  %v513 = vpop.f32.mrb[0].mxu0
  %v514 = vadd.f32 0.0, %v513
  %v515 = vpop.f32.mrb[0].mxu0
  %516 = vmatprep.mubr.bf16.mxu0 0
  %517 = vmatmul.mubr.bf16.gmra.mrb[0].mxu0 %v377
  %v518 = vpop.f32.mrb[0].mxu0
  %v519 = vadd.f32 0.0, %v518
  %v520 = vpop.f32.mrb[0].mxu0
  %v521 = vpop.f32.mrb[0].mxu0
  %v522 = vadd.f32 0.0, %v521
  %v523 = vpop.f32.mrb[0].mxu0
  %524 = vmatprep.mubr.bf16.mxu0 0
  %525 = vmatmul.mubr.bf16.gmra.mrb[0].mxu0 %v380
  %v526 = vpop.f32.mrb[0].mxu0
  %v527 = vadd.f32 0.0, %v526
  %v528 = vpop.f32.mrb[0].mxu0
  %v529 = vpop.f32.mrb[0].mxu0
  %v530 = vadd.f32 0.0, %v529
  %v531 = vpop.f32.mrb[0].mxu0
  %532 = vmatprep.mubr.bf16.mxu0 0
  %533 = vmatmul.mubr.bf16.gmra.mrb[0].mxu0 %v383
  %v534 = vpop.f32.mrb[0].mxu0
  %v535 = vadd.f32 0.0, %v534
  %v536 = vpop.f32.mrb[0].mxu0
  %v537 = vpop.f32.mrb[0].mxu0
  %v538 = vadd.f32 0.0, %v537
  %v539 = vpop.f32.mrb[0].mxu0
  %540 = vmatprep.mubr.bf16.mxu0 0
  %541 = vmatmul.mubr.bf16.gmra.mrb[0].mxu0 %v386
  %v542 = vpop.f32.mrb[0].mxu0
  %v543 = vadd.f32 0.0, %v542
  %v544 = vpop.f32.mrb[0].mxu0
  %v545 = vpop.f32.mrb[0].mxu0
  %v546 = vadd.f32 0.0, %v545
  %v547 = vpop.f32.mrb[0].mxu0
  %548 = vdwg.mxu0
  %v549 = vmul.f32 %v423, %v423
  %v550 = vmul.f32 %v426, %v426
  %v551 = vmul.f32 %v431, %v431
  %v552 = vmul.f32 %v434, %v434
  %v553 = vmul.f32 %v439, %v439
  %v554 = vmul.f32 %v442, %v442
  %v555 = vmul.f32 %v447, %v447
  %v556 = vmul.f32 %v450, %v450
  %v557 = vmul.f32 %v455, %v455
  %v558 = vmul.f32 %v458, %v458
  %v559 = vmul.f32 %v463, %v463
  %v560 = vmul.f32 %v466, %v466
  %v561 = vmul.f32 %v471, %v471
  %v562 = vmul.f32 %v474, %v474
  %v563 = vmul.f32 %v479, %v479
  %v564 = vmul.f32 %v482, %v482
  %v565 = vmul.f32 %v487, %v487
  %v566 = vmul.f32 %v490, %v490
  %v567 = vmul.f32 %v495, %v495
  %v568 = vmul.f32 %v498, %v498
  %v569 = vmul.f32 %v503, %v503
  %v570 = vmul.f32 %v506, %v506
  %v571 = vmul.f32 %v511, %v511
  %v572 = vmul.f32 %v514, %v514
  %v573 = vmul.f32 %v519, %v519
  %v574 = vmul.f32 %v522, %v522
  %v575 = vmul.f32 %v527, %v527
  %v576 = vmul.f32 %v530, %v530
  %v577 = vmul.f32 %v535, %v535
  %v578 = vmul.f32 %v538, %v538
  %v579 = vmul.f32 %v543, %v543
  %v580 = vmul.f32 %v546, %v546
  %v581 = vld [vmem:[%s2] sm:$0xff]
  %v582 = vld [vmem:[%s2 + $0x8] sm:$0xff]
  %v583 = vld [vmem:[%s2 + $0x10] sm:$0xff]
  %v584 = vld [vmem:[%s2 + $0x18] sm:$0xff]
  %v585 = vld [vmem:[%s2 + $0x20] sm:$0xff]
  %v586 = vld [vmem:[%s2 + $0x28] sm:$0xff]
  %v587 = vld [vmem:[%s2 + $0x30] sm:$0xff]
  %v588 = vld [vmem:[%s2 + $0x38] sm:$0xff]
  %vm589 = vcmask 523264
  %v591 = vsel %vm589, %v549, 0
  %v594 = vsel %vm589, %v550, 0
  %v597 = vsel %vm589, %v551, 0
  %v600 = vsel %vm589, %v552, 0
  %v603 = vsel %vm589, %v553, 0
  %v606 = vsel %vm589, %v554, 0
  %v609 = vsel %vm589, %v555, 0
  %v612 = vsel %vm589, %v556, 0
  %v615 = vsel %vm589, %v557, 0
  %v618 = vsel %vm589, %v558, 0
  %v621 = vsel %vm589, %v559, 0
  %v624 = vsel %vm589, %v560, 0
  %v627 = vsel %vm589, %v561, 0
  %v630 = vsel %vm589, %v562, 0
  %v633 = vsel %vm589, %v563, 0
  %v636 = vsel %vm589, %v564, 0
  %v639 = vsel %vm589, %v565, 0
  %v642 = vsel %vm589, %v566, 0
  %v645 = vsel %vm589, %v567, 0
  %v648 = vsel %vm589, %v568, 0
  %v651 = vsel %vm589, %v569, 0
  %v654 = vsel %vm589, %v570, 0
  %v657 = vsel %vm589, %v571, 0
  %v660 = vsel %vm589, %v572, 0
  %v663 = vsel %vm589, %v573, 0
  %v666 = vsel %vm589, %v574, 0
  %v669 = vsel %vm589, %v575, 0
  %v672 = vsel %vm589, %v576, 0
  %v675 = vsel %vm589, %v577, 0
  %v678 = vsel %vm589, %v578, 0
  %v681 = vsel %vm589, %v579, 0
  %v684 = vsel %vm589, %v580, 0
  %686 = vmatprep.subr.mxu0 0.0
  %687 = vmatpush1.msra.mxu0 %v581
  %688 = vmatprep.subr.mxu0 0.0
  %689 = vmatpush1.msra.mxu0 %v582
  %690 = vmatprep.subr.mxu0 0.0
  %691 = vmatpush1.msra.mxu0 %v583
  %692 = vmatprep.subr.mxu0 0.0
  %693 = vmatpush1.msra.mxu0 %v584
  %694 = vmatprep.subr.mxu0 0.0
  %695 = vmatpush1.msra.mxu0 %v585
  %696 = vmatprep.subr.mxu0 0.0
  %697 = vmatpush1.msra.mxu0 %v586
  %698 = vmatprep.subr.mxu0 0.0
  %699 = vmatpush1.msra.mxu0 %v587
  %700 = vmatprep.subr.mxu0 0.0
  %701 = vmatpush1.msra.mxu0 %v588
  %702 = vmatprep.subr.mxu0 0.0
  %703 = vmatpush1.msra.mxu0 0.0
  %704 = vmatprep.subr.mxu0 0.0
  %705 = vmatpush1.msra.mxu0 0.0
  %706 = vmatprep.subr.mxu0 0.0
  %707 = vmatpush1.msra.mxu0 0.0
  %708 = vmatprep.subr.mxu0 0.0
  %709 = vmatpush1.msra.mxu0 0.0
  %710 = vmatprep.subr.mxu0 0.0
  %711 = vmatpush1.msra.mxu0 0.0
  %712 = vmatprep.subr.mxu0 0.0
  %713 = vmatpush1.msra.mxu0 0.0
  %714 = vmatprep.subr.mxu0 0.0
  %715 = vmatpush1.msra.mxu0 0.0
  %716 = vmatprep.subr.mxu0 0.0
  %717 = vmatpush1.msra.mxu0 0.0
  %718 = vmatprep.subr.mxu0 0.0
  %719 = vmatpush1.msra.mxu0 0.0
  %720 = vmatprep.subr.mxu0 0.0
  %721 = vmatpush1.msra.mxu0 0.0
  %722 = vmatprep.subr.mxu0 0.0
  %723 = vmatpush1.msra.mxu0 0.0
  %724 = vmatprep.subr.mxu0 0.0
  %725 = vmatpush1.msra.mxu0 0.0
  %726 = vmatprep.subr.mxu0 0.0
  %727 = vmatpush1.msra.mxu0 0.0
  %728 = vmatprep.subr.mxu0 0.0
  %729 = vmatpush1.msra.mxu0 0.0
  %730 = vmatprep.subr.mxu0 0.0
  %731 = vmatpush1.msra.mxu0 0.0
  %732 = vmatprep.subr.mxu0 0.0
  %733 = vmatpush1.msra.mxu0 0.0
  %734 = vmatprep.subr.mxu0 0.0
  %735 = vmatpush1.msra.mxu0 0.0
  %736 = vmatprep.subr.mxu0 0.0
  %737 = vmatpush1.msra.mxu0 0.0
  %738 = vmatprep.subr.mxu0 0.0
  %739 = vmatpush1.msra.mxu0 0.0
  %740 = vmatprep.subr.mxu0 0.0
  %741 = vmatpush1.msra.mxu0 0.0
  %742 = vmatprep.subr.mxu0 0.0
  %743 = vmatpush1.msra.mxu0 0.0
  %744 = vmatprep.subr.mxu0 0.0
  %745 = vmatpush1.msra.mxu0 0.0
  %746 = vmatprep.subr.mxu0 0.0
  %747 = vmatpush1.msra.mxu0 0.0
  %748 = vmatprep.subr.mxu0 0.0
  %749 = vmatpush1.msra.mxu0 0.0
  %750 = vmatprep.mubr.f32.mxu0 0.0
  %751 = vmatmul.mubr.f32.gmra.mrb[0].mxu0 %v591
  %v752 = vpop.f32.mrb[0].mxu0
  %v753 = vadd.f32 0.0, %v752
  %v754 = vpop.f32.mrb[0].mxu0
  %755 = vmatprep.mubr.f32.mxu0 0.0
  %756 = vmatmul.mubr.f32.gmra.mrb[0].mxu0 %v594
  %v757 = vpop.f32.mrb[0].mxu0
  %v758 = vadd.f32 0.0, %v757
  %v759 = vpop.f32.mrb[0].mxu0
  %760 = vmatprep.mubr.f32.mxu0 0.0
  %761 = vmatmul.mubr.f32.gmra.mrb[0].mxu0 %v597
  %v762 = vpop.f32.mrb[0].mxu0
  %v763 = vadd.f32 0.0, %v762
  %v764 = vpop.f32.mrb[0].mxu0
  %765 = vmatprep.mubr.f32.mxu0 0.0
  %766 = vmatmul.mubr.f32.gmra.mrb[0].mxu0 %v600
  %v767 = vpop.f32.mrb[0].mxu0
  %v768 = vadd.f32 0.0, %v767
  %v769 = vpop.f32.mrb[0].mxu0
  %770 = vmatprep.mubr.f32.mxu0 0.0
  %771 = vmatmul.mubr.f32.gmra.mrb[0].mxu0 %v603
  %v772 = vpop.f32.mrb[0].mxu0
  %v773 = vadd.f32 0.0, %v772
  %v774 = vpop.f32.mrb[0].mxu0
  %775 = vmatprep.mubr.f32.mxu0 0.0
  %776 = vmatmul.mubr.f32.gmra.mrb[0].mxu0 %v606
  %v777 = vpop.f32.mrb[0].mxu0
  %v778 = vadd.f32 0.0, %v777
  %v779 = vpop.f32.mrb[0].mxu0
  %780 = vmatprep.mubr.f32.mxu0 0.0
  %781 = vmatmul.mubr.f32.gmra.mrb[0].mxu0 %v609
  %v782 = vpop.f32.mrb[0].mxu0
  %v783 = vadd.f32 0.0, %v782
  %v784 = vpop.f32.mrb[0].mxu0
  %785 = vmatprep.mubr.f32.mxu0 0.0
  %786 = vmatmul.mubr.f32.gmra.mrb[0].mxu0 %v612
  %v787 = vpop.f32.mrb[0].mxu0
  %v788 = vadd.f32 0.0, %v787
  %v789 = vpop.f32.mrb[0].mxu0
  %790 = vmatprep.mubr.f32.mxu0 0.0
  %791 = vmatmul.mubr.f32.gmra.mrb[0].mxu0 %v615
  %v792 = vpop.f32.mrb[0].mxu0
  %v793 = vadd.f32 0.0, %v792
  %v794 = vpop.f32.mrb[0].mxu0
  %795 = vmatprep.mubr.f32.mxu0 0.0
  %796 = vmatmul.mubr.f32.gmra.mrb[0].mxu0 %v618
  %v797 = vpop.f32.mrb[0].mxu0
  %v798 = vadd.f32 0.0, %v797
  %v799 = vpop.f32.mrb[0].mxu0
  %800 = vmatprep.mubr.f32.mxu0 0.0
  %801 = vmatmul.mubr.f32.gmra.mrb[0].mxu0 %v621
  %v802 = vpop.f32.mrb[0].mxu0
  %v803 = vadd.f32 0.0, %v802
  %v804 = vpop.f32.mrb[0].mxu0
  %805 = vmatprep.mubr.f32.mxu0 0.0
  %806 = vmatmul.mubr.f32.gmra.mrb[0].mxu0 %v624
  %v807 = vpop.f32.mrb[0].mxu0
  %v808 = vadd.f32 0.0, %v807
  %v809 = vpop.f32.mrb[0].mxu0
  %810 = vmatprep.mubr.f32.mxu0 0.0
  %811 = vmatmul.mubr.f32.gmra.mrb[0].mxu0 %v627
  %v812 = vpop.f32.mrb[0].mxu0
  %v813 = vadd.f32 0.0, %v812
  %v814 = vpop.f32.mrb[0].mxu0
  %815 = vmatprep.mubr.f32.mxu0 0.0
  %816 = vmatmul.mubr.f32.gmra.mrb[0].mxu0 %v630
  %v817 = vpop.f32.mrb[0].mxu0
  %v818 = vadd.f32 0.0, %v817
  %v819 = vpop.f32.mrb[0].mxu0
  %820 = vmatprep.mubr.f32.mxu0 0.0
  %821 = vmatmul.mubr.f32.gmra.mrb[0].mxu0 %v633
  %v822 = vpop.f32.mrb[0].mxu0
  %v823 = vadd.f32 0.0, %v822
  %v824 = vpop.f32.mrb[0].mxu0
  %825 = vmatprep.mubr.f32.mxu0 0.0
  %826 = vmatmul.mubr.f32.gmra.mrb[0].mxu0 %v636
  %v827 = vpop.f32.mrb[0].mxu0
  %v828 = vadd.f32 0.0, %v827
  %v829 = vpop.f32.mrb[0].mxu0
  %830 = vmatprep.mubr.f32.mxu0 0.0
  %831 = vmatmul.mubr.f32.gmra.mrb[0].mxu0 %v639
  %v832 = vpop.f32.mrb[0].mxu0
  %v833 = vadd.f32 0.0, %v832
  %v834 = vpop.f32.mrb[0].mxu0
  %835 = vmatprep.mubr.f32.mxu0 0.0
  %836 = vmatmul.mubr.f32.gmra.mrb[0].mxu0 %v642
  %v837 = vpop.f32.mrb[0].mxu0
  %v838 = vadd.f32 0.0, %v837
  %v839 = vpop.f32.mrb[0].mxu0
  %840 = vmatprep.mubr.f32.mxu0 0.0
  %841 = vmatmul.mubr.f32.gmra.mrb[0].mxu0 %v645
  %v842 = vpop.f32.mrb[0].mxu0
  %v843 = vadd.f32 0.0, %v842
  %v844 = vpop.f32.mrb[0].mxu0
  %845 = vmatprep.mubr.f32.mxu0 0.0
  %846 = vmatmul.mubr.f32.gmra.mrb[0].mxu0 %v648
  %v847 = vpop.f32.mrb[0].mxu0
  %v848 = vadd.f32 0.0, %v847
  %v849 = vpop.f32.mrb[0].mxu0
  %850 = vmatprep.mubr.f32.mxu0 0.0
  %851 = vmatmul.mubr.f32.gmra.mrb[0].mxu0 %v651
  %v852 = vpop.f32.mrb[0].mxu0
  %v853 = vadd.f32 0.0, %v852
  %v854 = vpop.f32.mrb[0].mxu0
  %855 = vmatprep.mubr.f32.mxu0 0.0
  %856 = vmatmul.mubr.f32.gmra.mrb[0].mxu0 %v654
  %v857 = vpop.f32.mrb[0].mxu0
  %v858 = vadd.f32 0.0, %v857
  %v859 = vpop.f32.mrb[0].mxu0
  %860 = vmatprep.mubr.f32.mxu0 0.0
  %861 = vmatmul.mubr.f32.gmra.mrb[0].mxu0 %v657
  %v862 = vpop.f32.mrb[0].mxu0
  %v863 = vadd.f32 0.0, %v862
  %v864 = vpop.f32.mrb[0].mxu0
  %865 = vmatprep.mubr.f32.mxu0 0.0
  %866 = vmatmul.mubr.f32.gmra.mrb[0].mxu0 %v660
  %v867 = vpop.f32.mrb[0].mxu0
  %v868 = vadd.f32 0.0, %v867
  %v869 = vpop.f32.mrb[0].mxu0
  %870 = vmatprep.mubr.f32.mxu0 0.0
  %871 = vmatmul.mubr.f32.gmra.mrb[0].mxu0 %v663
  %v872 = vpop.f32.mrb[0].mxu0
  %v873 = vadd.f32 0.0, %v872
  %v874 = vpop.f32.mrb[0].mxu0
  %875 = vmatprep.mubr.f32.mxu0 0.0
  %876 = vmatmul.mubr.f32.gmra.mrb[0].mxu0 %v666
  %v877 = vpop.f32.mrb[0].mxu0
  %v878 = vadd.f32 0.0, %v877
  %v879 = vpop.f32.mrb[0].mxu0
  %880 = vmatprep.mubr.f32.mxu0 0.0
  %881 = vmatmul.mubr.f32.gmra.mrb[0].mxu0 %v669
  %v882 = vpop.f32.mrb[0].mxu0
  %v883 = vadd.f32 0.0, %v882
  %v884 = vpop.f32.mrb[0].mxu0
  %885 = vmatprep.mubr.f32.mxu0 0.0
  %886 = vmatmul.mubr.f32.gmra.mrb[0].mxu0 %v672
  %v887 = vpop.f32.mrb[0].mxu0
  %v888 = vadd.f32 0.0, %v887
  %v889 = vpop.f32.mrb[0].mxu0
  %890 = vmatprep.mubr.f32.mxu0 0.0
  %891 = vmatmul.mubr.f32.gmra.mrb[0].mxu0 %v675
  %v892 = vpop.f32.mrb[0].mxu0
  %v893 = vadd.f32 0.0, %v892
  %v894 = vpop.f32.mrb[0].mxu0
  %895 = vmatprep.mubr.f32.mxu0 0.0
  %896 = vmatmul.mubr.f32.gmra.mrb[0].mxu0 %v678
  %v897 = vpop.f32.mrb[0].mxu0
  %v898 = vadd.f32 0.0, %v897
  %v899 = vpop.f32.mrb[0].mxu0
  %900 = vmatprep.mubr.f32.mxu0 0.0
  %901 = vmatmul.mubr.f32.gmra.mrb[0].mxu0 %v681
  %v902 = vpop.f32.mrb[0].mxu0
  %v903 = vadd.f32 0.0, %v902
  %v904 = vpop.f32.mrb[0].mxu0
  %905 = vmatprep.mubr.f32.mxu0 0.0
  %906 = vmatmul.mubr.f32.gmra.mrb[0].mxu0 %v684
  %v907 = vpop.f32.mrb[0].mxu0
  %v908 = vadd.f32 0.0, %v907
  %v909 = vpop.f32.mrb[0].mxu0
  %910 = vdwg.mxu0
  %v911 = vmul.f32 %v753, 0.125
  %v912 = vmul.f32 %v758, 0.125
  %v913 = vmul.f32 %v763, 0.125
  %v914 = vmul.f32 %v768, 0.125
  %v915 = vmul.f32 %v773, 0.125
  %v916 = vmul.f32 %v778, 0.125
  %v917 = vmul.f32 %v783, 0.125
  %v918 = vmul.f32 %v788, 0.125
  %v919 = vmul.f32 %v793, 0.125
  %v920 = vmul.f32 %v798, 0.125
  %v921 = vmul.f32 %v803, 0.125
  %v922 = vmul.f32 %v808, 0.125
  %v923 = vmul.f32 %v813, 0.125
  %v924 = vmul.f32 %v818, 0.125
  %v925 = vmul.f32 %v823, 0.125
  %v926 = vmul.f32 %v828, 0.125
  %v927 = vmul.f32 %v833, 0.125
  %v928 = vmul.f32 %v838, 0.125
  %v929 = vmul.f32 %v843, 0.125
  %v930 = vmul.f32 %v848, 0.125
  %v931 = vmul.f32 %v853, 0.125
  %v932 = vmul.f32 %v858, 0.125
  %v933 = vmul.f32 %v863, 0.125
  %v934 = vmul.f32 %v868, 0.125
  %v935 = vmul.f32 %v873, 0.125
  %v936 = vmul.f32 %v878, 0.125
  %v937 = vmul.f32 %v883, 0.125
  %v938 = vmul.f32 %v888, 0.125
  %v939 = vmul.f32 %v893, 0.125
  %v940 = vmul.f32 %v898, 0.125
  %v941 = vmul.f32 %v903, 0.125
  %v942 = vmul.f32 %v908, 0.125
  %v943 = vadd.f32 %v911, 1e-06
  %v944 = vadd.f32 %v912, 1e-06
  %v945 = vadd.f32 %v913, 1e-06
  %v946 = vadd.f32 %v914, 1e-06
  %v947 = vadd.f32 %v915, 1e-06
  %v948 = vadd.f32 %v916, 1e-06
  %v949 = vadd.f32 %v917, 1e-06
  %v950 = vadd.f32 %v918, 1e-06
  %v951 = vadd.f32 %v919, 1e-06
  %v952 = vadd.f32 %v920, 1e-06
  %v953 = vadd.f32 %v921, 1e-06
  %v954 = vadd.f32 %v922, 1e-06
  %v955 = vadd.f32 %v923, 1e-06
  %v956 = vadd.f32 %v924, 1e-06
  %v957 = vadd.f32 %v925, 1e-06
  %v958 = vadd.f32 %v926, 1e-06
  %v959 = vadd.f32 %v927, 1e-06
  %v960 = vadd.f32 %v928, 1e-06
  %v961 = vadd.f32 %v929, 1e-06
  %v962 = vadd.f32 %v930, 1e-06
  %v963 = vadd.f32 %v931, 1e-06
  %v964 = vadd.f32 %v932, 1e-06
  %v965 = vadd.f32 %v933, 1e-06
  %v966 = vadd.f32 %v934, 1e-06
  %v967 = vadd.f32 %v935, 1e-06
  %v968 = vadd.f32 %v936, 1e-06
  %v969 = vadd.f32 %v937, 1e-06
  %v970 = vadd.f32 %v938, 1e-06
  %v971 = vadd.f32 %v939, 1e-06
  %v972 = vadd.f32 %v940, 1e-06
  %v973 = vadd.f32 %v941, 1e-06
  %v974 = vadd.f32 %v942, 1e-06
  %v975 = vrsqrt.pop %v943
  %v976 = vrsqrt.pop %v944
  %v977 = vrsqrt.pop %v945
  %v978 = vrsqrt.pop %v946
  %v979 = vrsqrt.pop %v947
  %v980 = vrsqrt.pop %v948
  %v981 = vrsqrt.pop %v949
  %v982 = vrsqrt.pop %v950
  %v983 = vrsqrt.pop %v951
  %v984 = vrsqrt.pop %v952
  %v985 = vrsqrt.pop %v953
  %v986 = vrsqrt.pop %v954
  %v987 = vrsqrt.pop %v955
  %v988 = vrsqrt.pop %v956
  %v989 = vrsqrt.pop %v957
  %v990 = vrsqrt.pop %v958
  %v991 = vrsqrt.pop %v959
  %v992 = vrsqrt.pop %v960
  %v993 = vrsqrt.pop %v961
  %v994 = vrsqrt.pop %v962
  %v995 = vrsqrt.pop %v963
  %v996 = vrsqrt.pop %v964
  %v997 = vrsqrt.pop %v965
  %v998 = vrsqrt.pop %v966
  %v999 = vrsqrt.pop %v967
  %v1000 = vrsqrt.pop %v968
  %v1001 = vrsqrt.pop %v969
  %v1002 = vrsqrt.pop %v970
  %v1003 = vrsqrt.pop %v971
  %v1004 = vrsqrt.pop %v972
  %v1005 = vrsqrt.pop %v973
  %v1006 = vrsqrt.pop %v974
  %v1007 = vmul.f32 %v423, %v975
  %v1008 = vmul.f32 %v426, %v976
  %v1009 = vmul.f32 %v431, %v977
  %v1010 = vmul.f32 %v434, %v978
  %v1011 = vmul.f32 %v439, %v979
  %v1012 = vmul.f32 %v442, %v980
  %v1013 = vmul.f32 %v447, %v981
  %v1014 = vmul.f32 %v450, %v982
  %v1015 = vmul.f32 %v455, %v983
  %v1016 = vmul.f32 %v458, %v984
  %v1017 = vmul.f32 %v463, %v985
  %v1018 = vmul.f32 %v466, %v986
  %v1019 = vmul.f32 %v471, %v987
  %v1020 = vmul.f32 %v474, %v988
  %v1021 = vmul.f32 %v479, %v989
  %v1022 = vmul.f32 %v482, %v990
  %v1023 = vmul.f32 %v487, %v991
  %v1024 = vmul.f32 %v490, %v992
  %v1025 = vmul.f32 %v495, %v993
  %v1026 = vmul.f32 %v498, %v994
  %v1027 = vmul.f32 %v503, %v995
  %v1028 = vmul.f32 %v506, %v996
  %v1029 = vmul.f32 %v511, %v997
  %v1030 = vmul.f32 %v514, %v998
  %v1031 = vmul.f32 %v519, %v999
  %v1032 = vmul.f32 %v522, %v1000
  %v1033 = vmul.f32 %v527, %v1001
  %v1034 = vmul.f32 %v530, %v1002
  %v1035 = vmul.f32 %v535, %v1003
  %v1036 = vmul.f32 %v538, %v1004
  %v1037 = vmul.f32 %v543, %v1005
  %v1038 = vmul.f32 %v546, %v1006
  %v1039 = vmul.f32 %v1007, 0.35355338
  %v1040 = vmul.f32 %v1008, 0.35355338
  %v1041 = vmul.f32 %v1009, 0.35355338
  %v1042 = vmul.f32 %v1010, 0.35355338
  %v1043 = vmul.f32 %v1011, 0.35355338
  %v1044 = vmul.f32 %v1012, 0.35355338
  %v1045 = vmul.f32 %v1013, 0.35355338
  %v1046 = vmul.f32 %v1014, 0.35355338
  %v1047 = vmul.f32 %v1015, 0.35355338
  %v1048 = vmul.f32 %v1016, 0.35355338
  %v1049 = vmul.f32 %v1017, 0.35355338
  %v1050 = vmul.f32 %v1018, 0.35355338
  %v1051 = vmul.f32 %v1019, 0.35355338
  %v1052 = vmul.f32 %v1020, 0.35355338
  %v1053 = vmul.f32 %v1021, 0.35355338
  %v1054 = vmul.f32 %v1022, 0.35355338
  %v1055 = vmul.f32 %v1023, 0.35355338
  %v1056 = vmul.f32 %v1024, 0.35355338
  %v1057 = vmul.f32 %v1025, 0.35355338
  %v1058 = vmul.f32 %v1026, 0.35355338
  %v1059 = vmul.f32 %v1027, 0.35355338
  %v1060 = vmul.f32 %v1028, 0.35355338
  %v1061 = vmul.f32 %v1029, 0.35355338
  %v1062 = vmul.f32 %v1030, 0.35355338
  %v1063 = vmul.f32 %v1031, 0.35355338
  %v1064 = vmul.f32 %v1032, 0.35355338
  %v1065 = vmul.f32 %v1033, 0.35355338
  %v1066 = vmul.f32 %v1034, 0.35355338
  %v1067 = vmul.f32 %v1035, 0.35355338
  %v1068 = vmul.f32 %v1036, 0.35355338
  %v1069 = vmul.f32 %v1037, 0.35355338
  %v1070 = vmul.f32 %v1038, 0.35355338
  %v1071 = vpack.c.bf16 %v1040, %v1039
  %v1072 = vpack.c.bf16 %v1042, %v1041
  %v1073 = vpack.c.bf16 %v1044, %v1043
  %v1074 = vpack.c.bf16 %v1046, %v1045
  %v1075 = vpack.c.bf16 %v1048, %v1047
  %v1076 = vpack.c.bf16 %v1050, %v1049
  %v1077 = vpack.c.bf16 %v1052, %v1051
  %v1078 = vpack.c.bf16 %v1054, %v1053
  %v1079 = vpack.c.bf16 %v1056, %v1055
  %v1080 = vpack.c.bf16 %v1058, %v1057
  %v1081 = vpack.c.bf16 %v1060, %v1059
  %v1082 = vpack.c.bf16 %v1062, %v1061
  %v1083 = vpack.c.bf16 %v1064, %v1063
  %v1084 = vpack.c.bf16 %v1066, %v1065
  %v1085 = vpack.c.bf16 %v1068, %v1067
  %v1086 = vpack.c.bf16 %v1070, %v1069
  %v1087 = vpack.c.bf16 %v1008, %v1007
  %v1088 = vpack.c.bf16 %v1010, %v1009
  %v1089 = vpack.c.bf16 %v1012, %v1011
  %v1090 = vpack.c.bf16 %v1014, %v1013
  %v1091 = vpack.c.bf16 %v1016, %v1015
  %v1092 = vpack.c.bf16 %v1018, %v1017
  %v1093 = vpack.c.bf16 %v1020, %v1019
  %v1094 = vpack.c.bf16 %v1022, %v1021
  %v1095 = vpack.c.bf16 %v1024, %v1023
  %v1096 = vpack.c.bf16 %v1026, %v1025
  %v1097 = vpack.c.bf16 %v1028, %v1027
  %v1098 = vpack.c.bf16 %v1030, %v1029
  %v1099 = vpack.c.bf16 %v1032, %v1031
  %v1100 = vpack.c.bf16 %v1034, %v1033
  %v1101 = vpack.c.bf16 %v1036, %v1035
  %v1102 = vpack.c.bf16 %v1038, %v1037
  %v1103 = vpack.c.bf16 %v426, %v423
  %v1104 = vpack.c.bf16 %v434, %v431
  %v1105 = vpack.c.bf16 %v442, %v439
  %v1106 = vpack.c.bf16 %v450, %v447
  %v1107 = vpack.c.bf16 %v458, %v455
  %v1108 = vpack.c.bf16 %v466, %v463
  %v1109 = vpack.c.bf16 %v474, %v471
  %v1110 = vpack.c.bf16 %v482, %v479
  %v1111 = vpack.c.bf16 %v490, %v487
  %v1112 = vpack.c.bf16 %v498, %v495
  %v1113 = vpack.c.bf16 %v506, %v503
  %v1114 = vpack.c.bf16 %v514, %v511
  %v1115 = vpack.c.bf16 %v522, %v519
  %v1116 = vpack.c.bf16 %v530, %v527
  %v1117 = vpack.c.bf16 %v538, %v535
  %v1118 = vpack.c.bf16 %v546, %v543
  %1123 = vrot.lane.b32.xlu0 %v1087, 96
  %v1124 = vpop.permute.xlu0 %1123
  %1125 = vrot.lane.b32.xlu0 %v1088, 96
  %v1126 = vpop.permute.xlu0 %1125
  %1127 = vrot.lane.b32.xlu0 %v1089, 96
  %v1128 = vpop.permute.xlu0 %1127
  %1129 = vrot.lane.b32.xlu0 %v1090, 96
  %v1130 = vpop.permute.xlu0 %1129
  %vm1131 = vcmask 64512
  %v1133 = vsel %vm1131, %v1071, 0
  %v1136 = vsel %vm1131, %v1072, 0
  %v1139 = vsel %vm1131, %v1073, 0
  %v1142 = vsel %vm1131, %v1074, 0
  %v1145 = vsel %vm1131, %v1124, 0
  %v1148 = vsel %vm1131, %v1126, 0
  %v1151 = vsel %vm1131, %v1128, 0
  %v1154 = vsel %vm1131, %v1130, 0
  %1156 = vmatprep.subr.bf16.mxu0 0
  %1157 = vmatpush1.bf16.xpose.msra.mxu0 %v1145
  %1158 = vmatprep.subr.bf16.mxu0 0
  %1159 = vmatpush1.bf16.xpose.msra.mxu0 %v1148
  %1160 = vmatprep.subr.bf16.mxu0 0
  %1161 = vmatpush1.bf16.xpose.msra.mxu0 %v1151
  %1162 = vmatprep.subr.bf16.mxu0 0
  %1163 = vmatpush1.bf16.xpose.msra.mxu0 %v1154
  %1164 = vmatprep.subr.bf16.mxu0 0
  %1165 = vmatpush1.bf16.xpose.msra.mxu0 0
  %1166 = vmatprep.subr.bf16.mxu0 0
  %1167 = vmatpush1.bf16.xpose.msra.mxu0 0
  %1168 = vmatprep.subr.bf16.mxu0 0
  %1169 = vmatpush1.bf16.xpose.msra.mxu0 0
  %1170 = vmatprep.subr.bf16.mxu0 0
  %1171 = vmatpush1.bf16.xpose.msra.mxu0 0
  %1172 = vmatprep.subr.bf16.mxu0 0
  %1173 = vmatpush1.bf16.xpose.msra.mxu0 0
  %1174 = vmatprep.subr.bf16.mxu0 0
  %1175 = vmatpush1.bf16.xpose.msra.mxu0 0
  %1176 = vmatprep.subr.bf16.mxu0 0
  %1177 = vmatpush1.bf16.xpose.msra.mxu0 0
  %1178 = vmatprep.subr.bf16.mxu0 0
  %1179 = vmatpush1.bf16.xpose.msra.mxu0 0
  %1180 = vmatprep.subr.bf16.mxu0 0
  %1181 = vmatpush1.bf16.xpose.msra.mxu0 0
  %1182 = vmatprep.subr.bf16.mxu0 0
  %1183 = vmatpush1.bf16.xpose.msra.mxu0 0
  %1184 = vmatprep.subr.bf16.mxu0 0
  %1185 = vmatpush1.bf16.xpose.msra.mxu0 0
  %1186 = vmatprep.subr.bf16.mxu0 0
  %1187 = vmatpush1.bf16.xpose.msra.mxu0 0
  %1188 = vmatprep.mubr.bf16.mxu0 0
  %1189 = vmatmul.mubr.bf16.gmra.mrb[0].mxu0 %v1133
  %v1190 = vpop.f32.mrb[0].mxu0
  %v1191 = vadd.f32 0.0, %v1190
  %v1192 = vpop.f32.mrb[0].mxu0
  %v1193 = vpop.f32.mrb[0].mxu0
  %v1194 = vadd.f32 0.0, %v1193
  %v1195 = vpop.f32.mrb[0].mxu0
  %1196 = vmatprep.mubr.bf16.mxu0 0
  %1197 = vmatmul.mubr.bf16.gmra.mrb[0].mxu0 %v1136
  %v1198 = vpop.f32.mrb[0].mxu0
  %v1199 = vadd.f32 0.0, %v1198
  %v1200 = vpop.f32.mrb[0].mxu0
  %v1201 = vpop.f32.mrb[0].mxu0
  %v1202 = vadd.f32 0.0, %v1201
  %v1203 = vpop.f32.mrb[0].mxu0
  %1204 = vmatprep.mubr.bf16.mxu0 0
  %1205 = vmatmul.mubr.bf16.gmra.mrb[0].mxu0 %v1139
  %v1206 = vpop.f32.mrb[0].mxu0
  %v1207 = vadd.f32 0.0, %v1206
  %v1208 = vpop.f32.mrb[0].mxu0
  %v1209 = vpop.f32.mrb[0].mxu0
  %v1210 = vadd.f32 0.0, %v1209
  %v1211 = vpop.f32.mrb[0].mxu0
  %1212 = vmatprep.mubr.bf16.mxu0 0
  %1213 = vmatmul.mubr.bf16.gmra.mrb[0].mxu0 %v1142
  %v1214 = vpop.f32.mrb[0].mxu0
  %v1215 = vadd.f32 0.0, %v1214
  %v1216 = vpop.f32.mrb[0].mxu0
  %v1217 = vpop.f32.mrb[0].mxu0
  %v1218 = vadd.f32 0.0, %v1217
  %v1219 = vpop.f32.mrb[0].mxu0
  %1220 = vdwg.mxu0
  %1225 = vrot.lane.b32.xlu0 %v1091, 96
  %v1226 = vpop.permute.xlu0 %1225
  %1227 = vrot.lane.b32.xlu0 %v1092, 96
  %v1228 = vpop.permute.xlu0 %1227
  %1229 = vrot.lane.b32.xlu0 %v1093, 96
  %v1230 = vpop.permute.xlu0 %1229
  %1231 = vrot.lane.b32.xlu0 %v1094, 96
  %v1232 = vpop.permute.xlu0 %1231
  %v1234 = vsel %vm1131, %v1075, 0
  %v1237 = vsel %vm1131, %v1076, 0
  %v1240 = vsel %vm1131, %v1077, 0
  %v1243 = vsel %vm1131, %v1078, 0
  %v1246 = vsel %vm1131, %v1226, 0
  %v1249 = vsel %vm1131, %v1228, 0
  %v1252 = vsel %vm1131, %v1230, 0
  %v1255 = vsel %vm1131, %v1232, 0
  %1257 = vmatprep.subr.bf16.mxu0 0
  %1258 = vmatpush1.bf16.xpose.msra.mxu0 %v1246
  %1259 = vmatprep.subr.bf16.mxu0 0
  %1260 = vmatpush1.bf16.xpose.msra.mxu0 %v1249
  %1261 = vmatprep.subr.bf16.mxu0 0
  %1262 = vmatpush1.bf16.xpose.msra.mxu0 %v1252
  %1263 = vmatprep.subr.bf16.mxu0 0
  %1264 = vmatpush1.bf16.xpose.msra.mxu0 %v1255
  %1265 = vmatprep.subr.bf16.mxu0 0
  %1266 = vmatpush1.bf16.xpose.msra.mxu0 0
  %1267 = vmatprep.subr.bf16.mxu0 0
  %1268 = vmatpush1.bf16.xpose.msra.mxu0 0
  %1269 = vmatprep.subr.bf16.mxu0 0
  %1270 = vmatpush1.bf16.xpose.msra.mxu0 0
  %1271 = vmatprep.subr.bf16.mxu0 0
  %1272 = vmatpush1.bf16.xpose.msra.mxu0 0
  %1273 = vmatprep.subr.bf16.mxu0 0
  %1274 = vmatpush1.bf16.xpose.msra.mxu0 0
  %1275 = vmatprep.subr.bf16.mxu0 0
  %1276 = vmatpush1.bf16.xpose.msra.mxu0 0
  %1277 = vmatprep.subr.bf16.mxu0 0
  %1278 = vmatpush1.bf16.xpose.msra.mxu0 0
  %1279 = vmatprep.subr.bf16.mxu0 0
  %1280 = vmatpush1.bf16.xpose.msra.mxu0 0
  %1281 = vmatprep.subr.bf16.mxu0 0
  %1282 = vmatpush1.bf16.xpose.msra.mxu0 0
  %1283 = vmatprep.subr.bf16.mxu0 0
  %1284 = vmatpush1.bf16.xpose.msra.mxu0 0
  %1285 = vmatprep.subr.bf16.mxu0 0
  %1286 = vmatpush1.bf16.xpose.msra.mxu0 0
  %1287 = vmatprep.subr.bf16.mxu0 0
  %1288 = vmatpush1.bf16.xpose.msra.mxu0 0
  %1289 = vmatprep.mubr.bf16.mxu0 0
  %1290 = vmatmul.mubr.bf16.gmra.mrb[0].mxu0 %v1234
  %v1291 = vpop.f32.mrb[0].mxu0
  %v1292 = vadd.f32 0.0, %v1291
  %v1293 = vpop.f32.mrb[0].mxu0
  %v1294 = vpop.f32.mrb[0].mxu0
  %v1295 = vadd.f32 0.0, %v1294
  %v1296 = vpop.f32.mrb[0].mxu0
  %1297 = vmatprep.mubr.bf16.mxu0 0
  %1298 = vmatmul.mubr.bf16.gmra.mrb[0].mxu0 %v1237
  %v1299 = vpop.f32.mrb[0].mxu0
  %v1300 = vadd.f32 0.0, %v1299
  %v1301 = vpop.f32.mrb[0].mxu0
  %v1302 = vpop.f32.mrb[0].mxu0
  %v1303 = vadd.f32 0.0, %v1302
  %v1304 = vpop.f32.mrb[0].mxu0
  %1305 = vmatprep.mubr.bf16.mxu0 0
  %1306 = vmatmul.mubr.bf16.gmra.mrb[0].mxu0 %v1240
  %v1307 = vpop.f32.mrb[0].mxu0
  %v1308 = vadd.f32 0.0, %v1307
  %v1309 = vpop.f32.mrb[0].mxu0
  %v1310 = vpop.f32.mrb[0].mxu0
  %v1311 = vadd.f32 0.0, %v1310
  %v1312 = vpop.f32.mrb[0].mxu0
  %1313 = vmatprep.mubr.bf16.mxu0 0
  %1314 = vmatmul.mubr.bf16.gmra.mrb[0].mxu0 %v1243
  %v1315 = vpop.f32.mrb[0].mxu0
  %v1316 = vadd.f32 0.0, %v1315
  %v1317 = vpop.f32.mrb[0].mxu0
  %v1318 = vpop.f32.mrb[0].mxu0
  %v1319 = vadd.f32 0.0, %v1318
  %v1320 = vpop.f32.mrb[0].mxu0
  %1321 = vdwg.mxu0
  %1326 = vrot.lane.b32.xlu0 %v1095, 96
  %v1327 = vpop.permute.xlu0 %1326
  %1328 = vrot.lane.b32.xlu0 %v1096, 96
  %v1329 = vpop.permute.xlu0 %1328
  %1330 = vrot.lane.b32.xlu0 %v1097, 96
  %v1331 = vpop.permute.xlu0 %1330
  %1332 = vrot.lane.b32.xlu0 %v1098, 96
  %v1333 = vpop.permute.xlu0 %1332
  %v1335 = vsel %vm1131, %v1079, 0
  %v1338 = vsel %vm1131, %v1080, 0
  %v1341 = vsel %vm1131, %v1081, 0
  %v1344 = vsel %vm1131, %v1082, 0
  %v1347 = vsel %vm1131, %v1327, 0
  %v1350 = vsel %vm1131, %v1329, 0
  %v1353 = vsel %vm1131, %v1331, 0
  %v1356 = vsel %vm1131, %v1333, 0
  %1358 = vmatprep.subr.bf16.mxu0 0
  %1359 = vmatpush1.bf16.xpose.msra.mxu0 %v1347
  %1360 = vmatprep.subr.bf16.mxu0 0
  %1361 = vmatpush1.bf16.xpose.msra.mxu0 %v1350
  %1362 = vmatprep.subr.bf16.mxu0 0
  %1363 = vmatpush1.bf16.xpose.msra.mxu0 %v1353
  %1364 = vmatprep.subr.bf16.mxu0 0
  %1365 = vmatpush1.bf16.xpose.msra.mxu0 %v1356
  %1366 = vmatprep.subr.bf16.mxu0 0
  %1367 = vmatpush1.bf16.xpose.msra.mxu0 0
  %1368 = vmatprep.subr.bf16.mxu0 0
  %1369 = vmatpush1.bf16.xpose.msra.mxu0 0
  %1370 = vmatprep.subr.bf16.mxu0 0
  %1371 = vmatpush1.bf16.xpose.msra.mxu0 0
  %1372 = vmatprep.subr.bf16.mxu0 0
  %1373 = vmatpush1.bf16.xpose.msra.mxu0 0
  %1374 = vmatprep.subr.bf16.mxu0 0
  %1375 = vmatpush1.bf16.xpose.msra.mxu0 0
  %1376 = vmatprep.subr.bf16.mxu0 0
  %1377 = vmatpush1.bf16.xpose.msra.mxu0 0
  %1378 = vmatprep.subr.bf16.mxu0 0
  %1379 = vmatpush1.bf16.xpose.msra.mxu0 0
  %1380 = vmatprep.subr.bf16.mxu0 0
  %1381 = vmatpush1.bf16.xpose.msra.mxu0 0
  %1382 = vmatprep.subr.bf16.mxu0 0
  %1383 = vmatpush1.bf16.xpose.msra.mxu0 0
  %1384 = vmatprep.subr.bf16.mxu0 0
  %1385 = vmatpush1.bf16.xpose.msra.mxu0 0
  %1386 = vmatprep.subr.bf16.mxu0 0
  %1387 = vmatpush1.bf16.xpose.msra.mxu0 0
  %1388 = vmatprep.subr.bf16.mxu0 0
  %1389 = vmatpush1.bf16.xpose.msra.mxu0 0
  %1390 = vmatprep.mubr.bf16.mxu0 0
  %1391 = vmatmul.mubr.bf16.gmra.mrb[0].mxu0 %v1335
  %v1392 = vpop.f32.mrb[0].mxu0
  %v1393 = vadd.f32 0.0, %v1392
  %v1394 = vpop.f32.mrb[0].mxu0
  %v1395 = vpop.f32.mrb[0].mxu0
  %v1396 = vadd.f32 0.0, %v1395
  %v1397 = vpop.f32.mrb[0].mxu0
  %1398 = vmatprep.mubr.bf16.mxu0 0
  %1399 = vmatmul.mubr.bf16.gmra.mrb[0].mxu0 %v1338
  %v1400 = vpop.f32.mrb[0].mxu0
  %v1401 = vadd.f32 0.0, %v1400
  %v1402 = vpop.f32.mrb[0].mxu0
  %v1403 = vpop.f32.mrb[0].mxu0
  %v1404 = vadd.f32 0.0, %v1403
  %v1405 = vpop.f32.mrb[0].mxu0
  %1406 = vmatprep.mubr.bf16.mxu0 0
  %1407 = vmatmul.mubr.bf16.gmra.mrb[0].mxu0 %v1341
  %v1408 = vpop.f32.mrb[0].mxu0
  %v1409 = vadd.f32 0.0, %v1408
  %v1410 = vpop.f32.mrb[0].mxu0
  %v1411 = vpop.f32.mrb[0].mxu0
  %v1412 = vadd.f32 0.0, %v1411
  %v1413 = vpop.f32.mrb[0].mxu0
  %1414 = vmatprep.mubr.bf16.mxu0 0
  %1415 = vmatmul.mubr.bf16.gmra.mrb[0].mxu0 %v1344
  %v1416 = vpop.f32.mrb[0].mxu0
  %v1417 = vadd.f32 0.0, %v1416
  %v1418 = vpop.f32.mrb[0].mxu0
  %v1419 = vpop.f32.mrb[0].mxu0
  %v1420 = vadd.f32 0.0, %v1419
  %v1421 = vpop.f32.mrb[0].mxu0
  %1422 = vdwg.mxu0
  %1427 = vrot.lane.b32.xlu0 %v1099, 96
  %v1428 = vpop.permute.xlu0 %1427
  %1429 = vrot.lane.b32.xlu0 %v1100, 96
  %v1430 = vpop.permute.xlu0 %1429
  %1431 = vrot.lane.b32.xlu0 %v1101, 96
  %v1432 = vpop.permute.xlu0 %1431
  %1433 = vrot.lane.b32.xlu0 %v1102, 96
  %v1434 = vpop.permute.xlu0 %1433
  %v1436 = vsel %vm1131, %v1083, 0
  %v1439 = vsel %vm1131, %v1084, 0
  %v1442 = vsel %vm1131, %v1085, 0
  %v1445 = vsel %vm1131, %v1086, 0
  %v1448 = vsel %vm1131, %v1428, 0
  %v1451 = vsel %vm1131, %v1430, 0
  %v1454 = vsel %vm1131, %v1432, 0
  %v1457 = vsel %vm1131, %v1434, 0
  %1459 = vmatprep.subr.bf16.mxu0 0
  %1460 = vmatpush1.bf16.xpose.msra.mxu0 %v1448
  %1461 = vmatprep.subr.bf16.mxu0 0
  %1462 = vmatpush1.bf16.xpose.msra.mxu0 %v1451
  %1463 = vmatprep.subr.bf16.mxu0 0
  %1464 = vmatpush1.bf16.xpose.msra.mxu0 %v1454
  %1465 = vmatprep.subr.bf16.mxu0 0
  %1466 = vmatpush1.bf16.xpose.msra.mxu0 %v1457
  %1467 = vmatprep.subr.bf16.mxu0 0
  %1468 = vmatpush1.bf16.xpose.msra.mxu0 0
  %1469 = vmatprep.subr.bf16.mxu0 0
  %1470 = vmatpush1.bf16.xpose.msra.mxu0 0
  %1471 = vmatprep.subr.bf16.mxu0 0
  %1472 = vmatpush1.bf16.xpose.msra.mxu0 0
  %1473 = vmatprep.subr.bf16.mxu0 0
  %1474 = vmatpush1.bf16.xpose.msra.mxu0 0
  %1475 = vmatprep.subr.bf16.mxu0 0
  %1476 = vmatpush1.bf16.xpose.msra.mxu0 0
  %1477 = vmatprep.subr.bf16.mxu0 0
  %1478 = vmatpush1.bf16.xpose.msra.mxu0 0
  %1479 = vmatprep.subr.bf16.mxu0 0
  %1480 = vmatpush1.bf16.xpose.msra.mxu0 0
  %1481 = vmatprep.subr.bf16.mxu0 0
  %1482 = vmatpush1.bf16.xpose.msra.mxu0 0
  %1483 = vmatprep.subr.bf16.mxu0 0
  %1484 = vmatpush1.bf16.xpose.msra.mxu0 0
  %1485 = vmatprep.subr.bf16.mxu0 0
  %1486 = vmatpush1.bf16.xpose.msra.mxu0 0
  %1487 = vmatprep.subr.bf16.mxu0 0
  %1488 = vmatpush1.bf16.xpose.msra.mxu0 0
  %1489 = vmatprep.subr.bf16.mxu0 0
  %1490 = vmatpush1.bf16.xpose.msra.mxu0 0
  %1491 = vmatprep.mubr.bf16.mxu0 0
  %1492 = vmatmul.mubr.bf16.gmra.mrb[0].mxu0 %v1436
  %v1493 = vpop.f32.mrb[0].mxu0
  %v1494 = vadd.f32 0.0, %v1493
  %v1495 = vpop.f32.mrb[0].mxu0
  %v1496 = vpop.f32.mrb[0].mxu0
  %v1497 = vadd.f32 0.0, %v1496
  %v1498 = vpop.f32.mrb[0].mxu0
  %1499 = vmatprep.mubr.bf16.mxu0 0
  %1500 = vmatmul.mubr.bf16.gmra.mrb[0].mxu0 %v1439
  %v1501 = vpop.f32.mrb[0].mxu0
  %v1502 = vadd.f32 0.0, %v1501
  %v1503 = vpop.f32.mrb[0].mxu0
  %v1504 = vpop.f32.mrb[0].mxu0
  %v1505 = vadd.f32 0.0, %v1504
  %v1506 = vpop.f32.mrb[0].mxu0
  %1507 = vmatprep.mubr.bf16.mxu0 0
  %1508 = vmatmul.mubr.bf16.gmra.mrb[0].mxu0 %v1442
  %v1509 = vpop.f32.mrb[0].mxu0
  %v1510 = vadd.f32 0.0, %v1509
  %v1511 = vpop.f32.mrb[0].mxu0
  %v1512 = vpop.f32.mrb[0].mxu0
  %v1513 = vadd.f32 0.0, %v1512
  %v1514 = vpop.f32.mrb[0].mxu0
  %1515 = vmatprep.mubr.bf16.mxu0 0
  %1516 = vmatmul.mubr.bf16.gmra.mrb[0].mxu0 %v1445
  %v1517 = vpop.f32.mrb[0].mxu0
  %v1518 = vadd.f32 0.0, %v1517
  %v1519 = vpop.f32.mrb[0].mxu0
  %v1520 = vpop.f32.mrb[0].mxu0
  %v1521 = vadd.f32 0.0, %v1520
  %v1522 = vpop.f32.mrb[0].mxu0
  %1523 = vdwg.mxu0
  %v1524 = vmul.f32 %v1191, 1.442695
  %v1525 = vpow.pop %v1524
  %v1526 = vmul.f32 %v1194, 1.442695
  %v1527 = vpow.pop %v1526
  %v1528 = vmul.f32 %v1199, 1.442695
  %v1529 = vpow.pop %v1528
  %v1530 = vmul.f32 %v1202, 1.442695
  %v1531 = vpow.pop %v1530
  %v1532 = vmul.f32 %v1207, 1.442695
  %v1533 = vpow.pop %v1532
  %v1534 = vmul.f32 %v1210, 1.442695
  %v1535 = vpow.pop %v1534
  %v1536 = vmul.f32 %v1215, 1.442695
  %v1537 = vpow.pop %v1536
  %v1538 = vmul.f32 %v1218, 1.442695
  %v1539 = vpow.pop %v1538
  %v1540 = vmul.f32 %v1292, 1.442695
  %v1541 = vpow.pop %v1540
  %v1542 = vmul.f32 %v1295, 1.442695
  %v1543 = vpow.pop %v1542
  %v1544 = vmul.f32 %v1300, 1.442695
  %v1545 = vpow.pop %v1544
  %v1546 = vmul.f32 %v1303, 1.442695
  %v1547 = vpow.pop %v1546
  %v1548 = vmul.f32 %v1308, 1.442695
  %v1549 = vpow.pop %v1548
  %v1550 = vmul.f32 %v1311, 1.442695
  %v1551 = vpow.pop %v1550
  %v1552 = vmul.f32 %v1316, 1.442695
  %v1553 = vpow.pop %v1552
  %v1554 = vmul.f32 %v1319, 1.442695
  %v1555 = vpow.pop %v1554
  %v1556 = vmul.f32 %v1393, 1.442695
  %v1557 = vpow.pop %v1556
  %v1558 = vmul.f32 %v1396, 1.442695
  %v1559 = vpow.pop %v1558
  %v1560 = vmul.f32 %v1401, 1.442695
  %v1561 = vpow.pop %v1560
  %v1562 = vmul.f32 %v1404, 1.442695
  %v1563 = vpow.pop %v1562
  %v1564 = vmul.f32 %v1409, 1.442695
  %v1565 = vpow.pop %v1564
  %v1566 = vmul.f32 %v1412, 1.442695
  %v1567 = vpow.pop %v1566
  %v1568 = vmul.f32 %v1417, 1.442695
  %v1569 = vpow.pop %v1568
  %v1570 = vmul.f32 %v1420, 1.442695
  %v1571 = vpow.pop %v1570
  %v1572 = vmul.f32 %v1494, 1.442695
  %v1573 = vpow.pop %v1572
  %v1574 = vmul.f32 %v1497, 1.442695
  %v1575 = vpow.pop %v1574
  %v1576 = vmul.f32 %v1502, 1.442695
  %v1577 = vpow.pop %v1576
  %v1578 = vmul.f32 %v1505, 1.442695
  %v1579 = vpow.pop %v1578
  %v1580 = vmul.f32 %v1510, 1.442695
  %v1581 = vpow.pop %v1580
  %v1582 = vmul.f32 %v1513, 1.442695
  %v1583 = vpow.pop %v1582
  %v1584 = vmul.f32 %v1518, 1.442695
  %v1585 = vpow.pop %v1584
  %v1586 = vmul.f32 %v1521, 1.442695
  %v1587 = vpow.pop %v1586
  %v1588 = vsel %vm589, %v1525, 0.0
  %1589 = vadd.xlane.f32.xlu0 %v1588
  %v1590 = vpop.xlane.xlu0 %1589
  %v1591 = vsel %vm589, %v1527, 0.0
  %1592 = vadd.xlane.f32.xlu0 %v1591
  %v1593 = vpop.xlane.xlu0 %1592
  %v1594 = vsel %vm589, %v1529, 0.0
  %1595 = vadd.xlane.f32.xlu0 %v1594
  %v1596 = vpop.xlane.xlu0 %1595
  %v1597 = vsel %vm589, %v1531, 0.0
  %1598 = vadd.xlane.f32.xlu0 %v1597
  %v1599 = vpop.xlane.xlu0 %1598
  %v1600 = vsel %vm589, %v1533, 0.0
  %1601 = vadd.xlane.f32.xlu0 %v1600
  %v1602 = vpop.xlane.xlu0 %1601
  %v1603 = vsel %vm589, %v1535, 0.0
  %1604 = vadd.xlane.f32.xlu0 %v1603
  %v1605 = vpop.xlane.xlu0 %1604
  %v1606 = vsel %vm589, %v1537, 0.0
  %1607 = vadd.xlane.f32.xlu0 %v1606
  %v1608 = vpop.xlane.xlu0 %1607
  %v1609 = vsel %vm589, %v1539, 0.0
  %1610 = vadd.xlane.f32.xlu0 %v1609
  %v1611 = vpop.xlane.xlu0 %1610
  %v1612 = vsel %vm589, %v1541, 0.0
  %1613 = vadd.xlane.f32.xlu0 %v1612
  %v1614 = vpop.xlane.xlu0 %1613
  %v1615 = vsel %vm589, %v1543, 0.0
  %1616 = vadd.xlane.f32.xlu0 %v1615
  %v1617 = vpop.xlane.xlu0 %1616
  %v1618 = vsel %vm589, %v1545, 0.0
  %1619 = vadd.xlane.f32.xlu0 %v1618
  %v1620 = vpop.xlane.xlu0 %1619
  %v1621 = vsel %vm589, %v1547, 0.0
  %1622 = vadd.xlane.f32.xlu0 %v1621
  %v1623 = vpop.xlane.xlu0 %1622
  %v1624 = vsel %vm589, %v1549, 0.0
  %1625 = vadd.xlane.f32.xlu0 %v1624
  %v1626 = vpop.xlane.xlu0 %1625
  %v1627 = vsel %vm589, %v1551, 0.0
  %1628 = vadd.xlane.f32.xlu0 %v1627
  %v1629 = vpop.xlane.xlu0 %1628
  %v1630 = vsel %vm589, %v1553, 0.0
  %1631 = vadd.xlane.f32.xlu0 %v1630
  %v1632 = vpop.xlane.xlu0 %1631
  %v1633 = vsel %vm589, %v1555, 0.0
  %1634 = vadd.xlane.f32.xlu0 %v1633
  %v1635 = vpop.xlane.xlu0 %1634
  %v1636 = vsel %vm589, %v1557, 0.0
  %1637 = vadd.xlane.f32.xlu0 %v1636
  %v1638 = vpop.xlane.xlu0 %1637
  %v1639 = vsel %vm589, %v1559, 0.0
  %1640 = vadd.xlane.f32.xlu0 %v1639
  %v1641 = vpop.xlane.xlu0 %1640
  %v1642 = vsel %vm589, %v1561, 0.0
  %1643 = vadd.xlane.f32.xlu0 %v1642
  %v1644 = vpop.xlane.xlu0 %1643
  %v1645 = vsel %vm589, %v1563, 0.0
  %1646 = vadd.xlane.f32.xlu0 %v1645
  %v1647 = vpop.xlane.xlu0 %1646
  %v1648 = vsel %vm589, %v1565, 0.0
  %1649 = vadd.xlane.f32.xlu0 %v1648
  %v1650 = vpop.xlane.xlu0 %1649
  %v1651 = vsel %vm589, %v1567, 0.0
  %1652 = vadd.xlane.f32.xlu0 %v1651
  %v1653 = vpop.xlane.xlu0 %1652
  %v1654 = vsel %vm589, %v1569, 0.0
  %1655 = vadd.xlane.f32.xlu0 %v1654
  %v1656 = vpop.xlane.xlu0 %1655
  %v1657 = vsel %vm589, %v1571, 0.0
  %1658 = vadd.xlane.f32.xlu0 %v1657
  %v1659 = vpop.xlane.xlu0 %1658
  %v1660 = vsel %vm589, %v1573, 0.0
  %1661 = vadd.xlane.f32.xlu0 %v1660
  %v1662 = vpop.xlane.xlu0 %1661
  %v1663 = vsel %vm589, %v1575, 0.0
  %1664 = vadd.xlane.f32.xlu0 %v1663
  %v1665 = vpop.xlane.xlu0 %1664
  %v1666 = vsel %vm589, %v1577, 0.0
  %1667 = vadd.xlane.f32.xlu0 %v1666
  %v1668 = vpop.xlane.xlu0 %1667
  %v1669 = vsel %vm589, %v1579, 0.0
  %1670 = vadd.xlane.f32.xlu0 %v1669
  %v1671 = vpop.xlane.xlu0 %1670
  %v1672 = vsel %vm589, %v1581, 0.0
  %1673 = vadd.xlane.f32.xlu0 %v1672
  %v1674 = vpop.xlane.xlu0 %1673
  %v1675 = vsel %vm589, %v1583, 0.0
  %1676 = vadd.xlane.f32.xlu0 %v1675
  %v1677 = vpop.xlane.xlu0 %1676
  %v1678 = vsel %vm589, %v1585, 0.0
  %1679 = vadd.xlane.f32.xlu0 %v1678
  %v1680 = vpop.xlane.xlu0 %1679
  %v1681 = vsel %vm589, %v1587, 0.0
  %1682 = vadd.xlane.f32.xlu0 %v1681
  %v1683 = vpop.xlane.xlu0 %1682
  %v1684 = vrcp.pop %v1590
  %v1685 = vrcp.pop %v1593
  %v1686 = vrcp.pop %v1596
  %v1687 = vrcp.pop %v1599
  %v1688 = vrcp.pop %v1602
  %v1689 = vrcp.pop %v1605
  %v1690 = vrcp.pop %v1608
  %v1691 = vrcp.pop %v1611
  %v1692 = vrcp.pop %v1614
  %v1693 = vrcp.pop %v1617
  %v1694 = vrcp.pop %v1620
  %v1695 = vrcp.pop %v1623
  %v1696 = vrcp.pop %v1626
  %v1697 = vrcp.pop %v1629
  %v1698 = vrcp.pop %v1632
  %v1699 = vrcp.pop %v1635
  %v1700 = vrcp.pop %v1638
  %v1701 = vrcp.pop %v1641
  %v1702 = vrcp.pop %v1644
  %v1703 = vrcp.pop %v1647
  %v1704 = vrcp.pop %v1650
  %v1705 = vrcp.pop %v1653
  %v1706 = vrcp.pop %v1656
  %v1707 = vrcp.pop %v1659
  %v1708 = vrcp.pop %v1662
  %v1709 = vrcp.pop %v1665
  %v1710 = vrcp.pop %v1668
  %v1711 = vrcp.pop %v1671
  %v1712 = vrcp.pop %v1674
  %v1713 = vrcp.pop %v1677
  %v1714 = vrcp.pop %v1680
  %v1715 = vrcp.pop %v1683
  %v1716 = vmul.f32 %v1525, %v1684
  %v1717 = vmul.f32 %v1527, %v1685
  %v1718 = vmul.f32 %v1529, %v1686
  %v1719 = vmul.f32 %v1531, %v1687
  %v1720 = vmul.f32 %v1533, %v1688
  %v1721 = vmul.f32 %v1535, %v1689
  %v1722 = vmul.f32 %v1537, %v1690
  %v1723 = vmul.f32 %v1539, %v1691
  %v1724 = vmul.f32 %v1541, %v1692
  %v1725 = vmul.f32 %v1543, %v1693
  %v1726 = vmul.f32 %v1545, %v1694
  %v1727 = vmul.f32 %v1547, %v1695
  %v1728 = vmul.f32 %v1549, %v1696
  %v1729 = vmul.f32 %v1551, %v1697
  %v1730 = vmul.f32 %v1553, %v1698
  %v1731 = vmul.f32 %v1555, %v1699
  %v1732 = vmul.f32 %v1557, %v1700
  %v1733 = vmul.f32 %v1559, %v1701
  %v1734 = vmul.f32 %v1561, %v1702
  %v1735 = vmul.f32 %v1563, %v1703
  %v1736 = vmul.f32 %v1565, %v1704
  %v1737 = vmul.f32 %v1567, %v1705
  %v1738 = vmul.f32 %v1569, %v1706
  %v1739 = vmul.f32 %v1571, %v1707
  %v1740 = vmul.f32 %v1573, %v1708
  %v1741 = vmul.f32 %v1575, %v1709
  %v1742 = vmul.f32 %v1577, %v1710
  %v1743 = vmul.f32 %v1579, %v1711
  %v1744 = vmul.f32 %v1581, %v1712
  %v1745 = vmul.f32 %v1583, %v1713
  %v1746 = vmul.f32 %v1585, %v1714
  %v1747 = vmul.f32 %v1587, %v1715
  %v1748 = vpack.c.bf16 %v1717, %v1716
  %v1749 = vpack.c.bf16 %v1719, %v1718
  %v1750 = vpack.c.bf16 %v1721, %v1720
  %v1751 = vpack.c.bf16 %v1723, %v1722
  %v1752 = vpack.c.bf16 %v1725, %v1724
  %v1753 = vpack.c.bf16 %v1727, %v1726
  %v1754 = vpack.c.bf16 %v1729, %v1728
  %v1755 = vpack.c.bf16 %v1731, %v1730
  %v1756 = vpack.c.bf16 %v1733, %v1732
  %v1757 = vpack.c.bf16 %v1735, %v1734
  %v1758 = vpack.c.bf16 %v1737, %v1736
  %v1759 = vpack.c.bf16 %v1739, %v1738
  %v1760 = vpack.c.bf16 %v1741, %v1740
  %v1761 = vpack.c.bf16 %v1743, %v1742
  %v1762 = vpack.c.bf16 %v1745, %v1744
  %v1763 = vpack.c.bf16 %v1747, %v1746
  %1768 = vrot.lane.b32.xlu0 %v1103, 64
  %v1769 = vpop.permute.xlu0 %1768
  %1770 = vrot.lane.b32.xlu0 %v1104, 64
  %v1771 = vpop.permute.xlu0 %1770
  %1772 = vrot.lane.b32.xlu0 %v1105, 64
  %v1773 = vpop.permute.xlu0 %1772
  %1774 = vrot.lane.b32.xlu0 %v1106, 64
  %v1775 = vpop.permute.xlu0 %1774
  %v1781 = vsel %vm589, %v1748, 0
  %v1784 = vsel %vm589, %v1749, 0
  %v1787 = vsel %vm589, %v1750, 0
  %v1790 = vsel %vm589, %v1751, 0
  %1792 = vmatprep.subr.bf16.mxu0 0
  %1793 = vmatpush1.bf16.msra.mxu0 %v1769
  %1794 = vmatprep.subr.bf16.mxu0 0
  %1795 = vmatpush1.bf16.msra.mxu0 %v1771
  %1796 = vmatprep.subr.bf16.mxu0 0
  %1797 = vmatpush1.bf16.msra.mxu0 %v1773
  %1798 = vmatprep.subr.bf16.mxu0 0
  %1799 = vmatpush1.bf16.msra.mxu0 %v1775
  %1800 = vmatprep.subr.bf16.mxu0 0
  %1801 = vmatpush1.bf16.msra.mxu0 0
  %1802 = vmatprep.subr.bf16.mxu0 0
  %1803 = vmatpush1.bf16.msra.mxu0 0
  %1804 = vmatprep.subr.bf16.mxu0 0
  %1805 = vmatpush1.bf16.msra.mxu0 0
  %1806 = vmatprep.subr.bf16.mxu0 0
  %1807 = vmatpush1.bf16.msra.mxu0 0
  %1808 = vmatprep.subr.bf16.mxu0 0
  %1809 = vmatpush1.bf16.msra.mxu0 0
  %1810 = vmatprep.subr.bf16.mxu0 0
  %1811 = vmatpush1.bf16.msra.mxu0 0
  %1812 = vmatprep.subr.bf16.mxu0 0
  %1813 = vmatpush1.bf16.msra.mxu0 0
  %1814 = vmatprep.subr.bf16.mxu0 0
  %1815 = vmatpush1.bf16.msra.mxu0 0
  %1816 = vmatprep.subr.bf16.mxu0 0
  %1817 = vmatpush1.bf16.msra.mxu0 0
  %1818 = vmatprep.subr.bf16.mxu0 0
  %1819 = vmatpush1.bf16.msra.mxu0 0
  %1820 = vmatprep.subr.bf16.mxu0 0
  %1821 = vmatpush1.bf16.msra.mxu0 0
  %1822 = vmatprep.subr.bf16.mxu0 0
  %1823 = vmatpush1.bf16.msra.mxu0 0
  %1824 = vmatprep.mubr.bf16.mxu0 0
  %1825 = vmatmul.mubr.bf16.gmra.mrb[0].mxu0 %v1781
  %v1826 = vpop.f32.mrb[0].mxu0
  %v1827 = vadd.f32 0.0, %v1826
  %v1828 = vpop.f32.mrb[0].mxu0
  %v1829 = vpop.f32.mrb[0].mxu0
  %v1830 = vadd.f32 0.0, %v1829
  %v1831 = vpop.f32.mrb[0].mxu0
  %1832 = vmatprep.mubr.bf16.mxu0 0
  %1833 = vmatmul.mubr.bf16.gmra.mrb[0].mxu0 %v1784
  %v1834 = vpop.f32.mrb[0].mxu0
  %v1835 = vadd.f32 0.0, %v1834
  %v1836 = vpop.f32.mrb[0].mxu0
  %v1837 = vpop.f32.mrb[0].mxu0
  %v1838 = vadd.f32 0.0, %v1837
  %v1839 = vpop.f32.mrb[0].mxu0
  %1840 = vmatprep.mubr.bf16.mxu0 0
  %1841 = vmatmul.mubr.bf16.gmra.mrb[0].mxu0 %v1787
  %v1842 = vpop.f32.mrb[0].mxu0
  %v1843 = vadd.f32 0.0, %v1842
  %v1844 = vpop.f32.mrb[0].mxu0
  %v1845 = vpop.f32.mrb[0].mxu0
  %v1846 = vadd.f32 0.0, %v1845
  %v1847 = vpop.f32.mrb[0].mxu0
  %1848 = vmatprep.mubr.bf16.mxu0 0
  %1849 = vmatmul.mubr.bf16.gmra.mrb[0].mxu0 %v1790
  %v1850 = vpop.f32.mrb[0].mxu0
  %v1851 = vadd.f32 0.0, %v1850
  %v1852 = vpop.f32.mrb[0].mxu0
  %v1853 = vpop.f32.mrb[0].mxu0
  %v1854 = vadd.f32 0.0, %v1853
  %v1855 = vpop.f32.mrb[0].mxu0
  %1856 = vdwg.mxu0
  %1861 = vrot.lane.b32.xlu0 %v1107, 64
  %v1862 = vpop.permute.xlu0 %1861
  %1863 = vrot.lane.b32.xlu0 %v1108, 64
  %v1864 = vpop.permute.xlu0 %1863
  %1865 = vrot.lane.b32.xlu0 %v1109, 64
  %v1866 = vpop.permute.xlu0 %1865
  %1867 = vrot.lane.b32.xlu0 %v1110, 64
  %v1868 = vpop.permute.xlu0 %1867
  %v1874 = vsel %vm589, %v1752, 0
  %v1877 = vsel %vm589, %v1753, 0
  %v1880 = vsel %vm589, %v1754, 0
  %v1883 = vsel %vm589, %v1755, 0
  %1885 = vmatprep.subr.bf16.mxu0 0
  %1886 = vmatpush1.bf16.msra.mxu0 %v1862
  %1887 = vmatprep.subr.bf16.mxu0 0
  %1888 = vmatpush1.bf16.msra.mxu0 %v1864
  %1889 = vmatprep.subr.bf16.mxu0 0
  %1890 = vmatpush1.bf16.msra.mxu0 %v1866
  %1891 = vmatprep.subr.bf16.mxu0 0
  %1892 = vmatpush1.bf16.msra.mxu0 %v1868
  %1893 = vmatprep.subr.bf16.mxu0 0
  %1894 = vmatpush1.bf16.msra.mxu0 0
  %1895 = vmatprep.subr.bf16.mxu0 0
  %1896 = vmatpush1.bf16.msra.mxu0 0
  %1897 = vmatprep.subr.bf16.mxu0 0
  %1898 = vmatpush1.bf16.msra.mxu0 0
  %1899 = vmatprep.subr.bf16.mxu0 0
  %1900 = vmatpush1.bf16.msra.mxu0 0
  %1901 = vmatprep.subr.bf16.mxu0 0
  %1902 = vmatpush1.bf16.msra.mxu0 0
  %1903 = vmatprep.subr.bf16.mxu0 0
  %1904 = vmatpush1.bf16.msra.mxu0 0
  %1905 = vmatprep.subr.bf16.mxu0 0
  %1906 = vmatpush1.bf16.msra.mxu0 0
  %1907 = vmatprep.subr.bf16.mxu0 0
  %1908 = vmatpush1.bf16.msra.mxu0 0
  %1909 = vmatprep.subr.bf16.mxu0 0
  %1910 = vmatpush1.bf16.msra.mxu0 0
  %1911 = vmatprep.subr.bf16.mxu0 0
  %1912 = vmatpush1.bf16.msra.mxu0 0
  %1913 = vmatprep.subr.bf16.mxu0 0
  %1914 = vmatpush1.bf16.msra.mxu0 0
  %1915 = vmatprep.subr.bf16.mxu0 0
  %1916 = vmatpush1.bf16.msra.mxu0 0
  %1917 = vmatprep.mubr.bf16.mxu0 0
  %1918 = vmatmul.mubr.bf16.gmra.mrb[0].mxu0 %v1874
  %v1919 = vpop.f32.mrb[0].mxu0
  %v1920 = vadd.f32 0.0, %v1919
  %v1921 = vpop.f32.mrb[0].mxu0
  %v1922 = vpop.f32.mrb[0].mxu0
  %v1923 = vadd.f32 0.0, %v1922
  %v1924 = vpop.f32.mrb[0].mxu0
  %1925 = vmatprep.mubr.bf16.mxu0 0
  %1926 = vmatmul.mubr.bf16.gmra.mrb[0].mxu0 %v1877
  %v1927 = vpop.f32.mrb[0].mxu0
  %v1928 = vadd.f32 0.0, %v1927
  %v1929 = vpop.f32.mrb[0].mxu0
  %v1930 = vpop.f32.mrb[0].mxu0
  %v1931 = vadd.f32 0.0, %v1930
  %v1932 = vpop.f32.mrb[0].mxu0
  %1933 = vmatprep.mubr.bf16.mxu0 0
  %1934 = vmatmul.mubr.bf16.gmra.mrb[0].mxu0 %v1880
  %v1935 = vpop.f32.mrb[0].mxu0
  %v1936 = vadd.f32 0.0, %v1935
  %v1937 = vpop.f32.mrb[0].mxu0
  %v1938 = vpop.f32.mrb[0].mxu0
  %v1939 = vadd.f32 0.0, %v1938
  %v1940 = vpop.f32.mrb[0].mxu0
  %1941 = vmatprep.mubr.bf16.mxu0 0
  %1942 = vmatmul.mubr.bf16.gmra.mrb[0].mxu0 %v1883
  %v1943 = vpop.f32.mrb[0].mxu0
  %v1944 = vadd.f32 0.0, %v1943
  %v1945 = vpop.f32.mrb[0].mxu0
  %v1946 = vpop.f32.mrb[0].mxu0
  %v1947 = vadd.f32 0.0, %v1946
  %v1948 = vpop.f32.mrb[0].mxu0
  %1949 = vdwg.mxu0
  %1954 = vrot.lane.b32.xlu0 %v1111, 64
  %v1955 = vpop.permute.xlu0 %1954
  %1956 = vrot.lane.b32.xlu0 %v1112, 64
  %v1957 = vpop.permute.xlu0 %1956
  %1958 = vrot.lane.b32.xlu0 %v1113, 64
  %v1959 = vpop.permute.xlu0 %1958
  %1960 = vrot.lane.b32.xlu0 %v1114, 64
  %v1961 = vpop.permute.xlu0 %1960
  %v1967 = vsel %vm589, %v1756, 0
  %v1970 = vsel %vm589, %v1757, 0
  %v1973 = vsel %vm589, %v1758, 0
  %v1976 = vsel %vm589, %v1759, 0
  %1978 = vmatprep.subr.bf16.mxu0 0
  %1979 = vmatpush1.bf16.msra.mxu0 %v1955
  %1980 = vmatprep.subr.bf16.mxu0 0
  %1981 = vmatpush1.bf16.msra.mxu0 %v1957
  %1982 = vmatprep.subr.bf16.mxu0 0
  %1983 = vmatpush1.bf16.msra.mxu0 %v1959
  %1984 = vmatprep.subr.bf16.mxu0 0
  %1985 = vmatpush1.bf16.msra.mxu0 %v1961
  %1986 = vmatprep.subr.bf16.mxu0 0
  %1987 = vmatpush1.bf16.msra.mxu0 0
  %1988 = vmatprep.subr.bf16.mxu0 0
  %1989 = vmatpush1.bf16.msra.mxu0 0
  %1990 = vmatprep.subr.bf16.mxu0 0
  %1991 = vmatpush1.bf16.msra.mxu0 0
  %1992 = vmatprep.subr.bf16.mxu0 0
  %1993 = vmatpush1.bf16.msra.mxu0 0
  %1994 = vmatprep.subr.bf16.mxu0 0
  %1995 = vmatpush1.bf16.msra.mxu0 0
  %1996 = vmatprep.subr.bf16.mxu0 0
  %1997 = vmatpush1.bf16.msra.mxu0 0
  %1998 = vmatprep.subr.bf16.mxu0 0
  %1999 = vmatpush1.bf16.msra.mxu0 0
  %2000 = vmatprep.subr.bf16.mxu0 0
  %2001 = vmatpush1.bf16.msra.mxu0 0
  %2002 = vmatprep.subr.bf16.mxu0 0
  %2003 = vmatpush1.bf16.msra.mxu0 0
  %2004 = vmatprep.subr.bf16.mxu0 0
  %2005 = vmatpush1.bf16.msra.mxu0 0
  %2006 = vmatprep.subr.bf16.mxu0 0
  %2007 = vmatpush1.bf16.msra.mxu0 0
  %2008 = vmatprep.subr.bf16.mxu0 0
  %2009 = vmatpush1.bf16.msra.mxu0 0
  %2010 = vmatprep.mubr.bf16.mxu0 0
  %2011 = vmatmul.mubr.bf16.gmra.mrb[0].mxu0 %v1967
  %v2012 = vpop.f32.mrb[0].mxu0
  %v2013 = vadd.f32 0.0, %v2012
  %v2014 = vpop.f32.mrb[0].mxu0
  %v2015 = vpop.f32.mrb[0].mxu0
  %v2016 = vadd.f32 0.0, %v2015
  %v2017 = vpop.f32.mrb[0].mxu0
  %2018 = vmatprep.mubr.bf16.mxu0 0
  %2019 = vmatmul.mubr.bf16.gmra.mrb[0].mxu0 %v1970
  %v2020 = vpop.f32.mrb[0].mxu0
  %v2021 = vadd.f32 0.0, %v2020
  %v2022 = vpop.f32.mrb[0].mxu0
  %v2023 = vpop.f32.mrb[0].mxu0
  %v2024 = vadd.f32 0.0, %v2023
  %v2025 = vpop.f32.mrb[0].mxu0
  %2026 = vmatprep.mubr.bf16.mxu0 0
  %2027 = vmatmul.mubr.bf16.gmra.mrb[0].mxu0 %v1973
  %v2028 = vpop.f32.mrb[0].mxu0
  %v2029 = vadd.f32 0.0, %v2028
  %v2030 = vpop.f32.mrb[0].mxu0
  %v2031 = vpop.f32.mrb[0].mxu0
  %v2032 = vadd.f32 0.0, %v2031
  %v2033 = vpop.f32.mrb[0].mxu0
  %2034 = vmatprep.mubr.bf16.mxu0 0
  %2035 = vmatmul.mubr.bf16.gmra.mrb[0].mxu0 %v1976
  %v2036 = vpop.f32.mrb[0].mxu0
  %v2037 = vadd.f32 0.0, %v2036
  %v2038 = vpop.f32.mrb[0].mxu0
  %v2039 = vpop.f32.mrb[0].mxu0
  %v2040 = vadd.f32 0.0, %v2039
  %v2041 = vpop.f32.mrb[0].mxu0
  %2042 = vdwg.mxu0
  %2047 = vrot.lane.b32.xlu0 %v1115, 64
  %v2048 = vpop.permute.xlu0 %2047
  %2049 = vrot.lane.b32.xlu0 %v1116, 64
  %v2050 = vpop.permute.xlu0 %2049
  %2051 = vrot.lane.b32.xlu0 %v1117, 64
  %v2052 = vpop.permute.xlu0 %2051
  %2053 = vrot.lane.b32.xlu0 %v1118, 64
  %v2054 = vpop.permute.xlu0 %2053
  %v2060 = vsel %vm589, %v1760, 0
  %v2063 = vsel %vm589, %v1761, 0
  %v2066 = vsel %vm589, %v1762, 0
  %v2069 = vsel %vm589, %v1763, 0
  %2071 = vmatprep.subr.bf16.mxu0 0
  %2072 = vmatpush1.bf16.msra.mxu0 %v2048
  %2073 = vmatprep.subr.bf16.mxu0 0
  %2074 = vmatpush1.bf16.msra.mxu0 %v2050
  %2075 = vmatprep.subr.bf16.mxu0 0
  %2076 = vmatpush1.bf16.msra.mxu0 %v2052
  %2077 = vmatprep.subr.bf16.mxu0 0
  %2078 = vmatpush1.bf16.msra.mxu0 %v2054
  %2079 = vmatprep.subr.bf16.mxu0 0
  %2080 = vmatpush1.bf16.msra.mxu0 0
  %2081 = vmatprep.subr.bf16.mxu0 0
  %2082 = vmatpush1.bf16.msra.mxu0 0
  %2083 = vmatprep.subr.bf16.mxu0 0
  %2084 = vmatpush1.bf16.msra.mxu0 0
  %2085 = vmatprep.subr.bf16.mxu0 0
  %2086 = vmatpush1.bf16.msra.mxu0 0
  %2087 = vmatprep.subr.bf16.mxu0 0
  %2088 = vmatpush1.bf16.msra.mxu0 0
  %2089 = vmatprep.subr.bf16.mxu0 0
  %2090 = vmatpush1.bf16.msra.mxu0 0
  %2091 = vmatprep.subr.bf16.mxu0 0
  %2092 = vmatpush1.bf16.msra.mxu0 0
  %2093 = vmatprep.subr.bf16.mxu0 0
  %2094 = vmatpush1.bf16.msra.mxu0 0
  %2095 = vmatprep.subr.bf16.mxu0 0
  %2096 = vmatpush1.bf16.msra.mxu0 0
  %2097 = vmatprep.subr.bf16.mxu0 0
  %2098 = vmatpush1.bf16.msra.mxu0 0
  %2099 = vmatprep.subr.bf16.mxu0 0
  %2100 = vmatpush1.bf16.msra.mxu0 0
  %2101 = vmatprep.subr.bf16.mxu0 0
  %2102 = vmatpush1.bf16.msra.mxu0 0
  %2103 = vmatprep.mubr.bf16.mxu0 0
  %2104 = vmatmul.mubr.bf16.gmra.mrb[0].mxu0 %v2060
  %v2105 = vpop.f32.mrb[0].mxu0
  %v2106 = vadd.f32 0.0, %v2105
  %v2107 = vpop.f32.mrb[0].mxu0
  %v2108 = vpop.f32.mrb[0].mxu0
  %v2109 = vadd.f32 0.0, %v2108
  %v2110 = vpop.f32.mrb[0].mxu0
  %2111 = vmatprep.mubr.bf16.mxu0 0
  %2112 = vmatmul.mubr.bf16.gmra.mrb[0].mxu0 %v2063
  %v2113 = vpop.f32.mrb[0].mxu0
  %v2114 = vadd.f32 0.0, %v2113
  %v2115 = vpop.f32.mrb[0].mxu0
  %v2116 = vpop.f32.mrb[0].mxu0
  %v2117 = vadd.f32 0.0, %v2116
  %v2118 = vpop.f32.mrb[0].mxu0
  %2119 = vmatprep.mubr.bf16.mxu0 0
  %2120 = vmatmul.mubr.bf16.gmra.mrb[0].mxu0 %v2066
  %v2121 = vpop.f32.mrb[0].mxu0
  %v2122 = vadd.f32 0.0, %v2121
  %v2123 = vpop.f32.mrb[0].mxu0
  %v2124 = vpop.f32.mrb[0].mxu0
  %v2125 = vadd.f32 0.0, %v2124
  %v2126 = vpop.f32.mrb[0].mxu0
  %2127 = vmatprep.mubr.bf16.mxu0 0
  %2128 = vmatmul.mubr.bf16.gmra.mrb[0].mxu0 %v2069
  %v2129 = vpop.f32.mrb[0].mxu0
  %v2130 = vadd.f32 0.0, %v2129
  %v2131 = vpop.f32.mrb[0].mxu0
  %v2132 = vpop.f32.mrb[0].mxu0
  %v2133 = vadd.f32 0.0, %v2132
  %v2134 = vpop.f32.mrb[0].mxu0
  %2135 = vdwg.mxu0
  %2140 = vrot.lane.b32.xlu0 %v1071, 120
  %v2141 = vpop.permute.xlu0 %2140
  %2142 = vrot.lane.b32.xlu0 %v1072, 120
  %v2143 = vpop.permute.xlu0 %2142
  %2144 = vrot.lane.b32.xlu0 %v1073, 120
  %v2145 = vpop.permute.xlu0 %2144
  %2146 = vrot.lane.b32.xlu0 %v1074, 120
  %v2147 = vpop.permute.xlu0 %2146
  %2148 = vrot.lane.b32.xlu0 %v1087, 88
  %v2149 = vpop.permute.xlu0 %2148
  %2150 = vrot.lane.b32.xlu0 %v1088, 88
  %v2151 = vpop.permute.xlu0 %2150
  %2152 = vrot.lane.b32.xlu0 %v1089, 88
  %v2153 = vpop.permute.xlu0 %2152
  %2154 = vrot.lane.b32.xlu0 %v1090, 88
  %v2155 = vpop.permute.xlu0 %2154
  %v2157 = vsel %vm1131, %v2141, 0
  %v2160 = vsel %vm1131, %v2143, 0
  %v2163 = vsel %vm1131, %v2145, 0
  %v2166 = vsel %vm1131, %v2147, 0
  %v2169 = vsel %vm1131, %v2149, 0
  %v2172 = vsel %vm1131, %v2151, 0
  %v2175 = vsel %vm1131, %v2153, 0
  %v2178 = vsel %vm1131, %v2155, 0
  %2180 = vmatprep.subr.bf16.mxu0 0
  %2181 = vmatpush1.bf16.xpose.msra.mxu0 %v2169
  %2182 = vmatprep.subr.bf16.mxu0 0
  %2183 = vmatpush1.bf16.xpose.msra.mxu0 %v2172
  %2184 = vmatprep.subr.bf16.mxu0 0
  %2185 = vmatpush1.bf16.xpose.msra.mxu0 %v2175
  %2186 = vmatprep.subr.bf16.mxu0 0
  %2187 = vmatpush1.bf16.xpose.msra.mxu0 %v2178
  %2188 = vmatprep.subr.bf16.mxu0 0
  %2189 = vmatpush1.bf16.xpose.msra.mxu0 0
  %2190 = vmatprep.subr.bf16.mxu0 0
  %2191 = vmatpush1.bf16.xpose.msra.mxu0 0
  %2192 = vmatprep.subr.bf16.mxu0 0
  %2193 = vmatpush1.bf16.xpose.msra.mxu0 0
  %2194 = vmatprep.subr.bf16.mxu0 0
  %2195 = vmatpush1.bf16.xpose.msra.mxu0 0
  %2196 = vmatprep.subr.bf16.mxu0 0
  %2197 = vmatpush1.bf16.xpose.msra.mxu0 0
  %2198 = vmatprep.subr.bf16.mxu0 0
  %2199 = vmatpush1.bf16.xpose.msra.mxu0 0
  %2200 = vmatprep.subr.bf16.mxu0 0
  %2201 = vmatpush1.bf16.xpose.msra.mxu0 0
  %2202 = vmatprep.subr.bf16.mxu0 0
  %2203 = vmatpush1.bf16.xpose.msra.mxu0 0
  %2204 = vmatprep.subr.bf16.mxu0 0
  %2205 = vmatpush1.bf16.xpose.msra.mxu0 0
  %2206 = vmatprep.subr.bf16.mxu0 0
  %2207 = vmatpush1.bf16.xpose.msra.mxu0 0
  %2208 = vmatprep.subr.bf16.mxu0 0
  %2209 = vmatpush1.bf16.xpose.msra.mxu0 0
  %2210 = vmatprep.subr.bf16.mxu0 0
  %2211 = vmatpush1.bf16.xpose.msra.mxu0 0
  %2212 = vmatprep.mubr.bf16.mxu0 0
  %2213 = vmatmul.mubr.bf16.gmra.mrb[0].mxu0 %v2157
  %v2214 = vpop.f32.mrb[0].mxu0
  %v2215 = vadd.f32 0.0, %v2214
  %v2216 = vpop.f32.mrb[0].mxu0
  %v2217 = vpop.f32.mrb[0].mxu0
  %v2218 = vadd.f32 0.0, %v2217
  %v2219 = vpop.f32.mrb[0].mxu0
  %2220 = vmatprep.mubr.bf16.mxu0 0
  %2221 = vmatmul.mubr.bf16.gmra.mrb[0].mxu0 %v2160
  %v2222 = vpop.f32.mrb[0].mxu0
  %v2223 = vadd.f32 0.0, %v2222
  %v2224 = vpop.f32.mrb[0].mxu0
  %v2225 = vpop.f32.mrb[0].mxu0
  %v2226 = vadd.f32 0.0, %v2225
  %v2227 = vpop.f32.mrb[0].mxu0
  %2228 = vmatprep.mubr.bf16.mxu0 0
  %2229 = vmatmul.mubr.bf16.gmra.mrb[0].mxu0 %v2163
  %v2230 = vpop.f32.mrb[0].mxu0
  %v2231 = vadd.f32 0.0, %v2230
  %v2232 = vpop.f32.mrb[0].mxu0
  %v2233 = vpop.f32.mrb[0].mxu0
  %v2234 = vadd.f32 0.0, %v2233
  %v2235 = vpop.f32.mrb[0].mxu0
  %2236 = vmatprep.mubr.bf16.mxu0 0
  %2237 = vmatmul.mubr.bf16.gmra.mrb[0].mxu0 %v2166
  %v2238 = vpop.f32.mrb[0].mxu0
  %v2239 = vadd.f32 0.0, %v2238
  %v2240 = vpop.f32.mrb[0].mxu0
  %v2241 = vpop.f32.mrb[0].mxu0
  %v2242 = vadd.f32 0.0, %v2241
  %v2243 = vpop.f32.mrb[0].mxu0
  %2244 = vdwg.mxu0
  %2249 = vrot.lane.b32.xlu0 %v1075, 120
  %v2250 = vpop.permute.xlu0 %2249
  %2251 = vrot.lane.b32.xlu0 %v1076, 120
  %v2252 = vpop.permute.xlu0 %2251
  %2253 = vrot.lane.b32.xlu0 %v1077, 120
  %v2254 = vpop.permute.xlu0 %2253
  %2255 = vrot.lane.b32.xlu0 %v1078, 120
  %v2256 = vpop.permute.xlu0 %2255
  %2257 = vrot.lane.b32.xlu0 %v1091, 88
  %v2258 = vpop.permute.xlu0 %2257
  %2259 = vrot.lane.b32.xlu0 %v1092, 88
  %v2260 = vpop.permute.xlu0 %2259
  %2261 = vrot.lane.b32.xlu0 %v1093, 88
  %v2262 = vpop.permute.xlu0 %2261
  %2263 = vrot.lane.b32.xlu0 %v1094, 88
  %v2264 = vpop.permute.xlu0 %2263
  %v2266 = vsel %vm1131, %v2250, 0
  %v2269 = vsel %vm1131, %v2252, 0
  %v2272 = vsel %vm1131, %v2254, 0
  %v2275 = vsel %vm1131, %v2256, 0
  %v2278 = vsel %vm1131, %v2258, 0
  %v2281 = vsel %vm1131, %v2260, 0
  %v2284 = vsel %vm1131, %v2262, 0
  %v2287 = vsel %vm1131, %v2264, 0
  %2289 = vmatprep.subr.bf16.mxu0 0
  %2290 = vmatpush1.bf16.xpose.msra.mxu0 %v2278
  %2291 = vmatprep.subr.bf16.mxu0 0
  %2292 = vmatpush1.bf16.xpose.msra.mxu0 %v2281
  %2293 = vmatprep.subr.bf16.mxu0 0
  %2294 = vmatpush1.bf16.xpose.msra.mxu0 %v2284
  %2295 = vmatprep.subr.bf16.mxu0 0
  %2296 = vmatpush1.bf16.xpose.msra.mxu0 %v2287
  %2297 = vmatprep.subr.bf16.mxu0 0
  %2298 = vmatpush1.bf16.xpose.msra.mxu0 0
  %2299 = vmatprep.subr.bf16.mxu0 0
  %2300 = vmatpush1.bf16.xpose.msra.mxu0 0
  %2301 = vmatprep.subr.bf16.mxu0 0
  %2302 = vmatpush1.bf16.xpose.msra.mxu0 0
  %2303 = vmatprep.subr.bf16.mxu0 0
  %2304 = vmatpush1.bf16.xpose.msra.mxu0 0
  %2305 = vmatprep.subr.bf16.mxu0 0
  %2306 = vmatpush1.bf16.xpose.msra.mxu0 0
  %2307 = vmatprep.subr.bf16.mxu0 0
  %2308 = vmatpush1.bf16.xpose.msra.mxu0 0
  %2309 = vmatprep.subr.bf16.mxu0 0
  %2310 = vmatpush1.bf16.xpose.msra.mxu0 0
  %2311 = vmatprep.subr.bf16.mxu0 0
  %2312 = vmatpush1.bf16.xpose.msra.mxu0 0
  %2313 = vmatprep.subr.bf16.mxu0 0
  %2314 = vmatpush1.bf16.xpose.msra.mxu0 0
  %2315 = vmatprep.subr.bf16.mxu0 0
  %2316 = vmatpush1.bf16.xpose.msra.mxu0 0
  %2317 = vmatprep.subr.bf16.mxu0 0
  %2318 = vmatpush1.bf16.xpose.msra.mxu0 0
  %2319 = vmatprep.subr.bf16.mxu0 0
  %2320 = vmatpush1.bf16.xpose.msra.mxu0 0
  %2321 = vmatprep.mubr.bf16.mxu0 0
  %2322 = vmatmul.mubr.bf16.gmra.mrb[0].mxu0 %v2266
  %v2323 = vpop.f32.mrb[0].mxu0
  %v2324 = vadd.f32 0.0, %v2323
  %v2325 = vpop.f32.mrb[0].mxu0
  %v2326 = vpop.f32.mrb[0].mxu0
  %v2327 = vadd.f32 0.0, %v2326
  %v2328 = vpop.f32.mrb[0].mxu0
  %2329 = vmatprep.mubr.bf16.mxu0 0
  %2330 = vmatmul.mubr.bf16.gmra.mrb[0].mxu0 %v2269
  %v2331 = vpop.f32.mrb[0].mxu0
  %v2332 = vadd.f32 0.0, %v2331
  %v2333 = vpop.f32.mrb[0].mxu0
  %v2334 = vpop.f32.mrb[0].mxu0
  %v2335 = vadd.f32 0.0, %v2334
  %v2336 = vpop.f32.mrb[0].mxu0
  %2337 = vmatprep.mubr.bf16.mxu0 0
  %2338 = vmatmul.mubr.bf16.gmra.mrb[0].mxu0 %v2272
  %v2339 = vpop.f32.mrb[0].mxu0
  %v2340 = vadd.f32 0.0, %v2339
  %v2341 = vpop.f32.mrb[0].mxu0
  %v2342 = vpop.f32.mrb[0].mxu0
  %v2343 = vadd.f32 0.0, %v2342
  %v2344 = vpop.f32.mrb[0].mxu0
  %2345 = vmatprep.mubr.bf16.mxu0 0
  %2346 = vmatmul.mubr.bf16.gmra.mrb[0].mxu0 %v2275
  %v2347 = vpop.f32.mrb[0].mxu0
  %v2348 = vadd.f32 0.0, %v2347
  %v2349 = vpop.f32.mrb[0].mxu0
  %v2350 = vpop.f32.mrb[0].mxu0
  %v2351 = vadd.f32 0.0, %v2350
  %v2352 = vpop.f32.mrb[0].mxu0
  %2353 = vdwg.mxu0
  %2358 = vrot.lane.b32.xlu0 %v1079, 120
  %v2359 = vpop.permute.xlu0 %2358
  %2360 = vrot.lane.b32.xlu0 %v1080, 120
  %v2361 = vpop.permute.xlu0 %2360
  %2362 = vrot.lane.b32.xlu0 %v1081, 120
  %v2363 = vpop.permute.xlu0 %2362
  %2364 = vrot.lane.b32.xlu0 %v1082, 120
  %v2365 = vpop.permute.xlu0 %2364
  %2366 = vrot.lane.b32.xlu0 %v1095, 88
  %v2367 = vpop.permute.xlu0 %2366
  %2368 = vrot.lane.b32.xlu0 %v1096, 88
  %v2369 = vpop.permute.xlu0 %2368
  %2370 = vrot.lane.b32.xlu0 %v1097, 88
  %v2371 = vpop.permute.xlu0 %2370
  %2372 = vrot.lane.b32.xlu0 %v1098, 88
  %v2373 = vpop.permute.xlu0 %2372
  %v2375 = vsel %vm1131, %v2359, 0
  %v2378 = vsel %vm1131, %v2361, 0
  %v2381 = vsel %vm1131, %v2363, 0
  %v2384 = vsel %vm1131, %v2365, 0
  %v2387 = vsel %vm1131, %v2367, 0
  %v2390 = vsel %vm1131, %v2369, 0
  %v2393 = vsel %vm1131, %v2371, 0
  %v2396 = vsel %vm1131, %v2373, 0
  %2398 = vmatprep.subr.bf16.mxu0 0
  %2399 = vmatpush1.bf16.xpose.msra.mxu0 %v2387
  %2400 = vmatprep.subr.bf16.mxu0 0
  %2401 = vmatpush1.bf16.xpose.msra.mxu0 %v2390
  %2402 = vmatprep.subr.bf16.mxu0 0
  %2403 = vmatpush1.bf16.xpose.msra.mxu0 %v2393
  %2404 = vmatprep.subr.bf16.mxu0 0
  %2405 = vmatpush1.bf16.xpose.msra.mxu0 %v2396
  %2406 = vmatprep.subr.bf16.mxu0 0
  %2407 = vmatpush1.bf16.xpose.msra.mxu0 0
  %2408 = vmatprep.subr.bf16.mxu0 0
  %2409 = vmatpush1.bf16.xpose.msra.mxu0 0
  %2410 = vmatprep.subr.bf16.mxu0 0
  %2411 = vmatpush1.bf16.xpose.msra.mxu0 0
  %2412 = vmatprep.subr.bf16.mxu0 0
  %2413 = vmatpush1.bf16.xpose.msra.mxu0 0
  %2414 = vmatprep.subr.bf16.mxu0 0
  %2415 = vmatpush1.bf16.xpose.msra.mxu0 0
  %2416 = vmatprep.subr.bf16.mxu0 0
  %2417 = vmatpush1.bf16.xpose.msra.mxu0 0
  %2418 = vmatprep.subr.bf16.mxu0 0
  %2419 = vmatpush1.bf16.xpose.msra.mxu0 0
  %2420 = vmatprep.subr.bf16.mxu0 0
  %2421 = vmatpush1.bf16.xpose.msra.mxu0 0
  %2422 = vmatprep.subr.bf16.mxu0 0
  %2423 = vmatpush1.bf16.xpose.msra.mxu0 0
  %2424 = vmatprep.subr.bf16.mxu0 0
  %2425 = vmatpush1.bf16.xpose.msra.mxu0 0
  %2426 = vmatprep.subr.bf16.mxu0 0
  %2427 = vmatpush1.bf16.xpose.msra.mxu0 0
  %2428 = vmatprep.subr.bf16.mxu0 0
  %2429 = vmatpush1.bf16.xpose.msra.mxu0 0
  %2430 = vmatprep.mubr.bf16.mxu0 0
  %2431 = vmatmul.mubr.bf16.gmra.mrb[0].mxu0 %v2375
  %v2432 = vpop.f32.mrb[0].mxu0
  %v2433 = vadd.f32 0.0, %v2432
  %v2434 = vpop.f32.mrb[0].mxu0
  %v2435 = vpop.f32.mrb[0].mxu0
  %v2436 = vadd.f32 0.0, %v2435
  %v2437 = vpop.f32.mrb[0].mxu0
  %2438 = vmatprep.mubr.bf16.mxu0 0
  %2439 = vmatmul.mubr.bf16.gmra.mrb[0].mxu0 %v2378
  %v2440 = vpop.f32.mrb[0].mxu0
  %v2441 = vadd.f32 0.0, %v2440
  %v2442 = vpop.f32.mrb[0].mxu0
  %v2443 = vpop.f32.mrb[0].mxu0
  %v2444 = vadd.f32 0.0, %v2443
  %v2445 = vpop.f32.mrb[0].mxu0
  %2446 = vmatprep.mubr.bf16.mxu0 0
  %2447 = vmatmul.mubr.bf16.gmra.mrb[0].mxu0 %v2381
  %v2448 = vpop.f32.mrb[0].mxu0
  %v2449 = vadd.f32 0.0, %v2448
  %v2450 = vpop.f32.mrb[0].mxu0
  %v2451 = vpop.f32.mrb[0].mxu0
  %v2452 = vadd.f32 0.0, %v2451
  %v2453 = vpop.f32.mrb[0].mxu0
  %2454 = vmatprep.mubr.bf16.mxu0 0
  %2455 = vmatmul.mubr.bf16.gmra.mrb[0].mxu0 %v2384
  %v2456 = vpop.f32.mrb[0].mxu0
  %v2457 = vadd.f32 0.0, %v2456
  %v2458 = vpop.f32.mrb[0].mxu0
  %v2459 = vpop.f32.mrb[0].mxu0
  %v2460 = vadd.f32 0.0, %v2459
  %v2461 = vpop.f32.mrb[0].mxu0
  %2462 = vdwg.mxu0
  %2467 = vrot.lane.b32.xlu0 %v1083, 120
  %v2468 = vpop.permute.xlu0 %2467
  %2469 = vrot.lane.b32.xlu0 %v1084, 120
  %v2470 = vpop.permute.xlu0 %2469
  %2471 = vrot.lane.b32.xlu0 %v1085, 120
  %v2472 = vpop.permute.xlu0 %2471
  %2473 = vrot.lane.b32.xlu0 %v1086, 120
  %v2474 = vpop.permute.xlu0 %2473
  %2475 = vrot.lane.b32.xlu0 %v1099, 88
  %v2476 = vpop.permute.xlu0 %2475
  %2477 = vrot.lane.b32.xlu0 %v1100, 88
  %v2478 = vpop.permute.xlu0 %2477
  %2479 = vrot.lane.b32.xlu0 %v1101, 88
  %v2480 = vpop.permute.xlu0 %2479
  %2481 = vrot.lane.b32.xlu0 %v1102, 88
  %v2482 = vpop.permute.xlu0 %2481
  %v2484 = vsel %vm1131, %v2468, 0
  %v2487 = vsel %vm1131, %v2470, 0
  %v2490 = vsel %vm1131, %v2472, 0
  %v2493 = vsel %vm1131, %v2474, 0
  %v2496 = vsel %vm1131, %v2476, 0
  %v2499 = vsel %vm1131, %v2478, 0
  %v2502 = vsel %vm1131, %v2480, 0
  %v2505 = vsel %vm1131, %v2482, 0
  %2507 = vmatprep.subr.bf16.mxu0 0
  %2508 = vmatpush1.bf16.xpose.msra.mxu0 %v2496
  %2509 = vmatprep.subr.bf16.mxu0 0
  %2510 = vmatpush1.bf16.xpose.msra.mxu0 %v2499
  %2511 = vmatprep.subr.bf16.mxu0 0
  %2512 = vmatpush1.bf16.xpose.msra.mxu0 %v2502
  %2513 = vmatprep.subr.bf16.mxu0 0
  %2514 = vmatpush1.bf16.xpose.msra.mxu0 %v2505
  %2515 = vmatprep.subr.bf16.mxu0 0
  %2516 = vmatpush1.bf16.xpose.msra.mxu0 0
  %2517 = vmatprep.subr.bf16.mxu0 0
  %2518 = vmatpush1.bf16.xpose.msra.mxu0 0
  %2519 = vmatprep.subr.bf16.mxu0 0
  %2520 = vmatpush1.bf16.xpose.msra.mxu0 0
  %2521 = vmatprep.subr.bf16.mxu0 0
  %2522 = vmatpush1.bf16.xpose.msra.mxu0 0
  %2523 = vmatprep.subr.bf16.mxu0 0
  %2524 = vmatpush1.bf16.xpose.msra.mxu0 0
  %2525 = vmatprep.subr.bf16.mxu0 0
  %2526 = vmatpush1.bf16.xpose.msra.mxu0 0
  %2527 = vmatprep.subr.bf16.mxu0 0
  %2528 = vmatpush1.bf16.xpose.msra.mxu0 0
  %2529 = vmatprep.subr.bf16.mxu0 0
  %2530 = vmatpush1.bf16.xpose.msra.mxu0 0
  %2531 = vmatprep.subr.bf16.mxu0 0
  %2532 = vmatpush1.bf16.xpose.msra.mxu0 0
  %2533 = vmatprep.subr.bf16.mxu0 0
  %2534 = vmatpush1.bf16.xpose.msra.mxu0 0
  %2535 = vmatprep.subr.bf16.mxu0 0
  %2536 = vmatpush1.bf16.xpose.msra.mxu0 0
  %2537 = vmatprep.subr.bf16.mxu0 0
  %2538 = vmatpush1.bf16.xpose.msra.mxu0 0
  %2539 = vmatprep.mubr.bf16.mxu0 0
  %2540 = vmatmul.mubr.bf16.gmra.mrb[0].mxu0 %v2484
  %v2541 = vpop.f32.mrb[0].mxu0
  %v2542 = vadd.f32 0.0, %v2541
  %v2543 = vpop.f32.mrb[0].mxu0
  %v2544 = vpop.f32.mrb[0].mxu0
  %v2545 = vadd.f32 0.0, %v2544
  %v2546 = vpop.f32.mrb[0].mxu0
  %2547 = vmatprep.mubr.bf16.mxu0 0
  %2548 = vmatmul.mubr.bf16.gmra.mrb[0].mxu0 %v2487
  %v2549 = vpop.f32.mrb[0].mxu0
  %v2550 = vadd.f32 0.0, %v2549
  %v2551 = vpop.f32.mrb[0].mxu0
  %v2552 = vpop.f32.mrb[0].mxu0
  %v2553 = vadd.f32 0.0, %v2552
  %v2554 = vpop.f32.mrb[0].mxu0
  %2555 = vmatprep.mubr.bf16.mxu0 0
  %2556 = vmatmul.mubr.bf16.gmra.mrb[0].mxu0 %v2490
  %v2557 = vpop.f32.mrb[0].mxu0
  %v2558 = vadd.f32 0.0, %v2557
  %v2559 = vpop.f32.mrb[0].mxu0
  %v2560 = vpop.f32.mrb[0].mxu0
  %v2561 = vadd.f32 0.0, %v2560
  %v2562 = vpop.f32.mrb[0].mxu0
  %2563 = vmatprep.mubr.bf16.mxu0 0
  %2564 = vmatmul.mubr.bf16.gmra.mrb[0].mxu0 %v2493
  %v2565 = vpop.f32.mrb[0].mxu0
  %v2566 = vadd.f32 0.0, %v2565
  %v2567 = vpop.f32.mrb[0].mxu0
  %v2568 = vpop.f32.mrb[0].mxu0
  %v2569 = vadd.f32 0.0, %v2568
  %v2570 = vpop.f32.mrb[0].mxu0
  %2571 = vdwg.mxu0
  %v2572 = vmul.f32 %v2215, 1.442695
  %v2573 = vpow.pop %v2572
  %v2574 = vmul.f32 %v2218, 1.442695
  %v2575 = vpow.pop %v2574
  %v2576 = vmul.f32 %v2223, 1.442695
  %v2577 = vpow.pop %v2576
  %v2578 = vmul.f32 %v2226, 1.442695
  %v2579 = vpow.pop %v2578
  %v2580 = vmul.f32 %v2231, 1.442695
  %v2581 = vpow.pop %v2580
  %v2582 = vmul.f32 %v2234, 1.442695
  %v2583 = vpow.pop %v2582
  %v2584 = vmul.f32 %v2239, 1.442695
  %v2585 = vpow.pop %v2584
  %v2586 = vmul.f32 %v2242, 1.442695
  %v2587 = vpow.pop %v2586
  %v2588 = vmul.f32 %v2324, 1.442695
  %v2589 = vpow.pop %v2588
  %v2590 = vmul.f32 %v2327, 1.442695
  %v2591 = vpow.pop %v2590
  %v2592 = vmul.f32 %v2332, 1.442695
  %v2593 = vpow.pop %v2592
  %v2594 = vmul.f32 %v2335, 1.442695
  %v2595 = vpow.pop %v2594
  %v2596 = vmul.f32 %v2340, 1.442695
  %v2597 = vpow.pop %v2596
  %v2598 = vmul.f32 %v2343, 1.442695
  %v2599 = vpow.pop %v2598
  %v2600 = vmul.f32 %v2348, 1.442695
  %v2601 = vpow.pop %v2600
  %v2602 = vmul.f32 %v2351, 1.442695
  %v2603 = vpow.pop %v2602
  %v2604 = vmul.f32 %v2433, 1.442695
  %v2605 = vpow.pop %v2604
  %v2606 = vmul.f32 %v2436, 1.442695
  %v2607 = vpow.pop %v2606
  %v2608 = vmul.f32 %v2441, 1.442695
  %v2609 = vpow.pop %v2608
  %v2610 = vmul.f32 %v2444, 1.442695
  %v2611 = vpow.pop %v2610
  %v2612 = vmul.f32 %v2449, 1.442695
  %v2613 = vpow.pop %v2612
  %v2614 = vmul.f32 %v2452, 1.442695
  %v2615 = vpow.pop %v2614
  %v2616 = vmul.f32 %v2457, 1.442695
  %v2617 = vpow.pop %v2616
  %v2618 = vmul.f32 %v2460, 1.442695
  %v2619 = vpow.pop %v2618
  %v2620 = vmul.f32 %v2542, 1.442695
  %v2621 = vpow.pop %v2620
  %v2622 = vmul.f32 %v2545, 1.442695
  %v2623 = vpow.pop %v2622
  %v2624 = vmul.f32 %v2550, 1.442695
  %v2625 = vpow.pop %v2624
  %v2626 = vmul.f32 %v2553, 1.442695
  %v2627 = vpow.pop %v2626
  %v2628 = vmul.f32 %v2558, 1.442695
  %v2629 = vpow.pop %v2628
  %v2630 = vmul.f32 %v2561, 1.442695
  %v2631 = vpow.pop %v2630
  %v2632 = vmul.f32 %v2566, 1.442695
  %v2633 = vpow.pop %v2632
  %v2634 = vmul.f32 %v2569, 1.442695
  %v2635 = vpow.pop %v2634
  %v2636 = vsel %vm589, %v2573, 0.0
  %2637 = vadd.xlane.f32.xlu0 %v2636
  %v2638 = vpop.xlane.xlu0 %2637
  %v2639 = vsel %vm589, %v2575, 0.0
  %2640 = vadd.xlane.f32.xlu0 %v2639
  %v2641 = vpop.xlane.xlu0 %2640
  %v2642 = vsel %vm589, %v2577, 0.0
  %2643 = vadd.xlane.f32.xlu0 %v2642
  %v2644 = vpop.xlane.xlu0 %2643
  %v2645 = vsel %vm589, %v2579, 0.0
  %2646 = vadd.xlane.f32.xlu0 %v2645
  %v2647 = vpop.xlane.xlu0 %2646
  %v2648 = vsel %vm589, %v2581, 0.0
  %2649 = vadd.xlane.f32.xlu0 %v2648
  %v2650 = vpop.xlane.xlu0 %2649
  %v2651 = vsel %vm589, %v2583, 0.0
  %2652 = vadd.xlane.f32.xlu0 %v2651
  %v2653 = vpop.xlane.xlu0 %2652
  %v2654 = vsel %vm589, %v2585, 0.0
  %2655 = vadd.xlane.f32.xlu0 %v2654
  %v2656 = vpop.xlane.xlu0 %2655
  %v2657 = vsel %vm589, %v2587, 0.0
  %2658 = vadd.xlane.f32.xlu0 %v2657
  %v2659 = vpop.xlane.xlu0 %2658
  %v2660 = vsel %vm589, %v2589, 0.0
  %2661 = vadd.xlane.f32.xlu0 %v2660
  %v2662 = vpop.xlane.xlu0 %2661
  %v2663 = vsel %vm589, %v2591, 0.0
  %2664 = vadd.xlane.f32.xlu0 %v2663
  %v2665 = vpop.xlane.xlu0 %2664
  %v2666 = vsel %vm589, %v2593, 0.0
  %2667 = vadd.xlane.f32.xlu0 %v2666
  %v2668 = vpop.xlane.xlu0 %2667
  %v2669 = vsel %vm589, %v2595, 0.0
  %2670 = vadd.xlane.f32.xlu0 %v2669
  %v2671 = vpop.xlane.xlu0 %2670
  %v2672 = vsel %vm589, %v2597, 0.0
  %2673 = vadd.xlane.f32.xlu0 %v2672
  %v2674 = vpop.xlane.xlu0 %2673
  %v2675 = vsel %vm589, %v2599, 0.0
  %2676 = vadd.xlane.f32.xlu0 %v2675
  %v2677 = vpop.xlane.xlu0 %2676
  %v2678 = vsel %vm589, %v2601, 0.0
  %2679 = vadd.xlane.f32.xlu0 %v2678
  %v2680 = vpop.xlane.xlu0 %2679
  %v2681 = vsel %vm589, %v2603, 0.0
  %2682 = vadd.xlane.f32.xlu0 %v2681
  %v2683 = vpop.xlane.xlu0 %2682
  %v2684 = vsel %vm589, %v2605, 0.0
  %2685 = vadd.xlane.f32.xlu0 %v2684
  %v2686 = vpop.xlane.xlu0 %2685
  %v2687 = vsel %vm589, %v2607, 0.0
  %2688 = vadd.xlane.f32.xlu0 %v2687
  %v2689 = vpop.xlane.xlu0 %2688
  %v2690 = vsel %vm589, %v2609, 0.0
  %2691 = vadd.xlane.f32.xlu0 %v2690
  %v2692 = vpop.xlane.xlu0 %2691
  %v2693 = vsel %vm589, %v2611, 0.0
  %2694 = vadd.xlane.f32.xlu0 %v2693
  %v2695 = vpop.xlane.xlu0 %2694
  %v2696 = vsel %vm589, %v2613, 0.0
  %2697 = vadd.xlane.f32.xlu0 %v2696
  %v2698 = vpop.xlane.xlu0 %2697
  %v2699 = vsel %vm589, %v2615, 0.0
  %2700 = vadd.xlane.f32.xlu0 %v2699
  %v2701 = vpop.xlane.xlu0 %2700
  %v2702 = vsel %vm589, %v2617, 0.0
  %2703 = vadd.xlane.f32.xlu0 %v2702
  %v2704 = vpop.xlane.xlu0 %2703
  %v2705 = vsel %vm589, %v2619, 0.0
  %2706 = vadd.xlane.f32.xlu0 %v2705
  %v2707 = vpop.xlane.xlu0 %2706
  %v2708 = vsel %vm589, %v2621, 0.0
  %2709 = vadd.xlane.f32.xlu0 %v2708
  %v2710 = vpop.xlane.xlu0 %2709
  %v2711 = vsel %vm589, %v2623, 0.0
  %2712 = vadd.xlane.f32.xlu0 %v2711
  %v2713 = vpop.xlane.xlu0 %2712
  %v2714 = vsel %vm589, %v2625, 0.0
  %2715 = vadd.xlane.f32.xlu0 %v2714
  %v2716 = vpop.xlane.xlu0 %2715
  %v2717 = vsel %vm589, %v2627, 0.0
  %2718 = vadd.xlane.f32.xlu0 %v2717
  %v2719 = vpop.xlane.xlu0 %2718
  %v2720 = vsel %vm589, %v2629, 0.0
  %2721 = vadd.xlane.f32.xlu0 %v2720
  %v2722 = vpop.xlane.xlu0 %2721
  %v2723 = vsel %vm589, %v2631, 0.0
  %2724 = vadd.xlane.f32.xlu0 %v2723
  %v2725 = vpop.xlane.xlu0 %2724
  %v2726 = vsel %vm589, %v2633, 0.0
  %2727 = vadd.xlane.f32.xlu0 %v2726
  %v2728 = vpop.xlane.xlu0 %2727
  %v2729 = vsel %vm589, %v2635, 0.0
  %2730 = vadd.xlane.f32.xlu0 %v2729
  %v2731 = vpop.xlane.xlu0 %2730
  %v2732 = vrcp.pop %v2638
  %v2733 = vrcp.pop %v2641
  %v2734 = vrcp.pop %v2644
  %v2735 = vrcp.pop %v2647
  %v2736 = vrcp.pop %v2650
  %v2737 = vrcp.pop %v2653
  %v2738 = vrcp.pop %v2656
  %v2739 = vrcp.pop %v2659
  %v2740 = vrcp.pop %v2662
  %v2741 = vrcp.pop %v2665
  %v2742 = vrcp.pop %v2668
  %v2743 = vrcp.pop %v2671
  %v2744 = vrcp.pop %v2674
  %v2745 = vrcp.pop %v2677
  %v2746 = vrcp.pop %v2680
  %v2747 = vrcp.pop %v2683
  %v2748 = vrcp.pop %v2686
  %v2749 = vrcp.pop %v2689
  %v2750 = vrcp.pop %v2692
  %v2751 = vrcp.pop %v2695
  %v2752 = vrcp.pop %v2698
  %v2753 = vrcp.pop %v2701
  %v2754 = vrcp.pop %v2704
  %v2755 = vrcp.pop %v2707
  %v2756 = vrcp.pop %v2710
  %v2757 = vrcp.pop %v2713
  %v2758 = vrcp.pop %v2716
  %v2759 = vrcp.pop %v2719
  %v2760 = vrcp.pop %v2722
  %v2761 = vrcp.pop %v2725
  %v2762 = vrcp.pop %v2728
  %v2763 = vrcp.pop %v2731
  %v2764 = vmul.f32 %v2573, %v2732
  %v2765 = vmul.f32 %v2575, %v2733
  %v2766 = vmul.f32 %v2577, %v2734
  %v2767 = vmul.f32 %v2579, %v2735
  %v2768 = vmul.f32 %v2581, %v2736
  %v2769 = vmul.f32 %v2583, %v2737
  %v2770 = vmul.f32 %v2585, %v2738
  %v2771 = vmul.f32 %v2587, %v2739
  %v2772 = vmul.f32 %v2589, %v2740
  %v2773 = vmul.f32 %v2591, %v2741
  %v2774 = vmul.f32 %v2593, %v2742
  %v2775 = vmul.f32 %v2595, %v2743
  %v2776 = vmul.f32 %v2597, %v2744
  %v2777 = vmul.f32 %v2599, %v2745
  %v2778 = vmul.f32 %v2601, %v2746
  %v2779 = vmul.f32 %v2603, %v2747
  %v2780 = vmul.f32 %v2605, %v2748
  %v2781 = vmul.f32 %v2607, %v2749
  %v2782 = vmul.f32 %v2609, %v2750
  %v2783 = vmul.f32 %v2611, %v2751
  %v2784 = vmul.f32 %v2613, %v2752
  %v2785 = vmul.f32 %v2615, %v2753
  %v2786 = vmul.f32 %v2617, %v2754
  %v2787 = vmul.f32 %v2619, %v2755
  %v2788 = vmul.f32 %v2621, %v2756
  %v2789 = vmul.f32 %v2623, %v2757
  %v2790 = vmul.f32 %v2625, %v2758
  %v2791 = vmul.f32 %v2627, %v2759
  %v2792 = vmul.f32 %v2629, %v2760
  %v2793 = vmul.f32 %v2631, %v2761
  %v2794 = vmul.f32 %v2633, %v2762
  %v2795 = vmul.f32 %v2635, %v2763
  %v2796 = vpack.c.bf16 %v2765, %v2764
  %v2797 = vpack.c.bf16 %v2767, %v2766
  %v2798 = vpack.c.bf16 %v2769, %v2768
  %v2799 = vpack.c.bf16 %v2771, %v2770
  %v2800 = vpack.c.bf16 %v2773, %v2772
  %v2801 = vpack.c.bf16 %v2775, %v2774
  %v2802 = vpack.c.bf16 %v2777, %v2776
  %v2803 = vpack.c.bf16 %v2779, %v2778
  %v2804 = vpack.c.bf16 %v2781, %v2780
  %v2805 = vpack.c.bf16 %v2783, %v2782
  %v2806 = vpack.c.bf16 %v2785, %v2784
  %v2807 = vpack.c.bf16 %v2787, %v2786
  %v2808 = vpack.c.bf16 %v2789, %v2788
  %v2809 = vpack.c.bf16 %v2791, %v2790
  %v2810 = vpack.c.bf16 %v2793, %v2792
  %v2811 = vpack.c.bf16 %v2795, %v2794
  %2812 = vrot.lane.b32.xlu0 %v1103, 56
  %v2813 = vpop.permute.xlu0 %2812
  %2814 = vrot.lane.b32.xlu0 %v1104, 56
  %v2815 = vpop.permute.xlu0 %2814
  %2816 = vrot.lane.b32.xlu0 %v1105, 56
  %v2817 = vpop.permute.xlu0 %2816
  %2818 = vrot.lane.b32.xlu0 %v1106, 56
  %v2819 = vpop.permute.xlu0 %2818
  %v2825 = vsel %vm589, %v2796, 0
  %v2828 = vsel %vm589, %v2797, 0
  %v2831 = vsel %vm589, %v2798, 0
  %v2834 = vsel %vm589, %v2799, 0
  %2836 = vmatprep.subr.bf16.mxu0 0
  %2837 = vmatpush1.bf16.msra.mxu0 %v2813
  %2838 = vmatprep.subr.bf16.mxu0 0
  %2839 = vmatpush1.bf16.msra.mxu0 %v2815
  %2840 = vmatprep.subr.bf16.mxu0 0
  %2841 = vmatpush1.bf16.msra.mxu0 %v2817
  %2842 = vmatprep.subr.bf16.mxu0 0
  %2843 = vmatpush1.bf16.msra.mxu0 %v2819
  %2844 = vmatprep.subr.bf16.mxu0 0
  %2845 = vmatpush1.bf16.msra.mxu0 0
  %2846 = vmatprep.subr.bf16.mxu0 0
  %2847 = vmatpush1.bf16.msra.mxu0 0
  %2848 = vmatprep.subr.bf16.mxu0 0
  %2849 = vmatpush1.bf16.msra.mxu0 0
  %2850 = vmatprep.subr.bf16.mxu0 0
  %2851 = vmatpush1.bf16.msra.mxu0 0
  %2852 = vmatprep.subr.bf16.mxu0 0
  %2853 = vmatpush1.bf16.msra.mxu0 0
  %2854 = vmatprep.subr.bf16.mxu0 0
  %2855 = vmatpush1.bf16.msra.mxu0 0
  %2856 = vmatprep.subr.bf16.mxu0 0
  %2857 = vmatpush1.bf16.msra.mxu0 0
  %2858 = vmatprep.subr.bf16.mxu0 0
  %2859 = vmatpush1.bf16.msra.mxu0 0
  %2860 = vmatprep.subr.bf16.mxu0 0
  %2861 = vmatpush1.bf16.msra.mxu0 0
  %2862 = vmatprep.subr.bf16.mxu0 0
  %2863 = vmatpush1.bf16.msra.mxu0 0
  %2864 = vmatprep.subr.bf16.mxu0 0
  %2865 = vmatpush1.bf16.msra.mxu0 0
  %2866 = vmatprep.subr.bf16.mxu0 0
  %2867 = vmatpush1.bf16.msra.mxu0 0
  %2868 = vmatprep.mubr.bf16.mxu0 0
  %2869 = vmatmul.mubr.bf16.gmra.mrb[0].mxu0 %v2825
  %v2870 = vpop.f32.mrb[0].mxu0
  %v2871 = vadd.f32 0.0, %v2870
  %v2872 = vpop.f32.mrb[0].mxu0
  %v2873 = vpop.f32.mrb[0].mxu0
  %v2874 = vadd.f32 0.0, %v2873
  %v2875 = vpop.f32.mrb[0].mxu0
  %2876 = vmatprep.mubr.bf16.mxu0 0
  %2877 = vmatmul.mubr.bf16.gmra.mrb[0].mxu0 %v2828
  %v2878 = vpop.f32.mrb[0].mxu0
  %v2879 = vadd.f32 0.0, %v2878
  %v2880 = vpop.f32.mrb[0].mxu0
  %v2881 = vpop.f32.mrb[0].mxu0
  %v2882 = vadd.f32 0.0, %v2881
  %v2883 = vpop.f32.mrb[0].mxu0
  %2884 = vmatprep.mubr.bf16.mxu0 0
  %2885 = vmatmul.mubr.bf16.gmra.mrb[0].mxu0 %v2831
  %v2886 = vpop.f32.mrb[0].mxu0
  %v2887 = vadd.f32 0.0, %v2886
  %v2888 = vpop.f32.mrb[0].mxu0
  %v2889 = vpop.f32.mrb[0].mxu0
  %v2890 = vadd.f32 0.0, %v2889
  %v2891 = vpop.f32.mrb[0].mxu0
  %2892 = vmatprep.mubr.bf16.mxu0 0
  %2893 = vmatmul.mubr.bf16.gmra.mrb[0].mxu0 %v2834
  %v2894 = vpop.f32.mrb[0].mxu0
  %v2895 = vadd.f32 0.0, %v2894
  %v2896 = vpop.f32.mrb[0].mxu0
  %v2897 = vpop.f32.mrb[0].mxu0
  %v2898 = vadd.f32 0.0, %v2897
  %v2899 = vpop.f32.mrb[0].mxu0
  %2900 = vdwg.mxu0
  %2901 = vrot.lane.b32.xlu0 %v1107, 56
  %v2902 = vpop.permute.xlu0 %2901
  %2903 = vrot.lane.b32.xlu0 %v1108, 56
  %v2904 = vpop.permute.xlu0 %2903
  %2905 = vrot.lane.b32.xlu0 %v1109, 56
  %v2906 = vpop.permute.xlu0 %2905
  %2907 = vrot.lane.b32.xlu0 %v1110, 56
  %v2908 = vpop.permute.xlu0 %2907
  %v2914 = vsel %vm589, %v2800, 0
  %v2917 = vsel %vm589, %v2801, 0
  %v2920 = vsel %vm589, %v2802, 0
  %v2923 = vsel %vm589, %v2803, 0
  %2925 = vmatprep.subr.bf16.mxu0 0
  %2926 = vmatpush1.bf16.msra.mxu0 %v2902
  %2927 = vmatprep.subr.bf16.mxu0 0
  %2928 = vmatpush1.bf16.msra.mxu0 %v2904
  %2929 = vmatprep.subr.bf16.mxu0 0
  %2930 = vmatpush1.bf16.msra.mxu0 %v2906
  %2931 = vmatprep.subr.bf16.mxu0 0
  %2932 = vmatpush1.bf16.msra.mxu0 %v2908
  %2933 = vmatprep.subr.bf16.mxu0 0
  %2934 = vmatpush1.bf16.msra.mxu0 0
  %2935 = vmatprep.subr.bf16.mxu0 0
  %2936 = vmatpush1.bf16.msra.mxu0 0
  %2937 = vmatprep.subr.bf16.mxu0 0
  %2938 = vmatpush1.bf16.msra.mxu0 0
  %2939 = vmatprep.subr.bf16.mxu0 0
  %2940 = vmatpush1.bf16.msra.mxu0 0
  %2941 = vmatprep.subr.bf16.mxu0 0
  %2942 = vmatpush1.bf16.msra.mxu0 0
  %2943 = vmatprep.subr.bf16.mxu0 0
  %2944 = vmatpush1.bf16.msra.mxu0 0
  %2945 = vmatprep.subr.bf16.mxu0 0
  %2946 = vmatpush1.bf16.msra.mxu0 0
  %2947 = vmatprep.subr.bf16.mxu0 0
  %2948 = vmatpush1.bf16.msra.mxu0 0
  %2949 = vmatprep.subr.bf16.mxu0 0
  %2950 = vmatpush1.bf16.msra.mxu0 0
  %2951 = vmatprep.subr.bf16.mxu0 0
  %2952 = vmatpush1.bf16.msra.mxu0 0
  %2953 = vmatprep.subr.bf16.mxu0 0
  %2954 = vmatpush1.bf16.msra.mxu0 0
  %2955 = vmatprep.subr.bf16.mxu0 0
  %2956 = vmatpush1.bf16.msra.mxu0 0
  %2957 = vmatprep.mubr.bf16.mxu0 0
  %2958 = vmatmul.mubr.bf16.gmra.mrb[0].mxu0 %v2914
  %v2959 = vpop.f32.mrb[0].mxu0
  %v2960 = vadd.f32 0.0, %v2959
  %v2961 = vpop.f32.mrb[0].mxu0
  %v2962 = vpop.f32.mrb[0].mxu0
  %v2963 = vadd.f32 0.0, %v2962
  %v2964 = vpop.f32.mrb[0].mxu0
  %2965 = vmatprep.mubr.bf16.mxu0 0
  %2966 = vmatmul.mubr.bf16.gmra.mrb[0].mxu0 %v2917
  %v2967 = vpop.f32.mrb[0].mxu0
  %v2968 = vadd.f32 0.0, %v2967
  %v2969 = vpop.f32.mrb[0].mxu0
  %v2970 = vpop.f32.mrb[0].mxu0
  %v2971 = vadd.f32 0.0, %v2970
  %v2972 = vpop.f32.mrb[0].mxu0
  %2973 = vmatprep.mubr.bf16.mxu0 0
  %2974 = vmatmul.mubr.bf16.gmra.mrb[0].mxu0 %v2920
  %v2975 = vpop.f32.mrb[0].mxu0
  %v2976 = vadd.f32 0.0, %v2975
  %v2977 = vpop.f32.mrb[0].mxu0
  %v2978 = vpop.f32.mrb[0].mxu0
  %v2979 = vadd.f32 0.0, %v2978
  %v2980 = vpop.f32.mrb[0].mxu0
  %2981 = vmatprep.mubr.bf16.mxu0 0
  %2982 = vmatmul.mubr.bf16.gmra.mrb[0].mxu0 %v2923
  %v2983 = vpop.f32.mrb[0].mxu0
  %v2984 = vadd.f32 0.0, %v2983
  %v2985 = vpop.f32.mrb[0].mxu0
  %v2986 = vpop.f32.mrb[0].mxu0
  %v2987 = vadd.f32 0.0, %v2986
  %v2988 = vpop.f32.mrb[0].mxu0
  %2989 = vdwg.mxu0
  %2990 = vrot.lane.b32.xlu0 %v1111, 56
  %v2991 = vpop.permute.xlu0 %2990
  %2992 = vrot.lane.b32.xlu0 %v1112, 56
  %v2993 = vpop.permute.xlu0 %2992
  %2994 = vrot.lane.b32.xlu0 %v1113, 56
  %v2995 = vpop.permute.xlu0 %2994
  %2996 = vrot.lane.b32.xlu0 %v1114, 56
  %v2997 = vpop.permute.xlu0 %2996
  %v3003 = vsel %vm589, %v2804, 0
  %v3006 = vsel %vm589, %v2805, 0
  %v3009 = vsel %vm589, %v2806, 0
  %v3012 = vsel %vm589, %v2807, 0
  %3014 = vmatprep.subr.bf16.mxu0 0
  %3015 = vmatpush1.bf16.msra.mxu0 %v2991
  %3016 = vmatprep.subr.bf16.mxu0 0
  %3017 = vmatpush1.bf16.msra.mxu0 %v2993
  %3018 = vmatprep.subr.bf16.mxu0 0
  %3019 = vmatpush1.bf16.msra.mxu0 %v2995
  %3020 = vmatprep.subr.bf16.mxu0 0
  %3021 = vmatpush1.bf16.msra.mxu0 %v2997
  %3022 = vmatprep.subr.bf16.mxu0 0
  %3023 = vmatpush1.bf16.msra.mxu0 0
  %3024 = vmatprep.subr.bf16.mxu0 0
  %3025 = vmatpush1.bf16.msra.mxu0 0
  %3026 = vmatprep.subr.bf16.mxu0 0
  %3027 = vmatpush1.bf16.msra.mxu0 0
  %3028 = vmatprep.subr.bf16.mxu0 0
  %3029 = vmatpush1.bf16.msra.mxu0 0
  %3030 = vmatprep.subr.bf16.mxu0 0
  %3031 = vmatpush1.bf16.msra.mxu0 0
  %3032 = vmatprep.subr.bf16.mxu0 0
  %3033 = vmatpush1.bf16.msra.mxu0 0
  %3034 = vmatprep.subr.bf16.mxu0 0
  %3035 = vmatpush1.bf16.msra.mxu0 0
  %3036 = vmatprep.subr.bf16.mxu0 0
  %3037 = vmatpush1.bf16.msra.mxu0 0
  %3038 = vmatprep.subr.bf16.mxu0 0
  %3039 = vmatpush1.bf16.msra.mxu0 0
  %3040 = vmatprep.subr.bf16.mxu0 0
  %3041 = vmatpush1.bf16.msra.mxu0 0
  %3042 = vmatprep.subr.bf16.mxu0 0
  %3043 = vmatpush1.bf16.msra.mxu0 0
  %3044 = vmatprep.subr.bf16.mxu0 0
  %3045 = vmatpush1.bf16.msra.mxu0 0
  %3046 = vmatprep.mubr.bf16.mxu0 0
  %3047 = vmatmul.mubr.bf16.gmra.mrb[0].mxu0 %v3003
  %v3048 = vpop.f32.mrb[0].mxu0
  %v3049 = vadd.f32 0.0, %v3048
  %v3050 = vpop.f32.mrb[0].mxu0
  %v3051 = vpop.f32.mrb[0].mxu0
  %v3052 = vadd.f32 0.0, %v3051
  %v3053 = vpop.f32.mrb[0].mxu0
  %3054 = vmatprep.mubr.bf16.mxu0 0
  %3055 = vmatmul.mubr.bf16.gmra.mrb[0].mxu0 %v3006
  %v3056 = vpop.f32.mrb[0].mxu0
  %v3057 = vadd.f32 0.0, %v3056
  %v3058 = vpop.f32.mrb[0].mxu0
  %v3059 = vpop.f32.mrb[0].mxu0
  %v3060 = vadd.f32 0.0, %v3059
  %v3061 = vpop.f32.mrb[0].mxu0
  %3062 = vmatprep.mubr.bf16.mxu0 0
  %3063 = vmatmul.mubr.bf16.gmra.mrb[0].mxu0 %v3009
  %v3064 = vpop.f32.mrb[0].mxu0
  %v3065 = vadd.f32 0.0, %v3064
  %v3066 = vpop.f32.mrb[0].mxu0
  %v3067 = vpop.f32.mrb[0].mxu0
  %v3068 = vadd.f32 0.0, %v3067
  %v3069 = vpop.f32.mrb[0].mxu0
  %3070 = vmatprep.mubr.bf16.mxu0 0
  %3071 = vmatmul.mubr.bf16.gmra.mrb[0].mxu0 %v3012
  %v3072 = vpop.f32.mrb[0].mxu0
  %v3073 = vadd.f32 0.0, %v3072
  %v3074 = vpop.f32.mrb[0].mxu0
  %v3075 = vpop.f32.mrb[0].mxu0
  %v3076 = vadd.f32 0.0, %v3075
  %v3077 = vpop.f32.mrb[0].mxu0
  %3078 = vdwg.mxu0
  %3079 = vrot.lane.b32.xlu0 %v1115, 56
  %v3080 = vpop.permute.xlu0 %3079
  %3081 = vrot.lane.b32.xlu0 %v1116, 56
  %v3082 = vpop.permute.xlu0 %3081
  %3083 = vrot.lane.b32.xlu0 %v1117, 56
  %v3084 = vpop.permute.xlu0 %3083
  %3085 = vrot.lane.b32.xlu0 %v1118, 56
  %v3086 = vpop.permute.xlu0 %3085
  %v3092 = vsel %vm589, %v2808, 0
  %v3095 = vsel %vm589, %v2809, 0
  %v3098 = vsel %vm589, %v2810, 0
  %v3101 = vsel %vm589, %v2811, 0
  %3103 = vmatprep.subr.bf16.mxu0 0
  %3104 = vmatpush1.bf16.msra.mxu0 %v3080
  %3105 = vmatprep.subr.bf16.mxu0 0
  %3106 = vmatpush1.bf16.msra.mxu0 %v3082
  %3107 = vmatprep.subr.bf16.mxu0 0
  %3108 = vmatpush1.bf16.msra.mxu0 %v3084
  %3109 = vmatprep.subr.bf16.mxu0 0
  %3110 = vmatpush1.bf16.msra.mxu0 %v3086
  %3111 = vmatprep.subr.bf16.mxu0 0
  %3112 = vmatpush1.bf16.msra.mxu0 0
  %3113 = vmatprep.subr.bf16.mxu0 0
  %3114 = vmatpush1.bf16.msra.mxu0 0
  %3115 = vmatprep.subr.bf16.mxu0 0
  %3116 = vmatpush1.bf16.msra.mxu0 0
  %3117 = vmatprep.subr.bf16.mxu0 0
  %3118 = vmatpush1.bf16.msra.mxu0 0
  %3119 = vmatprep.subr.bf16.mxu0 0
  %3120 = vmatpush1.bf16.msra.mxu0 0
  %3121 = vmatprep.subr.bf16.mxu0 0
  %3122 = vmatpush1.bf16.msra.mxu0 0
  %3123 = vmatprep.subr.bf16.mxu0 0
  %3124 = vmatpush1.bf16.msra.mxu0 0
  %3125 = vmatprep.subr.bf16.mxu0 0
  %3126 = vmatpush1.bf16.msra.mxu0 0
  %3127 = vmatprep.subr.bf16.mxu0 0
  %3128 = vmatpush1.bf16.msra.mxu0 0
  %3129 = vmatprep.subr.bf16.mxu0 0
  %3130 = vmatpush1.bf16.msra.mxu0 0
  %3131 = vmatprep.subr.bf16.mxu0 0
  %3132 = vmatpush1.bf16.msra.mxu0 0
  %3133 = vmatprep.subr.bf16.mxu0 0
  %3134 = vmatpush1.bf16.msra.mxu0 0
  %3135 = vmatprep.mubr.bf16.mxu0 0
  %3136 = vmatmul.mubr.bf16.gmra.mrb[0].mxu0 %v3092
  %v3137 = vpop.f32.mrb[0].mxu0
  %v3138 = vadd.f32 0.0, %v3137
  %v3139 = vpop.f32.mrb[0].mxu0
  %v3140 = vpop.f32.mrb[0].mxu0
  %v3141 = vadd.f32 0.0, %v3140
  %v3142 = vpop.f32.mrb[0].mxu0
  %3143 = vmatprep.mubr.bf16.mxu0 0
  %3144 = vmatmul.mubr.bf16.gmra.mrb[0].mxu0 %v3095
  %v3145 = vpop.f32.mrb[0].mxu0
  %v3146 = vadd.f32 0.0, %v3145
  %v3147 = vpop.f32.mrb[0].mxu0
  %v3148 = vpop.f32.mrb[0].mxu0
  %v3149 = vadd.f32 0.0, %v3148
  %v3150 = vpop.f32.mrb[0].mxu0
  %3151 = vmatprep.mubr.bf16.mxu0 0
  %3152 = vmatmul.mubr.bf16.gmra.mrb[0].mxu0 %v3098
  %v3153 = vpop.f32.mrb[0].mxu0
  %v3154 = vadd.f32 0.0, %v3153
  %v3155 = vpop.f32.mrb[0].mxu0
  %v3156 = vpop.f32.mrb[0].mxu0
  %v3157 = vadd.f32 0.0, %v3156
  %v3158 = vpop.f32.mrb[0].mxu0
  %3159 = vmatprep.mubr.bf16.mxu0 0
  %3160 = vmatmul.mubr.bf16.gmra.mrb[0].mxu0 %v3101
  %v3161 = vpop.f32.mrb[0].mxu0
  %v3162 = vadd.f32 0.0, %v3161
  %v3163 = vpop.f32.mrb[0].mxu0
  %v3164 = vpop.f32.mrb[0].mxu0
  %v3165 = vadd.f32 0.0, %v3164
  %v3166 = vpop.f32.mrb[0].mxu0
  %3167 = vdwg.mxu0
  %3168 = vrot.lane.b32.xlu0 %v1071, 112
  %v3169 = vpop.permute.xlu0 %3168
  %3170 = vrot.lane.b32.xlu0 %v1072, 112
  %v3171 = vpop.permute.xlu0 %3170
  %3172 = vrot.lane.b32.xlu0 %v1073, 112
  %v3173 = vpop.permute.xlu0 %3172
  %3174 = vrot.lane.b32.xlu0 %v1074, 112
  %v3175 = vpop.permute.xlu0 %3174
  %3176 = vrot.lane.b32.xlu0 %v1087, 80
  %v3177 = vpop.permute.xlu0 %3176
  %3178 = vrot.lane.b32.xlu0 %v1088, 80
  %v3179 = vpop.permute.xlu0 %3178
  %3180 = vrot.lane.b32.xlu0 %v1089, 80
  %v3181 = vpop.permute.xlu0 %3180
  %3182 = vrot.lane.b32.xlu0 %v1090, 80
  %v3183 = vpop.permute.xlu0 %3182
  %v3185 = vsel %vm1131, %v3169, 0
  %v3188 = vsel %vm1131, %v3171, 0
  %v3191 = vsel %vm1131, %v3173, 0
  %v3194 = vsel %vm1131, %v3175, 0
  %v3197 = vsel %vm1131, %v3177, 0
  %v3200 = vsel %vm1131, %v3179, 0
  %v3203 = vsel %vm1131, %v3181, 0
  %v3206 = vsel %vm1131, %v3183, 0
  %3208 = vmatprep.subr.bf16.mxu0 0
  %3209 = vmatpush1.bf16.xpose.msra.mxu0 %v3197
  %3210 = vmatprep.subr.bf16.mxu0 0
  %3211 = vmatpush1.bf16.xpose.msra.mxu0 %v3200
  %3212 = vmatprep.subr.bf16.mxu0 0
  %3213 = vmatpush1.bf16.xpose.msra.mxu0 %v3203
  %3214 = vmatprep.subr.bf16.mxu0 0
  %3215 = vmatpush1.bf16.xpose.msra.mxu0 %v3206
  %3216 = vmatprep.subr.bf16.mxu0 0
  %3217 = vmatpush1.bf16.xpose.msra.mxu0 0
  %3218 = vmatprep.subr.bf16.mxu0 0
  %3219 = vmatpush1.bf16.xpose.msra.mxu0 0
  %3220 = vmatprep.subr.bf16.mxu0 0
  %3221 = vmatpush1.bf16.xpose.msra.mxu0 0
  %3222 = vmatprep.subr.bf16.mxu0 0
  %3223 = vmatpush1.bf16.xpose.msra.mxu0 0
  %3224 = vmatprep.subr.bf16.mxu0 0
  %3225 = vmatpush1.bf16.xpose.msra.mxu0 0
  %3226 = vmatprep.subr.bf16.mxu0 0
  %3227 = vmatpush1.bf16.xpose.msra.mxu0 0
  %3228 = vmatprep.subr.bf16.mxu0 0
  %3229 = vmatpush1.bf16.xpose.msra.mxu0 0
  %3230 = vmatprep.subr.bf16.mxu0 0
  %3231 = vmatpush1.bf16.xpose.msra.mxu0 0
  %3232 = vmatprep.subr.bf16.mxu0 0
  %3233 = vmatpush1.bf16.xpose.msra.mxu0 0
  %3234 = vmatprep.subr.bf16.mxu0 0
  %3235 = vmatpush1.bf16.xpose.msra.mxu0 0
  %3236 = vmatprep.subr.bf16.mxu0 0
  %3237 = vmatpush1.bf16.xpose.msra.mxu0 0
  %3238 = vmatprep.subr.bf16.mxu0 0
  %3239 = vmatpush1.bf16.xpose.msra.mxu0 0
  %3240 = vmatprep.mubr.bf16.mxu0 0
  %3241 = vmatmul.mubr.bf16.gmra.mrb[0].mxu0 %v3185
  %v3242 = vpop.f32.mrb[0].mxu0
  %v3243 = vadd.f32 0.0, %v3242
  %v3244 = vpop.f32.mrb[0].mxu0
  %v3245 = vpop.f32.mrb[0].mxu0
  %v3246 = vadd.f32 0.0, %v3245
  %v3247 = vpop.f32.mrb[0].mxu0
  %3248 = vmatprep.mubr.bf16.mxu0 0
  %3249 = vmatmul.mubr.bf16.gmra.mrb[0].mxu0 %v3188
  %v3250 = vpop.f32.mrb[0].mxu0
  %v3251 = vadd.f32 0.0, %v3250
  %v3252 = vpop.f32.mrb[0].mxu0
  %v3253 = vpop.f32.mrb[0].mxu0
  %v3254 = vadd.f32 0.0, %v3253
  %v3255 = vpop.f32.mrb[0].mxu0
  %3256 = vmatprep.mubr.bf16.mxu0 0
  %3257 = vmatmul.mubr.bf16.gmra.mrb[0].mxu0 %v3191
  %v3258 = vpop.f32.mrb[0].mxu0
  %v3259 = vadd.f32 0.0, %v3258
  %v3260 = vpop.f32.mrb[0].mxu0
  %v3261 = vpop.f32.mrb[0].mxu0
  %v3262 = vadd.f32 0.0, %v3261
  %v3263 = vpop.f32.mrb[0].mxu0
  %3264 = vmatprep.mubr.bf16.mxu0 0
  %3265 = vmatmul.mubr.bf16.gmra.mrb[0].mxu0 %v3194
  %v3266 = vpop.f32.mrb[0].mxu0
  %v3267 = vadd.f32 0.0, %v3266
  %v3268 = vpop.f32.mrb[0].mxu0
  %v3269 = vpop.f32.mrb[0].mxu0
  %v3270 = vadd.f32 0.0, %v3269
  %v3271 = vpop.f32.mrb[0].mxu0
  %3272 = vdwg.mxu0
  %3273 = vrot.lane.b32.xlu0 %v1075, 112
  %v3274 = vpop.permute.xlu0 %3273
  %3275 = vrot.lane.b32.xlu0 %v1076, 112
  %v3276 = vpop.permute.xlu0 %3275
  %3277 = vrot.lane.b32.xlu0 %v1077, 112
  %v3278 = vpop.permute.xlu0 %3277
  %3279 = vrot.lane.b32.xlu0 %v1078, 112
  %v3280 = vpop.permute.xlu0 %3279
  %3281 = vrot.lane.b32.xlu0 %v1091, 80
  %v3282 = vpop.permute.xlu0 %3281
  %3283 = vrot.lane.b32.xlu0 %v1092, 80
  %v3284 = vpop.permute.xlu0 %3283
  %3285 = vrot.lane.b32.xlu0 %v1093, 80
  %v3286 = vpop.permute.xlu0 %3285
  %3287 = vrot.lane.b32.xlu0 %v1094, 80
  %v3288 = vpop.permute.xlu0 %3287
  %v3290 = vsel %vm1131, %v3274, 0
  %v3293 = vsel %vm1131, %v3276, 0
  %v3296 = vsel %vm1131, %v3278, 0
  %v3299 = vsel %vm1131, %v3280, 0
  %v3302 = vsel %vm1131, %v3282, 0
  %v3305 = vsel %vm1131, %v3284, 0
  %v3308 = vsel %vm1131, %v3286, 0
  %v3311 = vsel %vm1131, %v3288, 0
  %3313 = vmatprep.subr.bf16.mxu0 0
  %3314 = vmatpush1.bf16.xpose.msra.mxu0 %v3302
  %3315 = vmatprep.subr.bf16.mxu0 0
  %3316 = vmatpush1.bf16.xpose.msra.mxu0 %v3305
  %3317 = vmatprep.subr.bf16.mxu0 0
  %3318 = vmatpush1.bf16.xpose.msra.mxu0 %v3308
  %3319 = vmatprep.subr.bf16.mxu0 0
  %3320 = vmatpush1.bf16.xpose.msra.mxu0 %v3311
  %3321 = vmatprep.subr.bf16.mxu0 0
  %3322 = vmatpush1.bf16.xpose.msra.mxu0 0
  %3323 = vmatprep.subr.bf16.mxu0 0
  %3324 = vmatpush1.bf16.xpose.msra.mxu0 0
  %3325 = vmatprep.subr.bf16.mxu0 0
  %3326 = vmatpush1.bf16.xpose.msra.mxu0 0
  %3327 = vmatprep.subr.bf16.mxu0 0
  %3328 = vmatpush1.bf16.xpose.msra.mxu0 0
  %3329 = vmatprep.subr.bf16.mxu0 0
  %3330 = vmatpush1.bf16.xpose.msra.mxu0 0
  %3331 = vmatprep.subr.bf16.mxu0 0
  %3332 = vmatpush1.bf16.xpose.msra.mxu0 0
  %3333 = vmatprep.subr.bf16.mxu0 0
  %3334 = vmatpush1.bf16.xpose.msra.mxu0 0
  %3335 = vmatprep.subr.bf16.mxu0 0
  %3336 = vmatpush1.bf16.xpose.msra.mxu0 0
  %3337 = vmatprep.subr.bf16.mxu0 0
  %3338 = vmatpush1.bf16.xpose.msra.mxu0 0
  %3339 = vmatprep.subr.bf16.mxu0 0
  %3340 = vmatpush1.bf16.xpose.msra.mxu0 0
  %3341 = vmatprep.subr.bf16.mxu0 0
  %3342 = vmatpush1.bf16.xpose.msra.mxu0 0
  %3343 = vmatprep.subr.bf16.mxu0 0
  %3344 = vmatpush1.bf16.xpose.msra.mxu0 0
  %3345 = vmatprep.mubr.bf16.mxu0 0
  %3346 = vmatmul.mubr.bf16.gmra.mrb[0].mxu0 %v3290
  %v3347 = vpop.f32.mrb[0].mxu0
  %v3348 = vadd.f32 0.0, %v3347
  %v3349 = vpop.f32.mrb[0].mxu0
  %v3350 = vpop.f32.mrb[0].mxu0
  %v3351 = vadd.f32 0.0, %v3350
  %v3352 = vpop.f32.mrb[0].mxu0
  %3353 = vmatprep.mubr.bf16.mxu0 0
  %3354 = vmatmul.mubr.bf16.gmra.mrb[0].mxu0 %v3293
  %v3355 = vpop.f32.mrb[0].mxu0
  %v3356 = vadd.f32 0.0, %v3355
  %v3357 = vpop.f32.mrb[0].mxu0
  %v3358 = vpop.f32.mrb[0].mxu0
  %v3359 = vadd.f32 0.0, %v3358
  %v3360 = vpop.f32.mrb[0].mxu0
  %3361 = vmatprep.mubr.bf16.mxu0 0
  %3362 = vmatmul.mubr.bf16.gmra.mrb[0].mxu0 %v3296
  %v3363 = vpop.f32.mrb[0].mxu0
  %v3364 = vadd.f32 0.0, %v3363
  %v3365 = vpop.f32.mrb[0].mxu0
  %v3366 = vpop.f32.mrb[0].mxu0
  %v3367 = vadd.f32 0.0, %v3366
  %v3368 = vpop.f32.mrb[0].mxu0
  %3369 = vmatprep.mubr.bf16.mxu0 0
  %3370 = vmatmul.mubr.bf16.gmra.mrb[0].mxu0 %v3299
  %v3371 = vpop.f32.mrb[0].mxu0
  %v3372 = vadd.f32 0.0, %v3371
  %v3373 = vpop.f32.mrb[0].mxu0
  %v3374 = vpop.f32.mrb[0].mxu0
  %v3375 = vadd.f32 0.0, %v3374
  %v3376 = vpop.f32.mrb[0].mxu0
  %3377 = vdwg.mxu0
  %3378 = vrot.lane.b32.xlu0 %v1079, 112
  %v3379 = vpop.permute.xlu0 %3378
  %3380 = vrot.lane.b32.xlu0 %v1080, 112
  %v3381 = vpop.permute.xlu0 %3380
  %3382 = vrot.lane.b32.xlu0 %v1081, 112
  %v3383 = vpop.permute.xlu0 %3382
  %3384 = vrot.lane.b32.xlu0 %v1082, 112
  %v3385 = vpop.permute.xlu0 %3384
  %3386 = vrot.lane.b32.xlu0 %v1095, 80
  %v3387 = vpop.permute.xlu0 %3386
  %3388 = vrot.lane.b32.xlu0 %v1096, 80
  %v3389 = vpop.permute.xlu0 %3388
  %3390 = vrot.lane.b32.xlu0 %v1097, 80
  %v3391 = vpop.permute.xlu0 %3390
  %3392 = vrot.lane.b32.xlu0 %v1098, 80
  %v3393 = vpop.permute.xlu0 %3392
  %v3395 = vsel %vm1131, %v3379, 0
  %v3398 = vsel %vm1131, %v3381, 0
  %v3401 = vsel %vm1131, %v3383, 0
  %v3404 = vsel %vm1131, %v3385, 0
  %v3407 = vsel %vm1131, %v3387, 0
  %v3410 = vsel %vm1131, %v3389, 0
  %v3413 = vsel %vm1131, %v3391, 0
  %v3416 = vsel %vm1131, %v3393, 0
  %3418 = vmatprep.subr.bf16.mxu0 0
  %3419 = vmatpush1.bf16.xpose.msra.mxu0 %v3407
  %3420 = vmatprep.subr.bf16.mxu0 0
  %3421 = vmatpush1.bf16.xpose.msra.mxu0 %v3410
  %3422 = vmatprep.subr.bf16.mxu0 0
  %3423 = vmatpush1.bf16.xpose.msra.mxu0 %v3413
  %3424 = vmatprep.subr.bf16.mxu0 0
  %3425 = vmatpush1.bf16.xpose.msra.mxu0 %v3416
  %3426 = vmatprep.subr.bf16.mxu0 0
  %3427 = vmatpush1.bf16.xpose.msra.mxu0 0
  %3428 = vmatprep.subr.bf16.mxu0 0
  %3429 = vmatpush1.bf16.xpose.msra.mxu0 0
  %3430 = vmatprep.subr.bf16.mxu0 0
  %3431 = vmatpush1.bf16.xpose.msra.mxu0 0
  %3432 = vmatprep.subr.bf16.mxu0 0
  %3433 = vmatpush1.bf16.xpose.msra.mxu0 0
  %3434 = vmatprep.subr.bf16.mxu0 0
  %3435 = vmatpush1.bf16.xpose.msra.mxu0 0
  %3436 = vmatprep.subr.bf16.mxu0 0
  %3437 = vmatpush1.bf16.xpose.msra.mxu0 0
  %3438 = vmatprep.subr.bf16.mxu0 0
  %3439 = vmatpush1.bf16.xpose.msra.mxu0 0
  %3440 = vmatprep.subr.bf16.mxu0 0
  %3441 = vmatpush1.bf16.xpose.msra.mxu0 0
  %3442 = vmatprep.subr.bf16.mxu0 0
  %3443 = vmatpush1.bf16.xpose.msra.mxu0 0
  %3444 = vmatprep.subr.bf16.mxu0 0
  %3445 = vmatpush1.bf16.xpose.msra.mxu0 0
  %3446 = vmatprep.subr.bf16.mxu0 0
  %3447 = vmatpush1.bf16.xpose.msra.mxu0 0
  %3448 = vmatprep.subr.bf16.mxu0 0
  %3449 = vmatpush1.bf16.xpose.msra.mxu0 0
  %3450 = vmatprep.mubr.bf16.mxu0 0
  %3451 = vmatmul.mubr.bf16.gmra.mrb[0].mxu0 %v3395
  %v3452 = vpop.f32.mrb[0].mxu0
  %v3453 = vadd.f32 0.0, %v3452
  %v3454 = vpop.f32.mrb[0].mxu0
  %v3455 = vpop.f32.mrb[0].mxu0
  %v3456 = vadd.f32 0.0, %v3455
  %v3457 = vpop.f32.mrb[0].mxu0
  %3458 = vmatprep.mubr.bf16.mxu0 0
  %3459 = vmatmul.mubr.bf16.gmra.mrb[0].mxu0 %v3398
  %v3460 = vpop.f32.mrb[0].mxu0
  %v3461 = vadd.f32 0.0, %v3460
  %v3462 = vpop.f32.mrb[0].mxu0
  %v3463 = vpop.f32.mrb[0].mxu0
  %v3464 = vadd.f32 0.0, %v3463
  %v3465 = vpop.f32.mrb[0].mxu0
  %3466 = vmatprep.mubr.bf16.mxu0 0
  %3467 = vmatmul.mubr.bf16.gmra.mrb[0].mxu0 %v3401
  %v3468 = vpop.f32.mrb[0].mxu0
  %v3469 = vadd.f32 0.0, %v3468
  %v3470 = vpop.f32.mrb[0].mxu0
  %v3471 = vpop.f32.mrb[0].mxu0
  %v3472 = vadd.f32 0.0, %v3471
  %v3473 = vpop.f32.mrb[0].mxu0
  %3474 = vmatprep.mubr.bf16.mxu0 0
  %3475 = vmatmul.mubr.bf16.gmra.mrb[0].mxu0 %v3404
  %v3476 = vpop.f32.mrb[0].mxu0
  %v3477 = vadd.f32 0.0, %v3476
  %v3478 = vpop.f32.mrb[0].mxu0
  %v3479 = vpop.f32.mrb[0].mxu0
  %v3480 = vadd.f32 0.0, %v3479
  %v3481 = vpop.f32.mrb[0].mxu0
  %3482 = vdwg.mxu0
  %3483 = vrot.lane.b32.xlu0 %v1083, 112
  %v3484 = vpop.permute.xlu0 %3483
  %3485 = vrot.lane.b32.xlu0 %v1084, 112
  %v3486 = vpop.permute.xlu0 %3485
  %3487 = vrot.lane.b32.xlu0 %v1085, 112
  %v3488 = vpop.permute.xlu0 %3487
  %3489 = vrot.lane.b32.xlu0 %v1086, 112
  %v3490 = vpop.permute.xlu0 %3489
  %3491 = vrot.lane.b32.xlu0 %v1099, 80
  %v3492 = vpop.permute.xlu0 %3491
  %3493 = vrot.lane.b32.xlu0 %v1100, 80
  %v3494 = vpop.permute.xlu0 %3493
  %3495 = vrot.lane.b32.xlu0 %v1101, 80
  %v3496 = vpop.permute.xlu0 %3495
  %3497 = vrot.lane.b32.xlu0 %v1102, 80
  %v3498 = vpop.permute.xlu0 %3497
  %v3500 = vsel %vm1131, %v3484, 0
  %v3503 = vsel %vm1131, %v3486, 0
  %v3506 = vsel %vm1131, %v3488, 0
  %v3509 = vsel %vm1131, %v3490, 0
  %v3512 = vsel %vm1131, %v3492, 0
  %v3515 = vsel %vm1131, %v3494, 0
  %v3518 = vsel %vm1131, %v3496, 0
  %v3521 = vsel %vm1131, %v3498, 0
  %3523 = vmatprep.subr.bf16.mxu0 0
  %3524 = vmatpush1.bf16.xpose.msra.mxu0 %v3512
  %3525 = vmatprep.subr.bf16.mxu0 0
  %3526 = vmatpush1.bf16.xpose.msra.mxu0 %v3515
  %3527 = vmatprep.subr.bf16.mxu0 0
  %3528 = vmatpush1.bf16.xpose.msra.mxu0 %v3518
  %3529 = vmatprep.subr.bf16.mxu0 0
  %3530 = vmatpush1.bf16.xpose.msra.mxu0 %v3521
  %3531 = vmatprep.subr.bf16.mxu0 0
  %3532 = vmatpush1.bf16.xpose.msra.mxu0 0
  %3533 = vmatprep.subr.bf16.mxu0 0
  %3534 = vmatpush1.bf16.xpose.msra.mxu0 0
  %3535 = vmatprep.subr.bf16.mxu0 0
  %3536 = vmatpush1.bf16.xpose.msra.mxu0 0
  %3537 = vmatprep.subr.bf16.mxu0 0
  %3538 = vmatpush1.bf16.xpose.msra.mxu0 0
  %3539 = vmatprep.subr.bf16.mxu0 0
  %3540 = vmatpush1.bf16.xpose.msra.mxu0 0
  %3541 = vmatprep.subr.bf16.mxu0 0
  %3542 = vmatpush1.bf16.xpose.msra.mxu0 0
  %3543 = vmatprep.subr.bf16.mxu0 0
  %3544 = vmatpush1.bf16.xpose.msra.mxu0 0
  %3545 = vmatprep.subr.bf16.mxu0 0
  %3546 = vmatpush1.bf16.xpose.msra.mxu0 0
  %3547 = vmatprep.subr.bf16.mxu0 0
  %3548 = vmatpush1.bf16.xpose.msra.mxu0 0
  %3549 = vmatprep.subr.bf16.mxu0 0
  %3550 = vmatpush1.bf16.xpose.msra.mxu0 0
  %3551 = vmatprep.subr.bf16.mxu0 0
  %3552 = vmatpush1.bf16.xpose.msra.mxu0 0
  %3553 = vmatprep.subr.bf16.mxu0 0
  %3554 = vmatpush1.bf16.xpose.msra.mxu0 0
  %3555 = vmatprep.mubr.bf16.mxu0 0
  %3556 = vmatmul.mubr.bf16.gmra.mrb[0].mxu0 %v3500
  %v3557 = vpop.f32.mrb[0].mxu0
  %v3558 = vadd.f32 0.0, %v3557
  %v3559 = vpop.f32.mrb[0].mxu0
  %v3560 = vpop.f32.mrb[0].mxu0
  %v3561 = vadd.f32 0.0, %v3560
  %v3562 = vpop.f32.mrb[0].mxu0
  %3563 = vmatprep.mubr.bf16.mxu0 0
  %3564 = vmatmul.mubr.bf16.gmra.mrb[0].mxu0 %v3503
  %v3565 = vpop.f32.mrb[0].mxu0
  %v3566 = vadd.f32 0.0, %v3565
  %v3567 = vpop.f32.mrb[0].mxu0
  %v3568 = vpop.f32.mrb[0].mxu0
  %v3569 = vadd.f32 0.0, %v3568
  %v3570 = vpop.f32.mrb[0].mxu0
  %3571 = vmatprep.mubr.bf16.mxu0 0
  %3572 = vmatmul.mubr.bf16.gmra.mrb[0].mxu0 %v3506
  %v3573 = vpop.f32.mrb[0].mxu0
  %v3574 = vadd.f32 0.0, %v3573
  %v3575 = vpop.f32.mrb[0].mxu0
  %v3576 = vpop.f32.mrb[0].mxu0
  %v3577 = vadd.f32 0.0, %v3576
  %v3578 = vpop.f32.mrb[0].mxu0
  %3579 = vmatprep.mubr.bf16.mxu0 0
  %3580 = vmatmul.mubr.bf16.gmra.mrb[0].mxu0 %v3509
  %v3581 = vpop.f32.mrb[0].mxu0
  %v3582 = vadd.f32 0.0, %v3581
  %v3583 = vpop.f32.mrb[0].mxu0
  %v3584 = vpop.f32.mrb[0].mxu0
  %v3585 = vadd.f32 0.0, %v3584
  %v3586 = vpop.f32.mrb[0].mxu0
  %3587 = vdwg.mxu0
  %v3588 = vmul.f32 %v3243, 1.442695
  %v3589 = vpow.pop %v3588
  %v3590 = vmul.f32 %v3246, 1.442695
  %v3591 = vpow.pop %v3590
  %v3592 = vmul.f32 %v3251, 1.442695
  %v3593 = vpow.pop %v3592
  %v3594 = vmul.f32 %v3254, 1.442695
  %v3595 = vpow.pop %v3594
  %v3596 = vmul.f32 %v3259, 1.442695
  %v3597 = vpow.pop %v3596
  %v3598 = vmul.f32 %v3262, 1.442695
  %v3599 = vpow.pop %v3598
  %v3600 = vmul.f32 %v3267, 1.442695
  %v3601 = vpow.pop %v3600
  %v3602 = vmul.f32 %v3270, 1.442695
  %v3603 = vpow.pop %v3602
  %v3604 = vmul.f32 %v3348, 1.442695
  %v3605 = vpow.pop %v3604
  %v3606 = vmul.f32 %v3351, 1.442695
  %v3607 = vpow.pop %v3606
  %v3608 = vmul.f32 %v3356, 1.442695
  %v3609 = vpow.pop %v3608
  %v3610 = vmul.f32 %v3359, 1.442695
  %v3611 = vpow.pop %v3610
  %v3612 = vmul.f32 %v3364, 1.442695
  %v3613 = vpow.pop %v3612
  %v3614 = vmul.f32 %v3367, 1.442695
  %v3615 = vpow.pop %v3614
  %v3616 = vmul.f32 %v3372, 1.442695
  %v3617 = vpow.pop %v3616
  %v3618 = vmul.f32 %v3375, 1.442695
  %v3619 = vpow.pop %v3618
  %v3620 = vmul.f32 %v3453, 1.442695
  %v3621 = vpow.pop %v3620
  %v3622 = vmul.f32 %v3456, 1.442695
  %v3623 = vpow.pop %v3622
  %v3624 = vmul.f32 %v3461, 1.442695
  %v3625 = vpow.pop %v3624
  %v3626 = vmul.f32 %v3464, 1.442695
  %v3627 = vpow.pop %v3626
  %v3628 = vmul.f32 %v3469, 1.442695
  %v3629 = vpow.pop %v3628
  %v3630 = vmul.f32 %v3472, 1.442695
  %v3631 = vpow.pop %v3630
  %v3632 = vmul.f32 %v3477, 1.442695
  %v3633 = vpow.pop %v3632
  %v3634 = vmul.f32 %v3480, 1.442695
  %v3635 = vpow.pop %v3634
  %v3636 = vmul.f32 %v3558, 1.442695
  %v3637 = vpow.pop %v3636
  %v3638 = vmul.f32 %v3561, 1.442695
  %v3639 = vpow.pop %v3638
  %v3640 = vmul.f32 %v3566, 1.442695
  %v3641 = vpow.pop %v3640
  %v3642 = vmul.f32 %v3569, 1.442695
  %v3643 = vpow.pop %v3642
  %v3644 = vmul.f32 %v3574, 1.442695
  %v3645 = vpow.pop %v3644
  %v3646 = vmul.f32 %v3577, 1.442695
  %v3647 = vpow.pop %v3646
  %v3648 = vmul.f32 %v3582, 1.442695
  %v3649 = vpow.pop %v3648
  %v3650 = vmul.f32 %v3585, 1.442695
  %v3651 = vpow.pop %v3650
  %v3652 = vsel %vm589, %v3589, 0.0
  %3653 = vadd.xlane.f32.xlu0 %v3652
  %v3654 = vpop.xlane.xlu0 %3653
  %v3655 = vsel %vm589, %v3591, 0.0
  %3656 = vadd.xlane.f32.xlu0 %v3655
  %v3657 = vpop.xlane.xlu0 %3656
  %v3658 = vsel %vm589, %v3593, 0.0
  %3659 = vadd.xlane.f32.xlu0 %v3658
  %v3660 = vpop.xlane.xlu0 %3659
  %v3661 = vsel %vm589, %v3595, 0.0
  %3662 = vadd.xlane.f32.xlu0 %v3661
  %v3663 = vpop.xlane.xlu0 %3662
  %v3664 = vsel %vm589, %v3597, 0.0
  %3665 = vadd.xlane.f32.xlu0 %v3664
  %v3666 = vpop.xlane.xlu0 %3665
  %v3667 = vsel %vm589, %v3599, 0.0
  %3668 = vadd.xlane.f32.xlu0 %v3667
  %v3669 = vpop.xlane.xlu0 %3668
  %v3670 = vsel %vm589, %v3601, 0.0
  %3671 = vadd.xlane.f32.xlu0 %v3670
  %v3672 = vpop.xlane.xlu0 %3671
  %v3673 = vsel %vm589, %v3603, 0.0
  %3674 = vadd.xlane.f32.xlu0 %v3673
  %v3675 = vpop.xlane.xlu0 %3674
  %v3676 = vsel %vm589, %v3605, 0.0
  %3677 = vadd.xlane.f32.xlu0 %v3676
  %v3678 = vpop.xlane.xlu0 %3677
  %v3679 = vsel %vm589, %v3607, 0.0
  %3680 = vadd.xlane.f32.xlu0 %v3679
  %v3681 = vpop.xlane.xlu0 %3680
  %v3682 = vsel %vm589, %v3609, 0.0
  %3683 = vadd.xlane.f32.xlu0 %v3682
  %v3684 = vpop.xlane.xlu0 %3683
  %v3685 = vsel %vm589, %v3611, 0.0
  %3686 = vadd.xlane.f32.xlu0 %v3685
  %v3687 = vpop.xlane.xlu0 %3686
  %v3688 = vsel %vm589, %v3613, 0.0
  %3689 = vadd.xlane.f32.xlu0 %v3688
  %v3690 = vpop.xlane.xlu0 %3689
  %v3691 = vsel %vm589, %v3615, 0.0
  %3692 = vadd.xlane.f32.xlu0 %v3691
  %v3693 = vpop.xlane.xlu0 %3692
  %v3694 = vsel %vm589, %v3617, 0.0
  %3695 = vadd.xlane.f32.xlu0 %v3694
  %v3696 = vpop.xlane.xlu0 %3695
  %v3697 = vsel %vm589, %v3619, 0.0
  %3698 = vadd.xlane.f32.xlu0 %v3697
  %v3699 = vpop.xlane.xlu0 %3698
  %v3700 = vsel %vm589, %v3621, 0.0
  %3701 = vadd.xlane.f32.xlu0 %v3700
  %v3702 = vpop.xlane.xlu0 %3701
  %v3703 = vsel %vm589, %v3623, 0.0
  %3704 = vadd.xlane.f32.xlu0 %v3703
  %v3705 = vpop.xlane.xlu0 %3704
  %v3706 = vsel %vm589, %v3625, 0.0
  %3707 = vadd.xlane.f32.xlu0 %v3706
  %v3708 = vpop.xlane.xlu0 %3707
  %v3709 = vsel %vm589, %v3627, 0.0
  %3710 = vadd.xlane.f32.xlu0 %v3709
  %v3711 = vpop.xlane.xlu0 %3710
  %v3712 = vsel %vm589, %v3629, 0.0
  %3713 = vadd.xlane.f32.xlu0 %v3712
  %v3714 = vpop.xlane.xlu0 %3713
  %v3715 = vsel %vm589, %v3631, 0.0
  %3716 = vadd.xlane.f32.xlu0 %v3715
  %v3717 = vpop.xlane.xlu0 %3716
  %v3718 = vsel %vm589, %v3633, 0.0
  %3719 = vadd.xlane.f32.xlu0 %v3718
  %v3720 = vpop.xlane.xlu0 %3719
  %v3721 = vsel %vm589, %v3635, 0.0
  %3722 = vadd.xlane.f32.xlu0 %v3721
  %v3723 = vpop.xlane.xlu0 %3722
  %v3724 = vsel %vm589, %v3637, 0.0
  %3725 = vadd.xlane.f32.xlu0 %v3724
  %v3726 = vpop.xlane.xlu0 %3725
  %v3727 = vsel %vm589, %v3639, 0.0
  %3728 = vadd.xlane.f32.xlu0 %v3727
  %v3729 = vpop.xlane.xlu0 %3728
  %v3730 = vsel %vm589, %v3641, 0.0
  %3731 = vadd.xlane.f32.xlu0 %v3730
  %v3732 = vpop.xlane.xlu0 %3731
  %v3733 = vsel %vm589, %v3643, 0.0
  %3734 = vadd.xlane.f32.xlu0 %v3733
  %v3735 = vpop.xlane.xlu0 %3734
  %v3736 = vsel %vm589, %v3645, 0.0
  %3737 = vadd.xlane.f32.xlu0 %v3736
  %v3738 = vpop.xlane.xlu0 %3737
  %v3739 = vsel %vm589, %v3647, 0.0
  %3740 = vadd.xlane.f32.xlu0 %v3739
  %v3741 = vpop.xlane.xlu0 %3740
  %v3742 = vsel %vm589, %v3649, 0.0
  %3743 = vadd.xlane.f32.xlu0 %v3742
  %v3744 = vpop.xlane.xlu0 %3743
  %v3745 = vsel %vm589, %v3651, 0.0
  %3746 = vadd.xlane.f32.xlu0 %v3745
  %v3747 = vpop.xlane.xlu0 %3746
  %v3748 = vrcp.pop %v3654
  %v3749 = vrcp.pop %v3657
  %v3750 = vrcp.pop %v3660
  %v3751 = vrcp.pop %v3663
  %v3752 = vrcp.pop %v3666
  %v3753 = vrcp.pop %v3669
  %v3754 = vrcp.pop %v3672
  %v3755 = vrcp.pop %v3675
  %v3756 = vrcp.pop %v3678
  %v3757 = vrcp.pop %v3681
  %v3758 = vrcp.pop %v3684
  %v3759 = vrcp.pop %v3687
  %v3760 = vrcp.pop %v3690
  %v3761 = vrcp.pop %v3693
  %v3762 = vrcp.pop %v3696
  %v3763 = vrcp.pop %v3699
  %v3764 = vrcp.pop %v3702
  %v3765 = vrcp.pop %v3705
  %v3766 = vrcp.pop %v3708
  %v3767 = vrcp.pop %v3711
  %v3768 = vrcp.pop %v3714
  %v3769 = vrcp.pop %v3717
  %v3770 = vrcp.pop %v3720
  %v3771 = vrcp.pop %v3723
  %v3772 = vrcp.pop %v3726
  %v3773 = vrcp.pop %v3729
  %v3774 = vrcp.pop %v3732
  %v3775 = vrcp.pop %v3735
  %v3776 = vrcp.pop %v3738
  %v3777 = vrcp.pop %v3741
  %v3778 = vrcp.pop %v3744
  %v3779 = vrcp.pop %v3747
  %v3780 = vmul.f32 %v3589, %v3748
  %v3781 = vmul.f32 %v3591, %v3749
  %v3782 = vmul.f32 %v3593, %v3750
  %v3783 = vmul.f32 %v3595, %v3751
  %v3784 = vmul.f32 %v3597, %v3752
  %v3785 = vmul.f32 %v3599, %v3753
  %v3786 = vmul.f32 %v3601, %v3754
  %v3787 = vmul.f32 %v3603, %v3755
  %v3788 = vmul.f32 %v3605, %v3756
  %v3789 = vmul.f32 %v3607, %v3757
  %v3790 = vmul.f32 %v3609, %v3758
  %v3791 = vmul.f32 %v3611, %v3759
  %v3792 = vmul.f32 %v3613, %v3760
  %v3793 = vmul.f32 %v3615, %v3761
  %v3794 = vmul.f32 %v3617, %v3762
  %v3795 = vmul.f32 %v3619, %v3763
  %v3796 = vmul.f32 %v3621, %v3764
  %v3797 = vmul.f32 %v3623, %v3765
  %v3798 = vmul.f32 %v3625, %v3766
  %v3799 = vmul.f32 %v3627, %v3767
  %v3800 = vmul.f32 %v3629, %v3768
  %v3801 = vmul.f32 %v3631, %v3769
  %v3802 = vmul.f32 %v3633, %v3770
  %v3803 = vmul.f32 %v3635, %v3771
  %v3804 = vmul.f32 %v3637, %v3772
  %v3805 = vmul.f32 %v3639, %v3773
  %v3806 = vmul.f32 %v3641, %v3774
  %v3807 = vmul.f32 %v3643, %v3775
  %v3808 = vmul.f32 %v3645, %v3776
  %v3809 = vmul.f32 %v3647, %v3777
  %v3810 = vmul.f32 %v3649, %v3778
  %v3811 = vmul.f32 %v3651, %v3779
  %v3812 = vpack.c.bf16 %v3781, %v3780
  %v3813 = vpack.c.bf16 %v3783, %v3782
  %v3814 = vpack.c.bf16 %v3785, %v3784
  %v3815 = vpack.c.bf16 %v3787, %v3786
  %v3816 = vpack.c.bf16 %v3789, %v3788
  %v3817 = vpack.c.bf16 %v3791, %v3790
  %v3818 = vpack.c.bf16 %v3793, %v3792
  %v3819 = vpack.c.bf16 %v3795, %v3794
  %v3820 = vpack.c.bf16 %v3797, %v3796
  %v3821 = vpack.c.bf16 %v3799, %v3798
  %v3822 = vpack.c.bf16 %v3801, %v3800
  %v3823 = vpack.c.bf16 %v3803, %v3802
  %v3824 = vpack.c.bf16 %v3805, %v3804
  %v3825 = vpack.c.bf16 %v3807, %v3806
  %v3826 = vpack.c.bf16 %v3809, %v3808
  %v3827 = vpack.c.bf16 %v3811, %v3810
  %3828 = vrot.lane.b32.xlu0 %v1103, 48
  %v3829 = vpop.permute.xlu0 %3828
  %3830 = vrot.lane.b32.xlu0 %v1104, 48
  %v3831 = vpop.permute.xlu0 %3830
  %3832 = vrot.lane.b32.xlu0 %v1105, 48
  %v3833 = vpop.permute.xlu0 %3832
  %3834 = vrot.lane.b32.xlu0 %v1106, 48
  %v3835 = vpop.permute.xlu0 %3834
  %v3841 = vsel %vm589, %v3812, 0
  %v3844 = vsel %vm589, %v3813, 0
  %v3847 = vsel %vm589, %v3814, 0
  %v3850 = vsel %vm589, %v3815, 0
  %3852 = vmatprep.subr.bf16.mxu0 0
  %3853 = vmatpush1.bf16.msra.mxu0 %v3829
  %3854 = vmatprep.subr.bf16.mxu0 0
  %3855 = vmatpush1.bf16.msra.mxu0 %v3831
  %3856 = vmatprep.subr.bf16.mxu0 0
  %3857 = vmatpush1.bf16.msra.mxu0 %v3833
  %3858 = vmatprep.subr.bf16.mxu0 0
  %3859 = vmatpush1.bf16.msra.mxu0 %v3835
  %3860 = vmatprep.subr.bf16.mxu0 0
  %3861 = vmatpush1.bf16.msra.mxu0 0
  %3862 = vmatprep.subr.bf16.mxu0 0
  %3863 = vmatpush1.bf16.msra.mxu0 0
  %3864 = vmatprep.subr.bf16.mxu0 0
  %3865 = vmatpush1.bf16.msra.mxu0 0
  %3866 = vmatprep.subr.bf16.mxu0 0
  %3867 = vmatpush1.bf16.msra.mxu0 0
  %3868 = vmatprep.subr.bf16.mxu0 0
  %3869 = vmatpush1.bf16.msra.mxu0 0
  %3870 = vmatprep.subr.bf16.mxu0 0
  %3871 = vmatpush1.bf16.msra.mxu0 0
  %3872 = vmatprep.subr.bf16.mxu0 0
  %3873 = vmatpush1.bf16.msra.mxu0 0
  %3874 = vmatprep.subr.bf16.mxu0 0
  %3875 = vmatpush1.bf16.msra.mxu0 0
  %3876 = vmatprep.subr.bf16.mxu0 0
  %3877 = vmatpush1.bf16.msra.mxu0 0
  %3878 = vmatprep.subr.bf16.mxu0 0
  %3879 = vmatpush1.bf16.msra.mxu0 0
  %3880 = vmatprep.subr.bf16.mxu0 0
  %3881 = vmatpush1.bf16.msra.mxu0 0
  %3882 = vmatprep.subr.bf16.mxu0 0
  %3883 = vmatpush1.bf16.msra.mxu0 0
  %3884 = vmatprep.mubr.bf16.mxu0 0
  %3885 = vmatmul.mubr.bf16.gmra.mrb[0].mxu0 %v3841
  %v3886 = vpop.f32.mrb[0].mxu0
  %v3887 = vadd.f32 0.0, %v3886
  %v3888 = vpop.f32.mrb[0].mxu0
  %v3889 = vpop.f32.mrb[0].mxu0
  %v3890 = vadd.f32 0.0, %v3889
  %v3891 = vpop.f32.mrb[0].mxu0
  %3892 = vmatprep.mubr.bf16.mxu0 0
  %3893 = vmatmul.mubr.bf16.gmra.mrb[0].mxu0 %v3844
  %v3894 = vpop.f32.mrb[0].mxu0
  %v3895 = vadd.f32 0.0, %v3894
  %v3896 = vpop.f32.mrb[0].mxu0
  %v3897 = vpop.f32.mrb[0].mxu0
  %v3898 = vadd.f32 0.0, %v3897
  %v3899 = vpop.f32.mrb[0].mxu0
  %3900 = vmatprep.mubr.bf16.mxu0 0
  %3901 = vmatmul.mubr.bf16.gmra.mrb[0].mxu0 %v3847
  %v3902 = vpop.f32.mrb[0].mxu0
  %v3903 = vadd.f32 0.0, %v3902
  %v3904 = vpop.f32.mrb[0].mxu0
  %v3905 = vpop.f32.mrb[0].mxu0
  %v3906 = vadd.f32 0.0, %v3905
  %v3907 = vpop.f32.mrb[0].mxu0
  %3908 = vmatprep.mubr.bf16.mxu0 0
  %3909 = vmatmul.mubr.bf16.gmra.mrb[0].mxu0 %v3850
  %v3910 = vpop.f32.mrb[0].mxu0
  %v3911 = vadd.f32 0.0, %v3910
  %v3912 = vpop.f32.mrb[0].mxu0
  %v3913 = vpop.f32.mrb[0].mxu0
  %v3914 = vadd.f32 0.0, %v3913
  %v3915 = vpop.f32.mrb[0].mxu0
  %3916 = vdwg.mxu0
  %3917 = vrot.lane.b32.xlu0 %v1107, 48
  %v3918 = vpop.permute.xlu0 %3917
  %3919 = vrot.lane.b32.xlu0 %v1108, 48
  %v3920 = vpop.permute.xlu0 %3919
  %3921 = vrot.lane.b32.xlu0 %v1109, 48
  %v3922 = vpop.permute.xlu0 %3921
  %3923 = vrot.lane.b32.xlu0 %v1110, 48
  %v3924 = vpop.permute.xlu0 %3923
  %v3930 = vsel %vm589, %v3816, 0
  %v3933 = vsel %vm589, %v3817, 0
  %v3936 = vsel %vm589, %v3818, 0
  %v3939 = vsel %vm589, %v3819, 0
  %3941 = vmatprep.subr.bf16.mxu0 0
  %3942 = vmatpush1.bf16.msra.mxu0 %v3918
  %3943 = vmatprep.subr.bf16.mxu0 0
  %3944 = vmatpush1.bf16.msra.mxu0 %v3920
  %3945 = vmatprep.subr.bf16.mxu0 0
  %3946 = vmatpush1.bf16.msra.mxu0 %v3922
  %3947 = vmatprep.subr.bf16.mxu0 0
  %3948 = vmatpush1.bf16.msra.mxu0 %v3924
  %3949 = vmatprep.subr.bf16.mxu0 0
  %3950 = vmatpush1.bf16.msra.mxu0 0
  %3951 = vmatprep.subr.bf16.mxu0 0
  %3952 = vmatpush1.bf16.msra.mxu0 0
  %3953 = vmatprep.subr.bf16.mxu0 0
  %3954 = vmatpush1.bf16.msra.mxu0 0
  %3955 = vmatprep.subr.bf16.mxu0 0
  %3956 = vmatpush1.bf16.msra.mxu0 0
  %3957 = vmatprep.subr.bf16.mxu0 0
  %3958 = vmatpush1.bf16.msra.mxu0 0
  %3959 = vmatprep.subr.bf16.mxu0 0
  %3960 = vmatpush1.bf16.msra.mxu0 0
  %3961 = vmatprep.subr.bf16.mxu0 0
  %3962 = vmatpush1.bf16.msra.mxu0 0
  %3963 = vmatprep.subr.bf16.mxu0 0
  %3964 = vmatpush1.bf16.msra.mxu0 0
  %3965 = vmatprep.subr.bf16.mxu0 0
  %3966 = vmatpush1.bf16.msra.mxu0 0
  %3967 = vmatprep.subr.bf16.mxu0 0
  %3968 = vmatpush1.bf16.msra.mxu0 0
  %3969 = vmatprep.subr.bf16.mxu0 0
  %3970 = vmatpush1.bf16.msra.mxu0 0
  %3971 = vmatprep.subr.bf16.mxu0 0
  %3972 = vmatpush1.bf16.msra.mxu0 0
  %3973 = vmatprep.mubr.bf16.mxu0 0
  %3974 = vmatmul.mubr.bf16.gmra.mrb[0].mxu0 %v3930
  %v3975 = vpop.f32.mrb[0].mxu0
  %v3976 = vadd.f32 0.0, %v3975
  %v3977 = vpop.f32.mrb[0].mxu0
  %v3978 = vpop.f32.mrb[0].mxu0
  %v3979 = vadd.f32 0.0, %v3978
  %v3980 = vpop.f32.mrb[0].mxu0
  %3981 = vmatprep.mubr.bf16.mxu0 0
  %3982 = vmatmul.mubr.bf16.gmra.mrb[0].mxu0 %v3933
  %v3983 = vpop.f32.mrb[0].mxu0
  %v3984 = vadd.f32 0.0, %v3983
  %v3985 = vpop.f32.mrb[0].mxu0
  %v3986 = vpop.f32.mrb[0].mxu0
  %v3987 = vadd.f32 0.0, %v3986
  %v3988 = vpop.f32.mrb[0].mxu0
  %3989 = vmatprep.mubr.bf16.mxu0 0
  %3990 = vmatmul.mubr.bf16.gmra.mrb[0].mxu0 %v3936
  %v3991 = vpop.f32.mrb[0].mxu0
  %v3992 = vadd.f32 0.0, %v3991
  %v3993 = vpop.f32.mrb[0].mxu0
  %v3994 = vpop.f32.mrb[0].mxu0
  %v3995 = vadd.f32 0.0, %v3994
  %v3996 = vpop.f32.mrb[0].mxu0
  %3997 = vmatprep.mubr.bf16.mxu0 0
  %3998 = vmatmul.mubr.bf16.gmra.mrb[0].mxu0 %v3939
  %v3999 = vpop.f32.mrb[0].mxu0
  %v4000 = vadd.f32 0.0, %v3999
  %v4001 = vpop.f32.mrb[0].mxu0
  %v4002 = vpop.f32.mrb[0].mxu0
  %v4003 = vadd.f32 0.0, %v4002
  %v4004 = vpop.f32.mrb[0].mxu0
  %4005 = vdwg.mxu0
  %4006 = vrot.lane.b32.xlu0 %v1111, 48
  %v4007 = vpop.permute.xlu0 %4006
  %4008 = vrot.lane.b32.xlu0 %v1112, 48
  %v4009 = vpop.permute.xlu0 %4008
  %4010 = vrot.lane.b32.xlu0 %v1113, 48
  %v4011 = vpop.permute.xlu0 %4010
  %4012 = vrot.lane.b32.xlu0 %v1114, 48
  %v4013 = vpop.permute.xlu0 %4012
  %v4019 = vsel %vm589, %v3820, 0
  %v4022 = vsel %vm589, %v3821, 0
  %v4025 = vsel %vm589, %v3822, 0
  %v4028 = vsel %vm589, %v3823, 0
  %4030 = vmatprep.subr.bf16.mxu0 0
  %4031 = vmatpush1.bf16.msra.mxu0 %v4007
  %4032 = vmatprep.subr.bf16.mxu0 0
  %4033 = vmatpush1.bf16.msra.mxu0 %v4009
  %4034 = vmatprep.subr.bf16.mxu0 0
  %4035 = vmatpush1.bf16.msra.mxu0 %v4011
  %4036 = vmatprep.subr.bf16.mxu0 0
  %4037 = vmatpush1.bf16.msra.mxu0 %v4013
  %4038 = vmatprep.subr.bf16.mxu0 0
  %4039 = vmatpush1.bf16.msra.mxu0 0
  %4040 = vmatprep.subr.bf16.mxu0 0
  %4041 = vmatpush1.bf16.msra.mxu0 0
  %4042 = vmatprep.subr.bf16.mxu0 0
  %4043 = vmatpush1.bf16.msra.mxu0 0
  %4044 = vmatprep.subr.bf16.mxu0 0
  %4045 = vmatpush1.bf16.msra.mxu0 0
  %4046 = vmatprep.subr.bf16.mxu0 0
  %4047 = vmatpush1.bf16.msra.mxu0 0
  %4048 = vmatprep.subr.bf16.mxu0 0
  %4049 = vmatpush1.bf16.msra.mxu0 0
  %4050 = vmatprep.subr.bf16.mxu0 0
  %4051 = vmatpush1.bf16.msra.mxu0 0
  %4052 = vmatprep.subr.bf16.mxu0 0
  %4053 = vmatpush1.bf16.msra.mxu0 0
  %4054 = vmatprep.subr.bf16.mxu0 0
  %4055 = vmatpush1.bf16.msra.mxu0 0
  %4056 = vmatprep.subr.bf16.mxu0 0
  %4057 = vmatpush1.bf16.msra.mxu0 0
  %4058 = vmatprep.subr.bf16.mxu0 0
  %4059 = vmatpush1.bf16.msra.mxu0 0
  %4060 = vmatprep.subr.bf16.mxu0 0
  %4061 = vmatpush1.bf16.msra.mxu0 0
  %4062 = vmatprep.mubr.bf16.mxu0 0
  %4063 = vmatmul.mubr.bf16.gmra.mrb[0].mxu0 %v4019
  %v4064 = vpop.f32.mrb[0].mxu0
  %v4065 = vadd.f32 0.0, %v4064
  %v4066 = vpop.f32.mrb[0].mxu0
  %v4067 = vpop.f32.mrb[0].mxu0
  %v4068 = vadd.f32 0.0, %v4067
  %v4069 = vpop.f32.mrb[0].mxu0
  %4070 = vmatprep.mubr.bf16.mxu0 0
  %4071 = vmatmul.mubr.bf16.gmra.mrb[0].mxu0 %v4022
  %v4072 = vpop.f32.mrb[0].mxu0
  %v4073 = vadd.f32 0.0, %v4072
  %v4074 = vpop.f32.mrb[0].mxu0
  %v4075 = vpop.f32.mrb[0].mxu0
  %v4076 = vadd.f32 0.0, %v4075
  %v4077 = vpop.f32.mrb[0].mxu0
  %4078 = vmatprep.mubr.bf16.mxu0 0
  %4079 = vmatmul.mubr.bf16.gmra.mrb[0].mxu0 %v4025
  %v4080 = vpop.f32.mrb[0].mxu0
  %v4081 = vadd.f32 0.0, %v4080
  %v4082 = vpop.f32.mrb[0].mxu0
  %v4083 = vpop.f32.mrb[0].mxu0
  %v4084 = vadd.f32 0.0, %v4083
  %v4085 = vpop.f32.mrb[0].mxu0
  %4086 = vmatprep.mubr.bf16.mxu0 0
  %4087 = vmatmul.mubr.bf16.gmra.mrb[0].mxu0 %v4028
  %v4088 = vpop.f32.mrb[0].mxu0
  %v4089 = vadd.f32 0.0, %v4088
  %v4090 = vpop.f32.mrb[0].mxu0
  %v4091 = vpop.f32.mrb[0].mxu0
  %v4092 = vadd.f32 0.0, %v4091
  %v4093 = vpop.f32.mrb[0].mxu0
  %4094 = vdwg.mxu0
  %4095 = vrot.lane.b32.xlu0 %v1115, 48
  %v4096 = vpop.permute.xlu0 %4095
  %4097 = vrot.lane.b32.xlu0 %v1116, 48
  %v4098 = vpop.permute.xlu0 %4097
  %4099 = vrot.lane.b32.xlu0 %v1117, 48
  %v4100 = vpop.permute.xlu0 %4099
  %4101 = vrot.lane.b32.xlu0 %v1118, 48
  %v4102 = vpop.permute.xlu0 %4101
  %v4108 = vsel %vm589, %v3824, 0
  %v4111 = vsel %vm589, %v3825, 0
  %v4114 = vsel %vm589, %v3826, 0
  %v4117 = vsel %vm589, %v3827, 0
  %4119 = vmatprep.subr.bf16.mxu0 0
  %4120 = vmatpush1.bf16.msra.mxu0 %v4096
  %4121 = vmatprep.subr.bf16.mxu0 0
  %4122 = vmatpush1.bf16.msra.mxu0 %v4098
  %4123 = vmatprep.subr.bf16.mxu0 0
  %4124 = vmatpush1.bf16.msra.mxu0 %v4100
  %4125 = vmatprep.subr.bf16.mxu0 0
  %4126 = vmatpush1.bf16.msra.mxu0 %v4102
  %4127 = vmatprep.subr.bf16.mxu0 0
  %4128 = vmatpush1.bf16.msra.mxu0 0
  %4129 = vmatprep.subr.bf16.mxu0 0
  %4130 = vmatpush1.bf16.msra.mxu0 0
  %4131 = vmatprep.subr.bf16.mxu0 0
  %4132 = vmatpush1.bf16.msra.mxu0 0
  %4133 = vmatprep.subr.bf16.mxu0 0
  %4134 = vmatpush1.bf16.msra.mxu0 0
  %4135 = vmatprep.subr.bf16.mxu0 0
  %4136 = vmatpush1.bf16.msra.mxu0 0
  %4137 = vmatprep.subr.bf16.mxu0 0
  %4138 = vmatpush1.bf16.msra.mxu0 0
  %4139 = vmatprep.subr.bf16.mxu0 0
  %4140 = vmatpush1.bf16.msra.mxu0 0
  %4141 = vmatprep.subr.bf16.mxu0 0
  %4142 = vmatpush1.bf16.msra.mxu0 0
  %4143 = vmatprep.subr.bf16.mxu0 0
  %4144 = vmatpush1.bf16.msra.mxu0 0
  %4145 = vmatprep.subr.bf16.mxu0 0
  %4146 = vmatpush1.bf16.msra.mxu0 0
  %4147 = vmatprep.subr.bf16.mxu0 0
  %4148 = vmatpush1.bf16.msra.mxu0 0
  %4149 = vmatprep.subr.bf16.mxu0 0
  %4150 = vmatpush1.bf16.msra.mxu0 0
  %4151 = vmatprep.mubr.bf16.mxu0 0
  %4152 = vmatmul.mubr.bf16.gmra.mrb[0].mxu0 %v4108
  %v4153 = vpop.f32.mrb[0].mxu0
  %v4154 = vadd.f32 0.0, %v4153
  %v4155 = vpop.f32.mrb[0].mxu0
  %v4156 = vpop.f32.mrb[0].mxu0
  %v4157 = vadd.f32 0.0, %v4156
  %v4158 = vpop.f32.mrb[0].mxu0
  %4159 = vmatprep.mubr.bf16.mxu0 0
  %4160 = vmatmul.mubr.bf16.gmra.mrb[0].mxu0 %v4111
  %v4161 = vpop.f32.mrb[0].mxu0
  %v4162 = vadd.f32 0.0, %v4161
  %v4163 = vpop.f32.mrb[0].mxu0
  %v4164 = vpop.f32.mrb[0].mxu0
  %v4165 = vadd.f32 0.0, %v4164
  %v4166 = vpop.f32.mrb[0].mxu0
  %4167 = vmatprep.mubr.bf16.mxu0 0
  %4168 = vmatmul.mubr.bf16.gmra.mrb[0].mxu0 %v4114
  %v4169 = vpop.f32.mrb[0].mxu0
  %v4170 = vadd.f32 0.0, %v4169
  %v4171 = vpop.f32.mrb[0].mxu0
  %v4172 = vpop.f32.mrb[0].mxu0
  %v4173 = vadd.f32 0.0, %v4172
  %v4174 = vpop.f32.mrb[0].mxu0
  %4175 = vmatprep.mubr.bf16.mxu0 0
  %4176 = vmatmul.mubr.bf16.gmra.mrb[0].mxu0 %v4117
  %v4177 = vpop.f32.mrb[0].mxu0
  %v4178 = vadd.f32 0.0, %v4177
  %v4179 = vpop.f32.mrb[0].mxu0
  %v4180 = vpop.f32.mrb[0].mxu0
  %v4181 = vadd.f32 0.0, %v4180
  %v4182 = vpop.f32.mrb[0].mxu0
  %4183 = vdwg.mxu0
  %4184 = vrot.lane.b32.xlu0 %v1071, 104
  %v4185 = vpop.permute.xlu0 %4184
  %4186 = vrot.lane.b32.xlu0 %v1072, 104
  %v4187 = vpop.permute.xlu0 %4186
  %4188 = vrot.lane.b32.xlu0 %v1073, 104
  %v4189 = vpop.permute.xlu0 %4188
  %4190 = vrot.lane.b32.xlu0 %v1074, 104
  %v4191 = vpop.permute.xlu0 %4190
  %4192 = vrot.lane.b32.xlu0 %v1087, 72
  %v4193 = vpop.permute.xlu0 %4192
  %4194 = vrot.lane.b32.xlu0 %v1088, 72
  %v4195 = vpop.permute.xlu0 %4194
  %4196 = vrot.lane.b32.xlu0 %v1089, 72
  %v4197 = vpop.permute.xlu0 %4196
  %4198 = vrot.lane.b32.xlu0 %v1090, 72
  %v4199 = vpop.permute.xlu0 %4198
  %v4201 = vsel %vm1131, %v4185, 0
  %v4204 = vsel %vm1131, %v4187, 0
  %v4207 = vsel %vm1131, %v4189, 0
  %v4210 = vsel %vm1131, %v4191, 0
  %v4213 = vsel %vm1131, %v4193, 0
  %v4216 = vsel %vm1131, %v4195, 0
  %v4219 = vsel %vm1131, %v4197, 0
  %v4222 = vsel %vm1131, %v4199, 0
  %4224 = vmatprep.subr.bf16.mxu0 0
  %4225 = vmatpush1.bf16.xpose.msra.mxu0 %v4213
  %4226 = vmatprep.subr.bf16.mxu0 0
  %4227 = vmatpush1.bf16.xpose.msra.mxu0 %v4216
  %4228 = vmatprep.subr.bf16.mxu0 0
  %4229 = vmatpush1.bf16.xpose.msra.mxu0 %v4219
  %4230 = vmatprep.subr.bf16.mxu0 0
  %4231 = vmatpush1.bf16.xpose.msra.mxu0 %v4222
  %4232 = vmatprep.subr.bf16.mxu0 0
  %4233 = vmatpush1.bf16.xpose.msra.mxu0 0
  %4234 = vmatprep.subr.bf16.mxu0 0
  %4235 = vmatpush1.bf16.xpose.msra.mxu0 0
  %4236 = vmatprep.subr.bf16.mxu0 0
  %4237 = vmatpush1.bf16.xpose.msra.mxu0 0
  %4238 = vmatprep.subr.bf16.mxu0 0
  %4239 = vmatpush1.bf16.xpose.msra.mxu0 0
  %4240 = vmatprep.subr.bf16.mxu0 0
  %4241 = vmatpush1.bf16.xpose.msra.mxu0 0
  %4242 = vmatprep.subr.bf16.mxu0 0
  %4243 = vmatpush1.bf16.xpose.msra.mxu0 0
  %4244 = vmatprep.subr.bf16.mxu0 0
  %4245 = vmatpush1.bf16.xpose.msra.mxu0 0
  %4246 = vmatprep.subr.bf16.mxu0 0
  %4247 = vmatpush1.bf16.xpose.msra.mxu0 0
  %4248 = vmatprep.subr.bf16.mxu0 0
  %4249 = vmatpush1.bf16.xpose.msra.mxu0 0
  %4250 = vmatprep.subr.bf16.mxu0 0
  %4251 = vmatpush1.bf16.xpose.msra.mxu0 0
  %4252 = vmatprep.subr.bf16.mxu0 0
  %4253 = vmatpush1.bf16.xpose.msra.mxu0 0
  %4254 = vmatprep.subr.bf16.mxu0 0
  %4255 = vmatpush1.bf16.xpose.msra.mxu0 0
  %4256 = vmatprep.mubr.bf16.mxu0 0
  %4257 = vmatmul.mubr.bf16.gmra.mrb[0].mxu0 %v4201
  %v4258 = vpop.f32.mrb[0].mxu0
  %v4259 = vadd.f32 0.0, %v4258
  %v4260 = vpop.f32.mrb[0].mxu0
  %v4261 = vpop.f32.mrb[0].mxu0
  %v4262 = vadd.f32 0.0, %v4261
  %v4263 = vpop.f32.mrb[0].mxu0
  %4264 = vmatprep.mubr.bf16.mxu0 0
  %4265 = vmatmul.mubr.bf16.gmra.mrb[0].mxu0 %v4204
  %v4266 = vpop.f32.mrb[0].mxu0
  %v4267 = vadd.f32 0.0, %v4266
  %v4268 = vpop.f32.mrb[0].mxu0
  %v4269 = vpop.f32.mrb[0].mxu0
  %v4270 = vadd.f32 0.0, %v4269
  %v4271 = vpop.f32.mrb[0].mxu0
  %4272 = vmatprep.mubr.bf16.mxu0 0
  %4273 = vmatmul.mubr.bf16.gmra.mrb[0].mxu0 %v4207
  %v4274 = vpop.f32.mrb[0].mxu0
  %v4275 = vadd.f32 0.0, %v4274
  %v4276 = vpop.f32.mrb[0].mxu0
  %v4277 = vpop.f32.mrb[0].mxu0
  %v4278 = vadd.f32 0.0, %v4277
  %v4279 = vpop.f32.mrb[0].mxu0
  %4280 = vmatprep.mubr.bf16.mxu0 0
  %4281 = vmatmul.mubr.bf16.gmra.mrb[0].mxu0 %v4210
  %v4282 = vpop.f32.mrb[0].mxu0
  %v4283 = vadd.f32 0.0, %v4282
  %v4284 = vpop.f32.mrb[0].mxu0
  %v4285 = vpop.f32.mrb[0].mxu0
  %v4286 = vadd.f32 0.0, %v4285
  %v4287 = vpop.f32.mrb[0].mxu0
  %4288 = vdwg.mxu0
  %4289 = vrot.lane.b32.xlu0 %v1075, 104
  %v4290 = vpop.permute.xlu0 %4289
  %4291 = vrot.lane.b32.xlu0 %v1076, 104
  %v4292 = vpop.permute.xlu0 %4291
  %4293 = vrot.lane.b32.xlu0 %v1077, 104
  %v4294 = vpop.permute.xlu0 %4293
  %4295 = vrot.lane.b32.xlu0 %v1078, 104
  %v4296 = vpop.permute.xlu0 %4295
  %4297 = vrot.lane.b32.xlu0 %v1091, 72
  %v4298 = vpop.permute.xlu0 %4297
  %4299 = vrot.lane.b32.xlu0 %v1092, 72
  %v4300 = vpop.permute.xlu0 %4299
  %4301 = vrot.lane.b32.xlu0 %v1093, 72
  %v4302 = vpop.permute.xlu0 %4301
  %4303 = vrot.lane.b32.xlu0 %v1094, 72
  %v4304 = vpop.permute.xlu0 %4303
  %v4306 = vsel %vm1131, %v4290, 0
  %v4309 = vsel %vm1131, %v4292, 0
  %v4312 = vsel %vm1131, %v4294, 0
  %v4315 = vsel %vm1131, %v4296, 0
  %v4318 = vsel %vm1131, %v4298, 0
  %v4321 = vsel %vm1131, %v4300, 0
  %v4324 = vsel %vm1131, %v4302, 0
  %v4327 = vsel %vm1131, %v4304, 0
  %4329 = vmatprep.subr.bf16.mxu0 0
  %4330 = vmatpush1.bf16.xpose.msra.mxu0 %v4318
  %4331 = vmatprep.subr.bf16.mxu0 0
  %4332 = vmatpush1.bf16.xpose.msra.mxu0 %v4321
  %4333 = vmatprep.subr.bf16.mxu0 0
  %4334 = vmatpush1.bf16.xpose.msra.mxu0 %v4324
  %4335 = vmatprep.subr.bf16.mxu0 0
  %4336 = vmatpush1.bf16.xpose.msra.mxu0 %v4327
  %4337 = vmatprep.subr.bf16.mxu0 0
  %4338 = vmatpush1.bf16.xpose.msra.mxu0 0
  %4339 = vmatprep.subr.bf16.mxu0 0
  %4340 = vmatpush1.bf16.xpose.msra.mxu0 0
  %4341 = vmatprep.subr.bf16.mxu0 0
  %4342 = vmatpush1.bf16.xpose.msra.mxu0 0
  %4343 = vmatprep.subr.bf16.mxu0 0
  %4344 = vmatpush1.bf16.xpose.msra.mxu0 0
  %4345 = vmatprep.subr.bf16.mxu0 0
  %4346 = vmatpush1.bf16.xpose.msra.mxu0 0
  %4347 = vmatprep.subr.bf16.mxu0 0
  %4348 = vmatpush1.bf16.xpose.msra.mxu0 0
  %4349 = vmatprep.subr.bf16.mxu0 0
  %4350 = vmatpush1.bf16.xpose.msra.mxu0 0
  %4351 = vmatprep.subr.bf16.mxu0 0
  %4352 = vmatpush1.bf16.xpose.msra.mxu0 0
  %4353 = vmatprep.subr.bf16.mxu0 0
  %4354 = vmatpush1.bf16.xpose.msra.mxu0 0
  %4355 = vmatprep.subr.bf16.mxu0 0
  %4356 = vmatpush1.bf16.xpose.msra.mxu0 0
  %4357 = vmatprep.subr.bf16.mxu0 0
  %4358 = vmatpush1.bf16.xpose.msra.mxu0 0
  %4359 = vmatprep.subr.bf16.mxu0 0
  %4360 = vmatpush1.bf16.xpose.msra.mxu0 0
  %4361 = vmatprep.mubr.bf16.mxu0 0
  %4362 = vmatmul.mubr.bf16.gmra.mrb[0].mxu0 %v4306
  %v4363 = vpop.f32.mrb[0].mxu0
  %v4364 = vadd.f32 0.0, %v4363
  %v4365 = vpop.f32.mrb[0].mxu0
  %v4366 = vpop.f32.mrb[0].mxu0
  %v4367 = vadd.f32 0.0, %v4366
  %v4368 = vpop.f32.mrb[0].mxu0
  %4369 = vmatprep.mubr.bf16.mxu0 0
  %4370 = vmatmul.mubr.bf16.gmra.mrb[0].mxu0 %v4309
  %v4371 = vpop.f32.mrb[0].mxu0
  %v4372 = vadd.f32 0.0, %v4371
  %v4373 = vpop.f32.mrb[0].mxu0
  %v4374 = vpop.f32.mrb[0].mxu0
  %v4375 = vadd.f32 0.0, %v4374
  %v4376 = vpop.f32.mrb[0].mxu0
  %4377 = vmatprep.mubr.bf16.mxu0 0
  %4378 = vmatmul.mubr.bf16.gmra.mrb[0].mxu0 %v4312
  %v4379 = vpop.f32.mrb[0].mxu0
  %v4380 = vadd.f32 0.0, %v4379
  %v4381 = vpop.f32.mrb[0].mxu0
  %v4382 = vpop.f32.mrb[0].mxu0
  %v4383 = vadd.f32 0.0, %v4382
  %v4384 = vpop.f32.mrb[0].mxu0
  %4385 = vmatprep.mubr.bf16.mxu0 0
  %4386 = vmatmul.mubr.bf16.gmra.mrb[0].mxu0 %v4315
  %v4387 = vpop.f32.mrb[0].mxu0
  %v4388 = vadd.f32 0.0, %v4387
  %v4389 = vpop.f32.mrb[0].mxu0
  %v4390 = vpop.f32.mrb[0].mxu0
  %v4391 = vadd.f32 0.0, %v4390
  %v4392 = vpop.f32.mrb[0].mxu0
  %4393 = vdwg.mxu0
  %4394 = vrot.lane.b32.xlu0 %v1079, 104
  %v4395 = vpop.permute.xlu0 %4394
  %4396 = vrot.lane.b32.xlu0 %v1080, 104
  %v4397 = vpop.permute.xlu0 %4396
  %4398 = vrot.lane.b32.xlu0 %v1081, 104
  %v4399 = vpop.permute.xlu0 %4398
  %4400 = vrot.lane.b32.xlu0 %v1082, 104
  %v4401 = vpop.permute.xlu0 %4400
  %4402 = vrot.lane.b32.xlu0 %v1095, 72
  %v4403 = vpop.permute.xlu0 %4402
  %4404 = vrot.lane.b32.xlu0 %v1096, 72
  %v4405 = vpop.permute.xlu0 %4404
  %4406 = vrot.lane.b32.xlu0 %v1097, 72
  %v4407 = vpop.permute.xlu0 %4406
  %4408 = vrot.lane.b32.xlu0 %v1098, 72
  %v4409 = vpop.permute.xlu0 %4408
  %v4411 = vsel %vm1131, %v4395, 0
  %v4414 = vsel %vm1131, %v4397, 0
  %v4417 = vsel %vm1131, %v4399, 0
  %v4420 = vsel %vm1131, %v4401, 0
  %v4423 = vsel %vm1131, %v4403, 0
  %v4426 = vsel %vm1131, %v4405, 0
  %v4429 = vsel %vm1131, %v4407, 0
  %v4432 = vsel %vm1131, %v4409, 0
  %4434 = vmatprep.subr.bf16.mxu0 0
  %4435 = vmatpush1.bf16.xpose.msra.mxu0 %v4423
  %4436 = vmatprep.subr.bf16.mxu0 0
  %4437 = vmatpush1.bf16.xpose.msra.mxu0 %v4426
  %4438 = vmatprep.subr.bf16.mxu0 0
  %4439 = vmatpush1.bf16.xpose.msra.mxu0 %v4429
  %4440 = vmatprep.subr.bf16.mxu0 0
  %4441 = vmatpush1.bf16.xpose.msra.mxu0 %v4432
  %4442 = vmatprep.subr.bf16.mxu0 0
  %4443 = vmatpush1.bf16.xpose.msra.mxu0 0
  %4444 = vmatprep.subr.bf16.mxu0 0
  %4445 = vmatpush1.bf16.xpose.msra.mxu0 0
  %4446 = vmatprep.subr.bf16.mxu0 0
  %4447 = vmatpush1.bf16.xpose.msra.mxu0 0
  %4448 = vmatprep.subr.bf16.mxu0 0
  %4449 = vmatpush1.bf16.xpose.msra.mxu0 0
  %4450 = vmatprep.subr.bf16.mxu0 0
  %4451 = vmatpush1.bf16.xpose.msra.mxu0 0
  %4452 = vmatprep.subr.bf16.mxu0 0
  %4453 = vmatpush1.bf16.xpose.msra.mxu0 0
  %4454 = vmatprep.subr.bf16.mxu0 0
  %4455 = vmatpush1.bf16.xpose.msra.mxu0 0
  %4456 = vmatprep.subr.bf16.mxu0 0
  %4457 = vmatpush1.bf16.xpose.msra.mxu0 0
  %4458 = vmatprep.subr.bf16.mxu0 0
  %4459 = vmatpush1.bf16.xpose.msra.mxu0 0
  %4460 = vmatprep.subr.bf16.mxu0 0
  %4461 = vmatpush1.bf16.xpose.msra.mxu0 0
  %4462 = vmatprep.subr.bf16.mxu0 0
  %4463 = vmatpush1.bf16.xpose.msra.mxu0 0
  %4464 = vmatprep.subr.bf16.mxu0 0
  %4465 = vmatpush1.bf16.xpose.msra.mxu0 0
  %4466 = vmatprep.mubr.bf16.mxu0 0
  %4467 = vmatmul.mubr.bf16.gmra.mrb[0].mxu0 %v4411
  %v4468 = vpop.f32.mrb[0].mxu0
  %v4469 = vadd.f32 0.0, %v4468
  %v4470 = vpop.f32.mrb[0].mxu0
  %v4471 = vpop.f32.mrb[0].mxu0
  %v4472 = vadd.f32 0.0, %v4471
  %v4473 = vpop.f32.mrb[0].mxu0
  %4474 = vmatprep.mubr.bf16.mxu0 0
  %4475 = vmatmul.mubr.bf16.gmra.mrb[0].mxu0 %v4414
  %v4476 = vpop.f32.mrb[0].mxu0
  %v4477 = vadd.f32 0.0, %v4476
  %v4478 = vpop.f32.mrb[0].mxu0
  %v4479 = vpop.f32.mrb[0].mxu0
  %v4480 = vadd.f32 0.0, %v4479
  %v4481 = vpop.f32.mrb[0].mxu0
  %4482 = vmatprep.mubr.bf16.mxu0 0
  %4483 = vmatmul.mubr.bf16.gmra.mrb[0].mxu0 %v4417
  %v4484 = vpop.f32.mrb[0].mxu0
  %v4485 = vadd.f32 0.0, %v4484
  %v4486 = vpop.f32.mrb[0].mxu0
  %v4487 = vpop.f32.mrb[0].mxu0
  %v4488 = vadd.f32 0.0, %v4487
  %v4489 = vpop.f32.mrb[0].mxu0
  %4490 = vmatprep.mubr.bf16.mxu0 0
  %4491 = vmatmul.mubr.bf16.gmra.mrb[0].mxu0 %v4420
  %v4492 = vpop.f32.mrb[0].mxu0
  %v4493 = vadd.f32 0.0, %v4492
  %v4494 = vpop.f32.mrb[0].mxu0
  %v4495 = vpop.f32.mrb[0].mxu0
  %v4496 = vadd.f32 0.0, %v4495
  %v4497 = vpop.f32.mrb[0].mxu0
  %4498 = vdwg.mxu0
  %4499 = vrot.lane.b32.xlu0 %v1083, 104
  %v4500 = vpop.permute.xlu0 %4499
  %4501 = vrot.lane.b32.xlu0 %v1084, 104
  %v4502 = vpop.permute.xlu0 %4501
  %4503 = vrot.lane.b32.xlu0 %v1085, 104
  %v4504 = vpop.permute.xlu0 %4503
  %4505 = vrot.lane.b32.xlu0 %v1086, 104
  %v4506 = vpop.permute.xlu0 %4505
  %4507 = vrot.lane.b32.xlu0 %v1099, 72
  %v4508 = vpop.permute.xlu0 %4507
  %4509 = vrot.lane.b32.xlu0 %v1100, 72
  %v4510 = vpop.permute.xlu0 %4509
  %4511 = vrot.lane.b32.xlu0 %v1101, 72
  %v4512 = vpop.permute.xlu0 %4511
  %4513 = vrot.lane.b32.xlu0 %v1102, 72
  %v4514 = vpop.permute.xlu0 %4513
  %v4516 = vsel %vm1131, %v4500, 0
  %v4519 = vsel %vm1131, %v4502, 0
  %v4522 = vsel %vm1131, %v4504, 0
  %v4525 = vsel %vm1131, %v4506, 0
  %v4528 = vsel %vm1131, %v4508, 0
  %v4531 = vsel %vm1131, %v4510, 0
  %v4534 = vsel %vm1131, %v4512, 0
  %v4537 = vsel %vm1131, %v4514, 0
  %4539 = vmatprep.subr.bf16.mxu0 0
  %4540 = vmatpush1.bf16.xpose.msra.mxu0 %v4528
  %4541 = vmatprep.subr.bf16.mxu0 0
  %4542 = vmatpush1.bf16.xpose.msra.mxu0 %v4531
  %4543 = vmatprep.subr.bf16.mxu0 0
  %4544 = vmatpush1.bf16.xpose.msra.mxu0 %v4534
  %4545 = vmatprep.subr.bf16.mxu0 0
  %4546 = vmatpush1.bf16.xpose.msra.mxu0 %v4537
  %4547 = vmatprep.subr.bf16.mxu0 0
  %4548 = vmatpush1.bf16.xpose.msra.mxu0 0
  %4549 = vmatprep.subr.bf16.mxu0 0
  %4550 = vmatpush1.bf16.xpose.msra.mxu0 0
  %4551 = vmatprep.subr.bf16.mxu0 0
  %4552 = vmatpush1.bf16.xpose.msra.mxu0 0
  %4553 = vmatprep.subr.bf16.mxu0 0
  %4554 = vmatpush1.bf16.xpose.msra.mxu0 0
  %4555 = vmatprep.subr.bf16.mxu0 0
  %4556 = vmatpush1.bf16.xpose.msra.mxu0 0
  %4557 = vmatprep.subr.bf16.mxu0 0
  %4558 = vmatpush1.bf16.xpose.msra.mxu0 0
  %4559 = vmatprep.subr.bf16.mxu0 0
  %4560 = vmatpush1.bf16.xpose.msra.mxu0 0
  %4561 = vmatprep.subr.bf16.mxu0 0
  %4562 = vmatpush1.bf16.xpose.msra.mxu0 0
  %4563 = vmatprep.subr.bf16.mxu0 0
  %4564 = vmatpush1.bf16.xpose.msra.mxu0 0
  %4565 = vmatprep.subr.bf16.mxu0 0
  %4566 = vmatpush1.bf16.xpose.msra.mxu0 0
  %4567 = vmatprep.subr.bf16.mxu0 0
  %4568 = vmatpush1.bf16.xpose.msra.mxu0 0
  %4569 = vmatprep.subr.bf16.mxu0 0
  %4570 = vmatpush1.bf16.xpose.msra.mxu0 0
  %4571 = vmatprep.mubr.bf16.mxu0 0
  %4572 = vmatmul.mubr.bf16.gmra.mrb[0].mxu0 %v4516
  %v4573 = vpop.f32.mrb[0].mxu0
  %v4574 = vadd.f32 0.0, %v4573
  %v4575 = vpop.f32.mrb[0].mxu0
  %v4576 = vpop.f32.mrb[0].mxu0
  %v4577 = vadd.f32 0.0, %v4576
  %v4578 = vpop.f32.mrb[0].mxu0
  %4579 = vmatprep.mubr.bf16.mxu0 0
  %4580 = vmatmul.mubr.bf16.gmra.mrb[0].mxu0 %v4519
  %v4581 = vpop.f32.mrb[0].mxu0
  %v4582 = vadd.f32 0.0, %v4581
  %v4583 = vpop.f32.mrb[0].mxu0
  %v4584 = vpop.f32.mrb[0].mxu0
  %v4585 = vadd.f32 0.0, %v4584
  %v4586 = vpop.f32.mrb[0].mxu0
  %4587 = vmatprep.mubr.bf16.mxu0 0
  %4588 = vmatmul.mubr.bf16.gmra.mrb[0].mxu0 %v4522
  %v4589 = vpop.f32.mrb[0].mxu0
  %v4590 = vadd.f32 0.0, %v4589
  %v4591 = vpop.f32.mrb[0].mxu0
  %v4592 = vpop.f32.mrb[0].mxu0
  %v4593 = vadd.f32 0.0, %v4592
  %v4594 = vpop.f32.mrb[0].mxu0
  %4595 = vmatprep.mubr.bf16.mxu0 0
  %4596 = vmatmul.mubr.bf16.gmra.mrb[0].mxu0 %v4525
  %v4597 = vpop.f32.mrb[0].mxu0
  %v4598 = vadd.f32 0.0, %v4597
  %v4599 = vpop.f32.mrb[0].mxu0
  %v4600 = vpop.f32.mrb[0].mxu0
  %v4601 = vadd.f32 0.0, %v4600
  %v4602 = vpop.f32.mrb[0].mxu0
  %4603 = vdwg.mxu0
  %v4604 = vmul.f32 %v4259, 1.442695
  %v4605 = vpow.pop %v4604
  %v4606 = vmul.f32 %v4262, 1.442695
  %v4607 = vpow.pop %v4606
  %v4608 = vmul.f32 %v4267, 1.442695
  %v4609 = vpow.pop %v4608
  %v4610 = vmul.f32 %v4270, 1.442695
  %v4611 = vpow.pop %v4610
  %v4612 = vmul.f32 %v4275, 1.442695
  %v4613 = vpow.pop %v4612
  %v4614 = vmul.f32 %v4278, 1.442695
  %v4615 = vpow.pop %v4614
  %v4616 = vmul.f32 %v4283, 1.442695
  %v4617 = vpow.pop %v4616
  %v4618 = vmul.f32 %v4286, 1.442695
  %v4619 = vpow.pop %v4618
  %v4620 = vmul.f32 %v4364, 1.442695
  %v4621 = vpow.pop %v4620
  %v4622 = vmul.f32 %v4367, 1.442695
  %v4623 = vpow.pop %v4622
  %v4624 = vmul.f32 %v4372, 1.442695
  %v4625 = vpow.pop %v4624
  %v4626 = vmul.f32 %v4375, 1.442695
  %v4627 = vpow.pop %v4626
  %v4628 = vmul.f32 %v4380, 1.442695
  %v4629 = vpow.pop %v4628
  %v4630 = vmul.f32 %v4383, 1.442695
  %v4631 = vpow.pop %v4630
  %v4632 = vmul.f32 %v4388, 1.442695
  %v4633 = vpow.pop %v4632
  %v4634 = vmul.f32 %v4391, 1.442695
  %v4635 = vpow.pop %v4634
  %v4636 = vmul.f32 %v4469, 1.442695
  %v4637 = vpow.pop %v4636
  %v4638 = vmul.f32 %v4472, 1.442695
  %v4639 = vpow.pop %v4638
  %v4640 = vmul.f32 %v4477, 1.442695
  %v4641 = vpow.pop %v4640
  %v4642 = vmul.f32 %v4480, 1.442695
  %v4643 = vpow.pop %v4642
  %v4644 = vmul.f32 %v4485, 1.442695
  %v4645 = vpow.pop %v4644
  %v4646 = vmul.f32 %v4488, 1.442695
  %v4647 = vpow.pop %v4646
  %v4648 = vmul.f32 %v4493, 1.442695
  %v4649 = vpow.pop %v4648
  %v4650 = vmul.f32 %v4496, 1.442695
  %v4651 = vpow.pop %v4650
  %v4652 = vmul.f32 %v4574, 1.442695
  %v4653 = vpow.pop %v4652
  %v4654 = vmul.f32 %v4577, 1.442695
  %v4655 = vpow.pop %v4654
  %v4656 = vmul.f32 %v4582, 1.442695
  %v4657 = vpow.pop %v4656
  %v4658 = vmul.f32 %v4585, 1.442695
  %v4659 = vpow.pop %v4658
  %v4660 = vmul.f32 %v4590, 1.442695
  %v4661 = vpow.pop %v4660
  %v4662 = vmul.f32 %v4593, 1.442695
  %v4663 = vpow.pop %v4662
  %v4664 = vmul.f32 %v4598, 1.442695
  %v4665 = vpow.pop %v4664
  %v4666 = vmul.f32 %v4601, 1.442695
  %v4667 = vpow.pop %v4666
  %v4668 = vsel %vm589, %v4605, 0.0
  %4669 = vadd.xlane.f32.xlu0 %v4668
  %v4670 = vpop.xlane.xlu0 %4669
  %v4671 = vsel %vm589, %v4607, 0.0
  %4672 = vadd.xlane.f32.xlu0 %v4671
  %v4673 = vpop.xlane.xlu0 %4672
  %v4674 = vsel %vm589, %v4609, 0.0
  %4675 = vadd.xlane.f32.xlu0 %v4674
  %v4676 = vpop.xlane.xlu0 %4675
  %v4677 = vsel %vm589, %v4611, 0.0
  %4678 = vadd.xlane.f32.xlu0 %v4677
  %v4679 = vpop.xlane.xlu0 %4678
  %v4680 = vsel %vm589, %v4613, 0.0
  %4681 = vadd.xlane.f32.xlu0 %v4680
  %v4682 = vpop.xlane.xlu0 %4681
  %v4683 = vsel %vm589, %v4615, 0.0
  %4684 = vadd.xlane.f32.xlu0 %v4683
  %v4685 = vpop.xlane.xlu0 %4684
  %v4686 = vsel %vm589, %v4617, 0.0
  %4687 = vadd.xlane.f32.xlu0 %v4686
  %v4688 = vpop.xlane.xlu0 %4687
  %v4689 = vsel %vm589, %v4619, 0.0
  %4690 = vadd.xlane.f32.xlu0 %v4689
  %v4691 = vpop.xlane.xlu0 %4690
  %v4692 = vsel %vm589, %v4621, 0.0
  %4693 = vadd.xlane.f32.xlu0 %v4692
  %v4694 = vpop.xlane.xlu0 %4693
  %v4695 = vsel %vm589, %v4623, 0.0
  %4696 = vadd.xlane.f32.xlu0 %v4695
  %v4697 = vpop.xlane.xlu0 %4696
  %v4698 = vsel %vm589, %v4625, 0.0
  %4699 = vadd.xlane.f32.xlu0 %v4698
  %v4700 = vpop.xlane.xlu0 %4699
  %v4701 = vsel %vm589, %v4627, 0.0
  %4702 = vadd.xlane.f32.xlu0 %v4701
  %v4703 = vpop.xlane.xlu0 %4702
  %v4704 = vsel %vm589, %v4629, 0.0
  %4705 = vadd.xlane.f32.xlu0 %v4704
  %v4706 = vpop.xlane.xlu0 %4705
  %v4707 = vsel %vm589, %v4631, 0.0
  %4708 = vadd.xlane.f32.xlu0 %v4707
  %v4709 = vpop.xlane.xlu0 %4708
  %v4710 = vsel %vm589, %v4633, 0.0
  %4711 = vadd.xlane.f32.xlu0 %v4710
  %v4712 = vpop.xlane.xlu0 %4711
  %v4713 = vsel %vm589, %v4635, 0.0
  %4714 = vadd.xlane.f32.xlu0 %v4713
  %v4715 = vpop.xlane.xlu0 %4714
  %v4716 = vsel %vm589, %v4637, 0.0
  %4717 = vadd.xlane.f32.xlu0 %v4716
  %v4718 = vpop.xlane.xlu0 %4717
  %v4719 = vsel %vm589, %v4639, 0.0
  %4720 = vadd.xlane.f32.xlu0 %v4719
  %v4721 = vpop.xlane.xlu0 %4720
  %v4722 = vsel %vm589, %v4641, 0.0
  %4723 = vadd.xlane.f32.xlu0 %v4722
  %v4724 = vpop.xlane.xlu0 %4723
  %v4725 = vsel %vm589, %v4643, 0.0
  %4726 = vadd.xlane.f32.xlu0 %v4725
  %v4727 = vpop.xlane.xlu0 %4726
  %v4728 = vsel %vm589, %v4645, 0.0
  %4729 = vadd.xlane.f32.xlu0 %v4728
  %v4730 = vpop.xlane.xlu0 %4729
  %v4731 = vsel %vm589, %v4647, 0.0
  %4732 = vadd.xlane.f32.xlu0 %v4731
  %v4733 = vpop.xlane.xlu0 %4732
  %v4734 = vsel %vm589, %v4649, 0.0
  %4735 = vadd.xlane.f32.xlu0 %v4734
  %v4736 = vpop.xlane.xlu0 %4735
  %v4737 = vsel %vm589, %v4651, 0.0
  %4738 = vadd.xlane.f32.xlu0 %v4737
  %v4739 = vpop.xlane.xlu0 %4738
  %v4740 = vsel %vm589, %v4653, 0.0
  %4741 = vadd.xlane.f32.xlu0 %v4740
  %v4742 = vpop.xlane.xlu0 %4741
  %v4743 = vsel %vm589, %v4655, 0.0
  %4744 = vadd.xlane.f32.xlu0 %v4743
  %v4745 = vpop.xlane.xlu0 %4744
  %v4746 = vsel %vm589, %v4657, 0.0
  %4747 = vadd.xlane.f32.xlu0 %v4746
  %v4748 = vpop.xlane.xlu0 %4747
  %v4749 = vsel %vm589, %v4659, 0.0
  %4750 = vadd.xlane.f32.xlu0 %v4749
  %v4751 = vpop.xlane.xlu0 %4750
  %v4752 = vsel %vm589, %v4661, 0.0
  %4753 = vadd.xlane.f32.xlu0 %v4752
  %v4754 = vpop.xlane.xlu0 %4753
  %v4755 = vsel %vm589, %v4663, 0.0
  %4756 = vadd.xlane.f32.xlu0 %v4755
  %v4757 = vpop.xlane.xlu0 %4756
  %v4758 = vsel %vm589, %v4665, 0.0
  %4759 = vadd.xlane.f32.xlu0 %v4758
  %v4760 = vpop.xlane.xlu0 %4759
  %v4761 = vsel %vm589, %v4667, 0.0
  %4762 = vadd.xlane.f32.xlu0 %v4761
  %v4763 = vpop.xlane.xlu0 %4762
  %v4764 = vrcp.pop %v4670
  %v4765 = vrcp.pop %v4673
  %v4766 = vrcp.pop %v4676
  %v4767 = vrcp.pop %v4679
  %v4768 = vrcp.pop %v4682
  %v4769 = vrcp.pop %v4685
  %v4770 = vrcp.pop %v4688
  %v4771 = vrcp.pop %v4691
  %v4772 = vrcp.pop %v4694
  %v4773 = vrcp.pop %v4697
  %v4774 = vrcp.pop %v4700
  %v4775 = vrcp.pop %v4703
  %v4776 = vrcp.pop %v4706
  %v4777 = vrcp.pop %v4709
  %v4778 = vrcp.pop %v4712
  %v4779 = vrcp.pop %v4715
  %v4780 = vrcp.pop %v4718
  %v4781 = vrcp.pop %v4721
  %v4782 = vrcp.pop %v4724
  %v4783 = vrcp.pop %v4727
  %v4784 = vrcp.pop %v4730
  %v4785 = vrcp.pop %v4733
  %v4786 = vrcp.pop %v4736
  %v4787 = vrcp.pop %v4739
  %v4788 = vrcp.pop %v4742
  %v4789 = vrcp.pop %v4745
  %v4790 = vrcp.pop %v4748
  %v4791 = vrcp.pop %v4751
  %v4792 = vrcp.pop %v4754
  %v4793 = vrcp.pop %v4757
  %v4794 = vrcp.pop %v4760
  %v4795 = vrcp.pop %v4763
  %v4796 = vmul.f32 %v4605, %v4764
  %v4797 = vmul.f32 %v4607, %v4765
  %v4798 = vmul.f32 %v4609, %v4766
  %v4799 = vmul.f32 %v4611, %v4767
  %v4800 = vmul.f32 %v4613, %v4768
  %v4801 = vmul.f32 %v4615, %v4769
  %v4802 = vmul.f32 %v4617, %v4770
  %v4803 = vmul.f32 %v4619, %v4771
  %v4804 = vmul.f32 %v4621, %v4772
  %v4805 = vmul.f32 %v4623, %v4773
  %v4806 = vmul.f32 %v4625, %v4774
  %v4807 = vmul.f32 %v4627, %v4775
  %v4808 = vmul.f32 %v4629, %v4776
  %v4809 = vmul.f32 %v4631, %v4777
  %v4810 = vmul.f32 %v4633, %v4778
  %v4811 = vmul.f32 %v4635, %v4779
  %v4812 = vmul.f32 %v4637, %v4780
  %v4813 = vmul.f32 %v4639, %v4781
  %v4814 = vmul.f32 %v4641, %v4782
  %v4815 = vmul.f32 %v4643, %v4783
  %v4816 = vmul.f32 %v4645, %v4784
  %v4817 = vmul.f32 %v4647, %v4785
  %v4818 = vmul.f32 %v4649, %v4786
  %v4819 = vmul.f32 %v4651, %v4787
  %v4820 = vmul.f32 %v4653, %v4788
  %v4821 = vmul.f32 %v4655, %v4789
  %v4822 = vmul.f32 %v4657, %v4790
  %v4823 = vmul.f32 %v4659, %v4791
  %v4824 = vmul.f32 %v4661, %v4792
  %v4825 = vmul.f32 %v4663, %v4793
  %v4826 = vmul.f32 %v4665, %v4794
  %v4827 = vmul.f32 %v4667, %v4795
  %v4828 = vpack.c.bf16 %v4797, %v4796
  %v4829 = vpack.c.bf16 %v4799, %v4798
  %v4830 = vpack.c.bf16 %v4801, %v4800
  %v4831 = vpack.c.bf16 %v4803, %v4802
  %v4832 = vpack.c.bf16 %v4805, %v4804
  %v4833 = vpack.c.bf16 %v4807, %v4806
  %v4834 = vpack.c.bf16 %v4809, %v4808
  %v4835 = vpack.c.bf16 %v4811, %v4810
  %v4836 = vpack.c.bf16 %v4813, %v4812
  %v4837 = vpack.c.bf16 %v4815, %v4814
  %v4838 = vpack.c.bf16 %v4817, %v4816
  %v4839 = vpack.c.bf16 %v4819, %v4818
  %v4840 = vpack.c.bf16 %v4821, %v4820
  %v4841 = vpack.c.bf16 %v4823, %v4822
  %v4842 = vpack.c.bf16 %v4825, %v4824
  %v4843 = vpack.c.bf16 %v4827, %v4826
  %4844 = vrot.lane.b32.xlu0 %v1103, 40
  %v4845 = vpop.permute.xlu0 %4844
  %4846 = vrot.lane.b32.xlu0 %v1104, 40
  %v4847 = vpop.permute.xlu0 %4846
  %4848 = vrot.lane.b32.xlu0 %v1105, 40
  %v4849 = vpop.permute.xlu0 %4848
  %4850 = vrot.lane.b32.xlu0 %v1106, 40
  %v4851 = vpop.permute.xlu0 %4850
  %v4857 = vsel %vm589, %v4828, 0
  %v4860 = vsel %vm589, %v4829, 0
  %v4863 = vsel %vm589, %v4830, 0
  %v4866 = vsel %vm589, %v4831, 0
  %4868 = vmatprep.subr.bf16.mxu0 0
  %4869 = vmatpush1.bf16.msra.mxu0 %v4845
  %4870 = vmatprep.subr.bf16.mxu0 0
  %4871 = vmatpush1.bf16.msra.mxu0 %v4847
  %4872 = vmatprep.subr.bf16.mxu0 0
  %4873 = vmatpush1.bf16.msra.mxu0 %v4849
  %4874 = vmatprep.subr.bf16.mxu0 0
  %4875 = vmatpush1.bf16.msra.mxu0 %v4851
  %4876 = vmatprep.subr.bf16.mxu0 0
  %4877 = vmatpush1.bf16.msra.mxu0 0
  %4878 = vmatprep.subr.bf16.mxu0 0
  %4879 = vmatpush1.bf16.msra.mxu0 0
  %4880 = vmatprep.subr.bf16.mxu0 0
  %4881 = vmatpush1.bf16.msra.mxu0 0
  %4882 = vmatprep.subr.bf16.mxu0 0
  %4883 = vmatpush1.bf16.msra.mxu0 0
  %4884 = vmatprep.subr.bf16.mxu0 0
  %4885 = vmatpush1.bf16.msra.mxu0 0
  %4886 = vmatprep.subr.bf16.mxu0 0
  %4887 = vmatpush1.bf16.msra.mxu0 0
  %4888 = vmatprep.subr.bf16.mxu0 0
  %4889 = vmatpush1.bf16.msra.mxu0 0
  %4890 = vmatprep.subr.bf16.mxu0 0
  %4891 = vmatpush1.bf16.msra.mxu0 0
  %4892 = vmatprep.subr.bf16.mxu0 0
  %4893 = vmatpush1.bf16.msra.mxu0 0
  %4894 = vmatprep.subr.bf16.mxu0 0
  %4895 = vmatpush1.bf16.msra.mxu0 0
  %4896 = vmatprep.subr.bf16.mxu0 0
  %4897 = vmatpush1.bf16.msra.mxu0 0
  %4898 = vmatprep.subr.bf16.mxu0 0
  %4899 = vmatpush1.bf16.msra.mxu0 0
  %4900 = vmatprep.mubr.bf16.mxu0 0
  %4901 = vmatmul.mubr.bf16.gmra.mrb[0].mxu0 %v4857
  %v4902 = vpop.f32.mrb[0].mxu0
  %v4903 = vadd.f32 0.0, %v4902
  %v4904 = vpop.f32.mrb[0].mxu0
  %v4905 = vpop.f32.mrb[0].mxu0
  %v4906 = vadd.f32 0.0, %v4905
  %v4907 = vpop.f32.mrb[0].mxu0
  %4908 = vmatprep.mubr.bf16.mxu0 0
  %4909 = vmatmul.mubr.bf16.gmra.mrb[0].mxu0 %v4860
  %v4910 = vpop.f32.mrb[0].mxu0
  %v4911 = vadd.f32 0.0, %v4910
  %v4912 = vpop.f32.mrb[0].mxu0
  %v4913 = vpop.f32.mrb[0].mxu0
  %v4914 = vadd.f32 0.0, %v4913
  %v4915 = vpop.f32.mrb[0].mxu0
  %4916 = vmatprep.mubr.bf16.mxu0 0
  %4917 = vmatmul.mubr.bf16.gmra.mrb[0].mxu0 %v4863
  %v4918 = vpop.f32.mrb[0].mxu0
  %v4919 = vadd.f32 0.0, %v4918
  %v4920 = vpop.f32.mrb[0].mxu0
  %v4921 = vpop.f32.mrb[0].mxu0
  %v4922 = vadd.f32 0.0, %v4921
  %v4923 = vpop.f32.mrb[0].mxu0
  %4924 = vmatprep.mubr.bf16.mxu0 0
  %4925 = vmatmul.mubr.bf16.gmra.mrb[0].mxu0 %v4866
  %v4926 = vpop.f32.mrb[0].mxu0
  %v4927 = vadd.f32 0.0, %v4926
  %v4928 = vpop.f32.mrb[0].mxu0
  %v4929 = vpop.f32.mrb[0].mxu0
  %v4930 = vadd.f32 0.0, %v4929
  %v4931 = vpop.f32.mrb[0].mxu0
  %4932 = vdwg.mxu0
  %4933 = vrot.lane.b32.xlu0 %v1107, 40
  %v4934 = vpop.permute.xlu0 %4933
  %4935 = vrot.lane.b32.xlu0 %v1108, 40
  %v4936 = vpop.permute.xlu0 %4935
  %4937 = vrot.lane.b32.xlu0 %v1109, 40
  %v4938 = vpop.permute.xlu0 %4937
  %4939 = vrot.lane.b32.xlu0 %v1110, 40
  %v4940 = vpop.permute.xlu0 %4939
  %v4946 = vsel %vm589, %v4832, 0
  %v4949 = vsel %vm589, %v4833, 0
  %v4952 = vsel %vm589, %v4834, 0
  %v4955 = vsel %vm589, %v4835, 0
  %4957 = vmatprep.subr.bf16.mxu0 0
  %4958 = vmatpush1.bf16.msra.mxu0 %v4934
  %4959 = vmatprep.subr.bf16.mxu0 0
  %4960 = vmatpush1.bf16.msra.mxu0 %v4936
  %4961 = vmatprep.subr.bf16.mxu0 0
  %4962 = vmatpush1.bf16.msra.mxu0 %v4938
  %4963 = vmatprep.subr.bf16.mxu0 0
  %4964 = vmatpush1.bf16.msra.mxu0 %v4940
  %4965 = vmatprep.subr.bf16.mxu0 0
  %4966 = vmatpush1.bf16.msra.mxu0 0
  %4967 = vmatprep.subr.bf16.mxu0 0
  %4968 = vmatpush1.bf16.msra.mxu0 0
  %4969 = vmatprep.subr.bf16.mxu0 0
  %4970 = vmatpush1.bf16.msra.mxu0 0
  %4971 = vmatprep.subr.bf16.mxu0 0
  %4972 = vmatpush1.bf16.msra.mxu0 0
  %4973 = vmatprep.subr.bf16.mxu0 0
  %4974 = vmatpush1.bf16.msra.mxu0 0
  %4975 = vmatprep.subr.bf16.mxu0 0
  %4976 = vmatpush1.bf16.msra.mxu0 0
  %4977 = vmatprep.subr.bf16.mxu0 0
  %4978 = vmatpush1.bf16.msra.mxu0 0
  %4979 = vmatprep.subr.bf16.mxu0 0
  %4980 = vmatpush1.bf16.msra.mxu0 0
  %4981 = vmatprep.subr.bf16.mxu0 0
  %4982 = vmatpush1.bf16.msra.mxu0 0
  %4983 = vmatprep.subr.bf16.mxu0 0
  %4984 = vmatpush1.bf16.msra.mxu0 0
  %4985 = vmatprep.subr.bf16.mxu0 0
  %4986 = vmatpush1.bf16.msra.mxu0 0
  %4987 = vmatprep.subr.bf16.mxu0 0
  %4988 = vmatpush1.bf16.msra.mxu0 0
  %4989 = vmatprep.mubr.bf16.mxu0 0
  %4990 = vmatmul.mubr.bf16.gmra.mrb[0].mxu0 %v4946
  %v4991 = vpop.f32.mrb[0].mxu0
  %v4992 = vadd.f32 0.0, %v4991
  %v4993 = vpop.f32.mrb[0].mxu0
  %v4994 = vpop.f32.mrb[0].mxu0
  %v4995 = vadd.f32 0.0, %v4994
  %v4996 = vpop.f32.mrb[0].mxu0
  %4997 = vmatprep.mubr.bf16.mxu0 0
  %4998 = vmatmul.mubr.bf16.gmra.mrb[0].mxu0 %v4949
  %v4999 = vpop.f32.mrb[0].mxu0
  %v5000 = vadd.f32 0.0, %v4999
  %v5001 = vpop.f32.mrb[0].mxu0
  %v5002 = vpop.f32.mrb[0].mxu0
  %v5003 = vadd.f32 0.0, %v5002
  %v5004 = vpop.f32.mrb[0].mxu0
  %5005 = vmatprep.mubr.bf16.mxu0 0
  %5006 = vmatmul.mubr.bf16.gmra.mrb[0].mxu0 %v4952
  %v5007 = vpop.f32.mrb[0].mxu0
  %v5008 = vadd.f32 0.0, %v5007
  %v5009 = vpop.f32.mrb[0].mxu0
  %v5010 = vpop.f32.mrb[0].mxu0
  %v5011 = vadd.f32 0.0, %v5010
  %v5012 = vpop.f32.mrb[0].mxu0
  %5013 = vmatprep.mubr.bf16.mxu0 0
  %5014 = vmatmul.mubr.bf16.gmra.mrb[0].mxu0 %v4955
  %v5015 = vpop.f32.mrb[0].mxu0
  %v5016 = vadd.f32 0.0, %v5015
  %v5017 = vpop.f32.mrb[0].mxu0
  %v5018 = vpop.f32.mrb[0].mxu0
  %v5019 = vadd.f32 0.0, %v5018
  %v5020 = vpop.f32.mrb[0].mxu0
  %5021 = vdwg.mxu0
  %5022 = vrot.lane.b32.xlu0 %v1111, 40
  %v5023 = vpop.permute.xlu0 %5022
  %5024 = vrot.lane.b32.xlu0 %v1112, 40
  %v5025 = vpop.permute.xlu0 %5024
  %5026 = vrot.lane.b32.xlu0 %v1113, 40
  %v5027 = vpop.permute.xlu0 %5026
  %5028 = vrot.lane.b32.xlu0 %v1114, 40
  %v5029 = vpop.permute.xlu0 %5028
  %v5035 = vsel %vm589, %v4836, 0
  %v5038 = vsel %vm589, %v4837, 0
  %v5041 = vsel %vm589, %v4838, 0
  %v5044 = vsel %vm589, %v4839, 0
  %5046 = vmatprep.subr.bf16.mxu0 0
  %5047 = vmatpush1.bf16.msra.mxu0 %v5023
  %5048 = vmatprep.subr.bf16.mxu0 0
  %5049 = vmatpush1.bf16.msra.mxu0 %v5025
  %5050 = vmatprep.subr.bf16.mxu0 0
  %5051 = vmatpush1.bf16.msra.mxu0 %v5027
  %5052 = vmatprep.subr.bf16.mxu0 0
  %5053 = vmatpush1.bf16.msra.mxu0 %v5029
  %5054 = vmatprep.subr.bf16.mxu0 0
  %5055 = vmatpush1.bf16.msra.mxu0 0
  %5056 = vmatprep.subr.bf16.mxu0 0
  %5057 = vmatpush1.bf16.msra.mxu0 0
  %5058 = vmatprep.subr.bf16.mxu0 0
  %5059 = vmatpush1.bf16.msra.mxu0 0
  %5060 = vmatprep.subr.bf16.mxu0 0
  %5061 = vmatpush1.bf16.msra.mxu0 0
  %5062 = vmatprep.subr.bf16.mxu0 0
  %5063 = vmatpush1.bf16.msra.mxu0 0
  %5064 = vmatprep.subr.bf16.mxu0 0
  %5065 = vmatpush1.bf16.msra.mxu0 0
  %5066 = vmatprep.subr.bf16.mxu0 0
  %5067 = vmatpush1.bf16.msra.mxu0 0
  %5068 = vmatprep.subr.bf16.mxu0 0
  %5069 = vmatpush1.bf16.msra.mxu0 0
  %5070 = vmatprep.subr.bf16.mxu0 0
  %5071 = vmatpush1.bf16.msra.mxu0 0
  %5072 = vmatprep.subr.bf16.mxu0 0
  %5073 = vmatpush1.bf16.msra.mxu0 0
  %5074 = vmatprep.subr.bf16.mxu0 0
  %5075 = vmatpush1.bf16.msra.mxu0 0
  %5076 = vmatprep.subr.bf16.mxu0 0
  %5077 = vmatpush1.bf16.msra.mxu0 0
  %5078 = vmatprep.mubr.bf16.mxu0 0
  %5079 = vmatmul.mubr.bf16.gmra.mrb[0].mxu0 %v5035
  %v5080 = vpop.f32.mrb[0].mxu0
  %v5081 = vadd.f32 0.0, %v5080
  %v5082 = vpop.f32.mrb[0].mxu0
  %v5083 = vpop.f32.mrb[0].mxu0
  %v5084 = vadd.f32 0.0, %v5083
  %v5085 = vpop.f32.mrb[0].mxu0
  %5086 = vmatprep.mubr.bf16.mxu0 0
  %5087 = vmatmul.mubr.bf16.gmra.mrb[0].mxu0 %v5038
  %v5088 = vpop.f32.mrb[0].mxu0
  %v5089 = vadd.f32 0.0, %v5088
  %v5090 = vpop.f32.mrb[0].mxu0
  %v5091 = vpop.f32.mrb[0].mxu0
  %v5092 = vadd.f32 0.0, %v5091
  %v5093 = vpop.f32.mrb[0].mxu0
  %5094 = vmatprep.mubr.bf16.mxu0 0
  %5095 = vmatmul.mubr.bf16.gmra.mrb[0].mxu0 %v5041
  %v5096 = vpop.f32.mrb[0].mxu0
  %v5097 = vadd.f32 0.0, %v5096
  %v5098 = vpop.f32.mrb[0].mxu0
  %v5099 = vpop.f32.mrb[0].mxu0
  %v5100 = vadd.f32 0.0, %v5099
  %v5101 = vpop.f32.mrb[0].mxu0
  %5102 = vmatprep.mubr.bf16.mxu0 0
  %5103 = vmatmul.mubr.bf16.gmra.mrb[0].mxu0 %v5044
  %v5104 = vpop.f32.mrb[0].mxu0
  %v5105 = vadd.f32 0.0, %v5104
  %v5106 = vpop.f32.mrb[0].mxu0
  %v5107 = vpop.f32.mrb[0].mxu0
  %v5108 = vadd.f32 0.0, %v5107
  %v5109 = vpop.f32.mrb[0].mxu0
  %5110 = vdwg.mxu0
  %5111 = vrot.lane.b32.xlu0 %v1115, 40
  %v5112 = vpop.permute.xlu0 %5111
  %5113 = vrot.lane.b32.xlu0 %v1116, 40
  %v5114 = vpop.permute.xlu0 %5113
  %5115 = vrot.lane.b32.xlu0 %v1117, 40
  %v5116 = vpop.permute.xlu0 %5115
  %5117 = vrot.lane.b32.xlu0 %v1118, 40
  %v5118 = vpop.permute.xlu0 %5117
  %v5124 = vsel %vm589, %v4840, 0
  %v5127 = vsel %vm589, %v4841, 0
  %v5130 = vsel %vm589, %v4842, 0
  %v5133 = vsel %vm589, %v4843, 0
  %5135 = vmatprep.subr.bf16.mxu0 0
  %5136 = vmatpush1.bf16.msra.mxu0 %v5112
  %5137 = vmatprep.subr.bf16.mxu0 0
  %5138 = vmatpush1.bf16.msra.mxu0 %v5114
  %5139 = vmatprep.subr.bf16.mxu0 0
  %5140 = vmatpush1.bf16.msra.mxu0 %v5116
  %5141 = vmatprep.subr.bf16.mxu0 0
  %5142 = vmatpush1.bf16.msra.mxu0 %v5118
  %5143 = vmatprep.subr.bf16.mxu0 0
  %5144 = vmatpush1.bf16.msra.mxu0 0
  %5145 = vmatprep.subr.bf16.mxu0 0
  %5146 = vmatpush1.bf16.msra.mxu0 0
  %5147 = vmatprep.subr.bf16.mxu0 0
  %5148 = vmatpush1.bf16.msra.mxu0 0
  %5149 = vmatprep.subr.bf16.mxu0 0
  %5150 = vmatpush1.bf16.msra.mxu0 0
  %5151 = vmatprep.subr.bf16.mxu0 0
  %5152 = vmatpush1.bf16.msra.mxu0 0
  %5153 = vmatprep.subr.bf16.mxu0 0
  %5154 = vmatpush1.bf16.msra.mxu0 0
  %5155 = vmatprep.subr.bf16.mxu0 0
  %5156 = vmatpush1.bf16.msra.mxu0 0
  %5157 = vmatprep.subr.bf16.mxu0 0
  %5158 = vmatpush1.bf16.msra.mxu0 0
  %5159 = vmatprep.subr.bf16.mxu0 0
  %5160 = vmatpush1.bf16.msra.mxu0 0
  %5161 = vmatprep.subr.bf16.mxu0 0
  %5162 = vmatpush1.bf16.msra.mxu0 0
  %5163 = vmatprep.subr.bf16.mxu0 0
  %5164 = vmatpush1.bf16.msra.mxu0 0
  %5165 = vmatprep.subr.bf16.mxu0 0
  %5166 = vmatpush1.bf16.msra.mxu0 0
  %5167 = vmatprep.mubr.bf16.mxu0 0
  %5168 = vmatmul.mubr.bf16.gmra.mrb[0].mxu0 %v5124
  %v5169 = vpop.f32.mrb[0].mxu0
  %v5170 = vadd.f32 0.0, %v5169
  %v5171 = vpop.f32.mrb[0].mxu0
  %v5172 = vpop.f32.mrb[0].mxu0
  %v5173 = vadd.f32 0.0, %v5172
  %v5174 = vpop.f32.mrb[0].mxu0
  %5175 = vmatprep.mubr.bf16.mxu0 0
  %5176 = vmatmul.mubr.bf16.gmra.mrb[0].mxu0 %v5127
  %v5177 = vpop.f32.mrb[0].mxu0
  %v5178 = vadd.f32 0.0, %v5177
  %v5179 = vpop.f32.mrb[0].mxu0
  %v5180 = vpop.f32.mrb[0].mxu0
  %v5181 = vadd.f32 0.0, %v5180
  %v5182 = vpop.f32.mrb[0].mxu0
  %5183 = vmatprep.mubr.bf16.mxu0 0
  %5184 = vmatmul.mubr.bf16.gmra.mrb[0].mxu0 %v5130
  %v5185 = vpop.f32.mrb[0].mxu0
  %v5186 = vadd.f32 0.0, %v5185
  %v5187 = vpop.f32.mrb[0].mxu0
  %v5188 = vpop.f32.mrb[0].mxu0
  %v5189 = vadd.f32 0.0, %v5188
  %v5190 = vpop.f32.mrb[0].mxu0
  %5191 = vmatprep.mubr.bf16.mxu0 0
  %5192 = vmatmul.mubr.bf16.gmra.mrb[0].mxu0 %v5133
  %v5193 = vpop.f32.mrb[0].mxu0
  %v5194 = vadd.f32 0.0, %v5193
  %v5195 = vpop.f32.mrb[0].mxu0
  %v5196 = vpop.f32.mrb[0].mxu0
  %v5197 = vadd.f32 0.0, %v5196
  %v5198 = vpop.f32.mrb[0].mxu0
  %5199 = vdwg.mxu0
  %5232 = vrot.lane.b32.xlu0 %v2871, 8
  %v5233 = vpop.permute.xlu0 %5232
  %5234 = vrot.lane.b32.xlu0 %v2874, 8
  %v5235 = vpop.permute.xlu0 %5234
  %5236 = vrot.lane.b32.xlu0 %v2879, 8
  %v5237 = vpop.permute.xlu0 %5236
  %5238 = vrot.lane.b32.xlu0 %v2882, 8
  %v5239 = vpop.permute.xlu0 %5238
  %5240 = vrot.lane.b32.xlu0 %v2887, 8
  %v5241 = vpop.permute.xlu0 %5240
  %5242 = vrot.lane.b32.xlu0 %v2890, 8
  %v5243 = vpop.permute.xlu0 %5242
  %5244 = vrot.lane.b32.xlu0 %v2895, 8
  %v5245 = vpop.permute.xlu0 %5244
  %5246 = vrot.lane.b32.xlu0 %v2898, 8
  %v5247 = vpop.permute.xlu0 %5246
  %5248 = vrot.lane.b32.xlu0 %v2960, 8
  %v5249 = vpop.permute.xlu0 %5248
  %5250 = vrot.lane.b32.xlu0 %v2963, 8
  %v5251 = vpop.permute.xlu0 %5250
  %5252 = vrot.lane.b32.xlu0 %v2968, 8
  %v5253 = vpop.permute.xlu0 %5252
  %5254 = vrot.lane.b32.xlu0 %v2971, 8
  %v5255 = vpop.permute.xlu0 %5254
  %5256 = vrot.lane.b32.xlu0 %v2976, 8
  %v5257 = vpop.permute.xlu0 %5256
  %5258 = vrot.lane.b32.xlu0 %v2979, 8
  %v5259 = vpop.permute.xlu0 %5258
  %5260 = vrot.lane.b32.xlu0 %v2984, 8
  %v5261 = vpop.permute.xlu0 %5260
  %5262 = vrot.lane.b32.xlu0 %v2987, 8
  %v5263 = vpop.permute.xlu0 %5262
  %5264 = vrot.lane.b32.xlu0 %v3049, 8
  %v5265 = vpop.permute.xlu0 %5264
  %5266 = vrot.lane.b32.xlu0 %v3052, 8
  %v5267 = vpop.permute.xlu0 %5266
  %5268 = vrot.lane.b32.xlu0 %v3057, 8
  %v5269 = vpop.permute.xlu0 %5268
  %5270 = vrot.lane.b32.xlu0 %v3060, 8
  %v5271 = vpop.permute.xlu0 %5270
  %5272 = vrot.lane.b32.xlu0 %v3065, 8
  %v5273 = vpop.permute.xlu0 %5272
  %5274 = vrot.lane.b32.xlu0 %v3068, 8
  %v5275 = vpop.permute.xlu0 %5274
  %5276 = vrot.lane.b32.xlu0 %v3073, 8
  %v5277 = vpop.permute.xlu0 %5276
  %5278 = vrot.lane.b32.xlu0 %v3076, 8
  %v5279 = vpop.permute.xlu0 %5278
  %5280 = vrot.lane.b32.xlu0 %v3138, 8
  %v5281 = vpop.permute.xlu0 %5280
  %5282 = vrot.lane.b32.xlu0 %v3141, 8
  %v5283 = vpop.permute.xlu0 %5282
  %5284 = vrot.lane.b32.xlu0 %v3146, 8
  %v5285 = vpop.permute.xlu0 %5284
  %5286 = vrot.lane.b32.xlu0 %v3149, 8
  %v5287 = vpop.permute.xlu0 %5286
  %5288 = vrot.lane.b32.xlu0 %v3154, 8
  %v5289 = vpop.permute.xlu0 %5288
  %5290 = vrot.lane.b32.xlu0 %v3157, 8
  %v5291 = vpop.permute.xlu0 %5290
  %5292 = vrot.lane.b32.xlu0 %v3162, 8
  %v5293 = vpop.permute.xlu0 %5292
  %5294 = vrot.lane.b32.xlu0 %v3165, 8
  %v5295 = vpop.permute.xlu0 %5294
  %5360 = vrot.lane.b32.xlu0 %v3887, 16
  %v5361 = vpop.permute.xlu0 %5360
  %5362 = vrot.lane.b32.xlu0 %v3890, 16
  %v5363 = vpop.permute.xlu0 %5362
  %5364 = vrot.lane.b32.xlu0 %v3895, 16
  %v5365 = vpop.permute.xlu0 %5364
  %5366 = vrot.lane.b32.xlu0 %v3898, 16
  %v5367 = vpop.permute.xlu0 %5366
  %5368 = vrot.lane.b32.xlu0 %v3903, 16
  %v5369 = vpop.permute.xlu0 %5368
  %5370 = vrot.lane.b32.xlu0 %v3906, 16
  %v5371 = vpop.permute.xlu0 %5370
  %5372 = vrot.lane.b32.xlu0 %v3911, 16
  %v5373 = vpop.permute.xlu0 %5372
  %5374 = vrot.lane.b32.xlu0 %v3914, 16
  %v5375 = vpop.permute.xlu0 %5374
  %5376 = vrot.lane.b32.xlu0 %v3976, 16
  %v5377 = vpop.permute.xlu0 %5376
  %5378 = vrot.lane.b32.xlu0 %v3979, 16
  %v5379 = vpop.permute.xlu0 %5378
  %5380 = vrot.lane.b32.xlu0 %v3984, 16
  %v5381 = vpop.permute.xlu0 %5380
  %5382 = vrot.lane.b32.xlu0 %v3987, 16
  %v5383 = vpop.permute.xlu0 %5382
  %5384 = vrot.lane.b32.xlu0 %v3992, 16
  %v5385 = vpop.permute.xlu0 %5384
  %5386 = vrot.lane.b32.xlu0 %v3995, 16
  %v5387 = vpop.permute.xlu0 %5386
  %5388 = vrot.lane.b32.xlu0 %v4000, 16
  %v5389 = vpop.permute.xlu0 %5388
  %5390 = vrot.lane.b32.xlu0 %v4003, 16
  %v5391 = vpop.permute.xlu0 %5390
  %5392 = vrot.lane.b32.xlu0 %v4065, 16
  %v5393 = vpop.permute.xlu0 %5392
  %5394 = vrot.lane.b32.xlu0 %v4068, 16
  %v5395 = vpop.permute.xlu0 %5394
  %5396 = vrot.lane.b32.xlu0 %v4073, 16
  %v5397 = vpop.permute.xlu0 %5396
  %5398 = vrot.lane.b32.xlu0 %v4076, 16
  %v5399 = vpop.permute.xlu0 %5398
  %5400 = vrot.lane.b32.xlu0 %v4081, 16
  %v5401 = vpop.permute.xlu0 %5400
  %5402 = vrot.lane.b32.xlu0 %v4084, 16
  %v5403 = vpop.permute.xlu0 %5402
  %5404 = vrot.lane.b32.xlu0 %v4089, 16
  %v5405 = vpop.permute.xlu0 %5404
  %5406 = vrot.lane.b32.xlu0 %v4092, 16
  %v5407 = vpop.permute.xlu0 %5406
  %5408 = vrot.lane.b32.xlu0 %v4154, 16
  %v5409 = vpop.permute.xlu0 %5408
  %5410 = vrot.lane.b32.xlu0 %v4157, 16
  %v5411 = vpop.permute.xlu0 %5410
  %5412 = vrot.lane.b32.xlu0 %v4162, 16
  %v5413 = vpop.permute.xlu0 %5412
  %5414 = vrot.lane.b32.xlu0 %v4165, 16
  %v5415 = vpop.permute.xlu0 %5414
  %5416 = vrot.lane.b32.xlu0 %v4170, 16
  %v5417 = vpop.permute.xlu0 %5416
  %5418 = vrot.lane.b32.xlu0 %v4173, 16
  %v5419 = vpop.permute.xlu0 %5418
  %5420 = vrot.lane.b32.xlu0 %v4178, 16
  %v5421 = vpop.permute.xlu0 %5420
  %5422 = vrot.lane.b32.xlu0 %v4181, 16
  %v5423 = vpop.permute.xlu0 %5422
  %5488 = vrot.lane.b32.xlu0 %v4903, 24
  %v5489 = vpop.permute.xlu0 %5488
  %5490 = vrot.lane.b32.xlu0 %v4906, 24
  %v5491 = vpop.permute.xlu0 %5490
  %5492 = vrot.lane.b32.xlu0 %v4911, 24
  %v5493 = vpop.permute.xlu0 %5492
  %5494 = vrot.lane.b32.xlu0 %v4914, 24
  %v5495 = vpop.permute.xlu0 %5494
  %5496 = vrot.lane.b32.xlu0 %v4919, 24
  %v5497 = vpop.permute.xlu0 %5496
  %5498 = vrot.lane.b32.xlu0 %v4922, 24
  %v5499 = vpop.permute.xlu0 %5498
  %5500 = vrot.lane.b32.xlu0 %v4927, 24
  %v5501 = vpop.permute.xlu0 %5500
  %5502 = vrot.lane.b32.xlu0 %v4930, 24
  %v5503 = vpop.permute.xlu0 %5502
  %5504 = vrot.lane.b32.xlu0 %v4992, 24
  %v5505 = vpop.permute.xlu0 %5504
  %5506 = vrot.lane.b32.xlu0 %v4995, 24
  %v5507 = vpop.permute.xlu0 %5506
  %5508 = vrot.lane.b32.xlu0 %v5000, 24
  %v5509 = vpop.permute.xlu0 %5508
  %5510 = vrot.lane.b32.xlu0 %v5003, 24
  %v5511 = vpop.permute.xlu0 %5510
  %5512 = vrot.lane.b32.xlu0 %v5008, 24
  %v5513 = vpop.permute.xlu0 %5512
  %5514 = vrot.lane.b32.xlu0 %v5011, 24
  %v5515 = vpop.permute.xlu0 %5514
  %5516 = vrot.lane.b32.xlu0 %v5016, 24
  %v5517 = vpop.permute.xlu0 %5516
  %5518 = vrot.lane.b32.xlu0 %v5019, 24
  %v5519 = vpop.permute.xlu0 %5518
  %5520 = vrot.lane.b32.xlu0 %v5081, 24
  %v5521 = vpop.permute.xlu0 %5520
  %5522 = vrot.lane.b32.xlu0 %v5084, 24
  %v5523 = vpop.permute.xlu0 %5522
  %5524 = vrot.lane.b32.xlu0 %v5089, 24
  %v5525 = vpop.permute.xlu0 %5524
  %5526 = vrot.lane.b32.xlu0 %v5092, 24
  %v5527 = vpop.permute.xlu0 %5526
  %5528 = vrot.lane.b32.xlu0 %v5097, 24
  %v5529 = vpop.permute.xlu0 %5528
  %5530 = vrot.lane.b32.xlu0 %v5100, 24
  %v5531 = vpop.permute.xlu0 %5530
  %5532 = vrot.lane.b32.xlu0 %v5105, 24
  %v5533 = vpop.permute.xlu0 %5532
  %5534 = vrot.lane.b32.xlu0 %v5108, 24
  %v5535 = vpop.permute.xlu0 %5534
  %5536 = vrot.lane.b32.xlu0 %v5170, 24
  %v5537 = vpop.permute.xlu0 %5536
  %5538 = vrot.lane.b32.xlu0 %v5173, 24
  %v5539 = vpop.permute.xlu0 %5538
  %5540 = vrot.lane.b32.xlu0 %v5178, 24
  %v5541 = vpop.permute.xlu0 %5540
  %5542 = vrot.lane.b32.xlu0 %v5181, 24
  %v5543 = vpop.permute.xlu0 %5542
  %5544 = vrot.lane.b32.xlu0 %v5186, 24
  %v5545 = vpop.permute.xlu0 %5544
  %5546 = vrot.lane.b32.xlu0 %v5189, 24
  %v5547 = vpop.permute.xlu0 %5546
  %5548 = vrot.lane.b32.xlu0 %v5194, 24
  %v5549 = vpop.permute.xlu0 %5548
  %5550 = vrot.lane.b32.xlu0 %v5197, 24
  %v5551 = vpop.permute.xlu0 %5550
  %v5584 = vsel %vm1131, %v1827, %v5233
  %v5585 = vsel %vm1131, %v1830, %v5235
  %v5586 = vsel %vm1131, %v1835, %v5237
  %v5587 = vsel %vm1131, %v1838, %v5239
  %v5588 = vsel %vm1131, %v1843, %v5241
  %v5589 = vsel %vm1131, %v1846, %v5243
  %v5590 = vsel %vm1131, %v1851, %v5245
  %v5591 = vsel %vm1131, %v1854, %v5247
  %v5592 = vsel %vm1131, %v1920, %v5249
  %v5593 = vsel %vm1131, %v1923, %v5251
  %v5594 = vsel %vm1131, %v1928, %v5253
  %v5595 = vsel %vm1131, %v1931, %v5255
  %v5596 = vsel %vm1131, %v1936, %v5257
  %v5597 = vsel %vm1131, %v1939, %v5259
  %v5598 = vsel %vm1131, %v1944, %v5261
  %v5599 = vsel %vm1131, %v1947, %v5263
  %v5600 = vsel %vm1131, %v2013, %v5265
  %v5601 = vsel %vm1131, %v2016, %v5267
  %v5602 = vsel %vm1131, %v2021, %v5269
  %v5603 = vsel %vm1131, %v2024, %v5271
  %v5604 = vsel %vm1131, %v2029, %v5273
  %v5605 = vsel %vm1131, %v2032, %v5275
  %v5606 = vsel %vm1131, %v2037, %v5277
  %v5607 = vsel %vm1131, %v2040, %v5279
  %v5608 = vsel %vm1131, %v2106, %v5281
  %v5609 = vsel %vm1131, %v2109, %v5283
  %v5610 = vsel %vm1131, %v2114, %v5285
  %v5611 = vsel %vm1131, %v2117, %v5287
  %v5612 = vsel %vm1131, %v2122, %v5289
  %v5613 = vsel %vm1131, %v2125, %v5291
  %v5614 = vsel %vm1131, %v2130, %v5293
  %v5615 = vsel %vm1131, %v2133, %v5295
  %vm5616 = vcmask 130048
  %v5617 = vsel %vm5616, %v5584, %v5361
  %v5618 = vsel %vm5616, %v5585, %v5363
  %v5619 = vsel %vm5616, %v5586, %v5365
  %v5620 = vsel %vm5616, %v5587, %v5367
  %v5621 = vsel %vm5616, %v5588, %v5369
  %v5622 = vsel %vm5616, %v5589, %v5371
  %v5623 = vsel %vm5616, %v5590, %v5373
  %v5624 = vsel %vm5616, %v5591, %v5375
  %v5625 = vsel %vm5616, %v5592, %v5377
  %v5626 = vsel %vm5616, %v5593, %v5379
  %v5627 = vsel %vm5616, %v5594, %v5381
  %v5628 = vsel %vm5616, %v5595, %v5383
  %v5629 = vsel %vm5616, %v5596, %v5385
  %v5630 = vsel %vm5616, %v5597, %v5387
  %v5631 = vsel %vm5616, %v5598, %v5389
  %v5632 = vsel %vm5616, %v5599, %v5391
  %v5633 = vsel %vm5616, %v5600, %v5393
  %v5634 = vsel %vm5616, %v5601, %v5395
  %v5635 = vsel %vm5616, %v5602, %v5397
  %v5636 = vsel %vm5616, %v5603, %v5399
  %v5637 = vsel %vm5616, %v5604, %v5401
  %v5638 = vsel %vm5616, %v5605, %v5403
  %v5639 = vsel %vm5616, %v5606, %v5405
  %v5640 = vsel %vm5616, %v5607, %v5407
  %v5641 = vsel %vm5616, %v5608, %v5409
  %v5642 = vsel %vm5616, %v5609, %v5411
  %v5643 = vsel %vm5616, %v5610, %v5413
  %v5644 = vsel %vm5616, %v5611, %v5415
  %v5645 = vsel %vm5616, %v5612, %v5417
  %v5646 = vsel %vm5616, %v5613, %v5419
  %v5647 = vsel %vm5616, %v5614, %v5421
  %v5648 = vsel %vm5616, %v5615, %v5423
  %vm5649 = vcmask 195584
  %v5650 = vsel %vm5649, %v5617, %v5489
  %v5651 = vsel %vm5649, %v5618, %v5491
  %v5652 = vsel %vm5649, %v5619, %v5493
  %v5653 = vsel %vm5649, %v5620, %v5495
  %v5654 = vsel %vm5649, %v5621, %v5497
  %v5655 = vsel %vm5649, %v5622, %v5499
  %v5656 = vsel %vm5649, %v5623, %v5501
  %v5657 = vsel %vm5649, %v5624, %v5503
  %v5658 = vsel %vm5649, %v5625, %v5505
  %v5659 = vsel %vm5649, %v5626, %v5507
  %v5660 = vsel %vm5649, %v5627, %v5509
  %v5661 = vsel %vm5649, %v5628, %v5511
  %v5662 = vsel %vm5649, %v5629, %v5513
  %v5663 = vsel %vm5649, %v5630, %v5515
  %v5664 = vsel %vm5649, %v5631, %v5517
  %v5665 = vsel %vm5649, %v5632, %v5519
  %v5666 = vsel %vm5649, %v5633, %v5521
  %v5667 = vsel %vm5649, %v5634, %v5523
  %v5668 = vsel %vm5649, %v5635, %v5525
  %v5669 = vsel %vm5649, %v5636, %v5527
  %v5670 = vsel %vm5649, %v5637, %v5529
  %v5671 = vsel %vm5649, %v5638, %v5531
  %v5672 = vsel %vm5649, %v5639, %v5533
  %v5673 = vsel %vm5649, %v5640, %v5535
  %v5674 = vsel %vm5649, %v5641, %v5537
  %v5675 = vsel %vm5649, %v5642, %v5539
  %v5676 = vsel %vm5649, %v5643, %v5541
  %v5677 = vsel %vm5649, %v5644, %v5543
  %v5678 = vsel %vm5649, %v5645, %v5545
  %v5679 = vsel %vm5649, %v5646, %v5547
  %v5680 = vsel %vm5649, %v5647, %v5549
  %v5681 = vsel %vm5649, %v5648, %v5551
  %v5682 = vpack.c.bf16 %v5651, %v5650
  %v5683 = vpack.c.bf16 %v5653, %v5652
  %v5684 = vpack.c.bf16 %v5655, %v5654
  %v5685 = vpack.c.bf16 %v5657, %v5656
  %v5686 = vpack.c.bf16 %v5659, %v5658
  %v5687 = vpack.c.bf16 %v5661, %v5660
  %v5688 = vpack.c.bf16 %v5663, %v5662
  %v5689 = vpack.c.bf16 %v5665, %v5664
  %v5690 = vpack.c.bf16 %v5667, %v5666
  %v5691 = vpack.c.bf16 %v5669, %v5668
  %v5692 = vpack.c.bf16 %v5671, %v5670
  %v5693 = vpack.c.bf16 %v5673, %v5672
  %v5694 = vpack.c.bf16 %v5675, %v5674
  %v5695 = vpack.c.bf16 %v5677, %v5676
  %v5696 = vpack.c.bf16 %v5679, %v5678
  %v5697 = vpack.c.bf16 %v5681, %v5680
  %v5698 = vld [vmem:[%s3] sm:$0xf]
  %v5699 = vld [vmem:[%s3 + $0x4] sm:$0xf]
  %v5700 = vld [vmem:[%s3 + $0x8] sm:$0xf]
  %v5701 = vld [vmem:[%s3 + $0xc] sm:$0xf]
  %v5706 = vunpack.c.l.b16 %v5698
  %v5707 = vunpack.c.l.b16 %v5699
  %v5708 = vunpack.c.l.b16 %v5700
  %v5709 = vunpack.c.l.b16 %v5701
  %v5710 = vpack.c.b16 %v5707, %v5706
  %v5711 = vpack.c.b16 %v5709, %v5708
  %v5715 = vsel %vm82, %v5682, 0
  %v5718 = vsel %vm82, %v5683, 0
  %v5721 = vsel %vm82, %v5684, 0
  %v5724 = vsel %vm82, %v5685, 0
  %v5727 = vsel %vm82, %v5686, 0
  %v5730 = vsel %vm82, %v5687, 0
  %v5733 = vsel %vm82, %v5688, 0
  %v5736 = vsel %vm82, %v5689, 0
  %v5739 = vsel %vm82, %v5690, 0
  %v5742 = vsel %vm82, %v5691, 0
  %v5745 = vsel %vm82, %v5692, 0
  %v5748 = vsel %vm82, %v5693, 0
  %v5751 = vsel %vm82, %v5694, 0
  %v5754 = vsel %vm82, %v5695, 0
  %v5757 = vsel %vm82, %v5696, 0
  %v5760 = vsel %vm82, %v5697, 0
  %5762 = vmatprep.subr.bf16.mxu0 0
  %5763 = vmatpush1.bf16.msra.mxu0 %v5710
  %5764 = vmatprep.subr.bf16.mxu0 0
  %5765 = vmatpush1.bf16.msra.mxu0 %v5711
  %5766 = vmatprep.subr.bf16.mxu0 0
  %5767 = vmatpush1.bf16.msra.mxu0 0
  %5768 = vmatprep.subr.bf16.mxu0 0
  %5769 = vmatpush1.bf16.msra.mxu0 0
  %5770 = vmatprep.subr.bf16.mxu0 0
  %5771 = vmatpush1.bf16.msra.mxu0 0
  %5772 = vmatprep.subr.bf16.mxu0 0
  %5773 = vmatpush1.bf16.msra.mxu0 0
  %5774 = vmatprep.subr.bf16.mxu0 0
  %5775 = vmatpush1.bf16.msra.mxu0 0
  %5776 = vmatprep.subr.bf16.mxu0 0
  %5777 = vmatpush1.bf16.msra.mxu0 0
  %5778 = vmatprep.subr.bf16.mxu0 0
  %5779 = vmatpush1.bf16.msra.mxu0 0
  %5780 = vmatprep.subr.bf16.mxu0 0
  %5781 = vmatpush1.bf16.msra.mxu0 0
  %5782 = vmatprep.subr.bf16.mxu0 0
  %5783 = vmatpush1.bf16.msra.mxu0 0
  %5784 = vmatprep.subr.bf16.mxu0 0
  %5785 = vmatpush1.bf16.msra.mxu0 0
  %5786 = vmatprep.subr.bf16.mxu0 0
  %5787 = vmatpush1.bf16.msra.mxu0 0
  %5788 = vmatprep.subr.bf16.mxu0 0
  %5789 = vmatpush1.bf16.msra.mxu0 0
  %5790 = vmatprep.subr.bf16.mxu0 0
  %5791 = vmatpush1.bf16.msra.mxu0 0
  %5792 = vmatprep.subr.bf16.mxu0 0
  %5793 = vmatpush1.bf16.msra.mxu0 0
  %5794 = vmatprep.mubr.bf16.mxu0 0
  %5795 = vmatmul.mubr.bf16.gmra.mrb[0].mxu0 %v5715
  %v5796 = vpop.f32.mrb[0].mxu0
  %v5797 = vadd.f32 0.0, %v5796
  %v5798 = vpop.f32.mrb[0].mxu0
  %v5799 = vpop.f32.mrb[0].mxu0
  %v5800 = vadd.f32 0.0, %v5799
  %v5801 = vpop.f32.mrb[0].mxu0
  %5802 = vmatprep.mubr.bf16.mxu0 0
  %5803 = vmatmul.mubr.bf16.gmra.mrb[0].mxu0 %v5718
  %v5804 = vpop.f32.mrb[0].mxu0
  %v5805 = vadd.f32 0.0, %v5804
  %v5806 = vpop.f32.mrb[0].mxu0
  %v5807 = vpop.f32.mrb[0].mxu0
  %v5808 = vadd.f32 0.0, %v5807
  %v5809 = vpop.f32.mrb[0].mxu0
  %5810 = vmatprep.mubr.bf16.mxu0 0
  %5811 = vmatmul.mubr.bf16.gmra.mrb[0].mxu0 %v5721
  %v5812 = vpop.f32.mrb[0].mxu0
  %v5813 = vadd.f32 0.0, %v5812
  %v5814 = vpop.f32.mrb[0].mxu0
  %v5815 = vpop.f32.mrb[0].mxu0
  %v5816 = vadd.f32 0.0, %v5815
  %v5817 = vpop.f32.mrb[0].mxu0
  %5818 = vmatprep.mubr.bf16.mxu0 0
  %5819 = vmatmul.mubr.bf16.gmra.mrb[0].mxu0 %v5724
  %v5820 = vpop.f32.mrb[0].mxu0
  %v5821 = vadd.f32 0.0, %v5820
  %v5822 = vpop.f32.mrb[0].mxu0
  %v5823 = vpop.f32.mrb[0].mxu0
  %v5824 = vadd.f32 0.0, %v5823
  %v5825 = vpop.f32.mrb[0].mxu0
  %5826 = vmatprep.mubr.bf16.mxu0 0
  %5827 = vmatmul.mubr.bf16.gmra.mrb[0].mxu0 %v5727
  %v5828 = vpop.f32.mrb[0].mxu0
  %v5829 = vadd.f32 0.0, %v5828
  %v5830 = vpop.f32.mrb[0].mxu0
  %v5831 = vpop.f32.mrb[0].mxu0
  %v5832 = vadd.f32 0.0, %v5831
  %v5833 = vpop.f32.mrb[0].mxu0
  %5834 = vmatprep.mubr.bf16.mxu0 0
  %5835 = vmatmul.mubr.bf16.gmra.mrb[0].mxu0 %v5730
  %v5836 = vpop.f32.mrb[0].mxu0
  %v5837 = vadd.f32 0.0, %v5836
  %v5838 = vpop.f32.mrb[0].mxu0
  %v5839 = vpop.f32.mrb[0].mxu0
  %v5840 = vadd.f32 0.0, %v5839
  %v5841 = vpop.f32.mrb[0].mxu0
  %5842 = vmatprep.mubr.bf16.mxu0 0
  %5843 = vmatmul.mubr.bf16.gmra.mrb[0].mxu0 %v5733
  %v5844 = vpop.f32.mrb[0].mxu0
  %v5845 = vadd.f32 0.0, %v5844
  %v5846 = vpop.f32.mrb[0].mxu0
  %v5847 = vpop.f32.mrb[0].mxu0
  %v5848 = vadd.f32 0.0, %v5847
  %v5849 = vpop.f32.mrb[0].mxu0
  %5850 = vmatprep.mubr.bf16.mxu0 0
  %5851 = vmatmul.mubr.bf16.gmra.mrb[0].mxu0 %v5736
  %v5852 = vpop.f32.mrb[0].mxu0
  %v5853 = vadd.f32 0.0, %v5852
  %v5854 = vpop.f32.mrb[0].mxu0
  %v5855 = vpop.f32.mrb[0].mxu0
  %v5856 = vadd.f32 0.0, %v5855
  %v5857 = vpop.f32.mrb[0].mxu0
  %5858 = vmatprep.mubr.bf16.mxu0 0
  %5859 = vmatmul.mubr.bf16.gmra.mrb[0].mxu0 %v5739
  %v5860 = vpop.f32.mrb[0].mxu0
  %v5861 = vadd.f32 0.0, %v5860
  %v5862 = vpop.f32.mrb[0].mxu0
  %v5863 = vpop.f32.mrb[0].mxu0
  %v5864 = vadd.f32 0.0, %v5863
  %v5865 = vpop.f32.mrb[0].mxu0
  %5866 = vmatprep.mubr.bf16.mxu0 0
  %5867 = vmatmul.mubr.bf16.gmra.mrb[0].mxu0 %v5742
  %v5868 = vpop.f32.mrb[0].mxu0
  %v5869 = vadd.f32 0.0, %v5868
  %v5870 = vpop.f32.mrb[0].mxu0
  %v5871 = vpop.f32.mrb[0].mxu0
  %v5872 = vadd.f32 0.0, %v5871
  %v5873 = vpop.f32.mrb[0].mxu0
  %5874 = vmatprep.mubr.bf16.mxu0 0
  %5875 = vmatmul.mubr.bf16.gmra.mrb[0].mxu0 %v5745
  %v5876 = vpop.f32.mrb[0].mxu0
  %v5877 = vadd.f32 0.0, %v5876
  %v5878 = vpop.f32.mrb[0].mxu0
  %v5879 = vpop.f32.mrb[0].mxu0
  %v5880 = vadd.f32 0.0, %v5879
  %v5881 = vpop.f32.mrb[0].mxu0
  %5882 = vmatprep.mubr.bf16.mxu0 0
  %5883 = vmatmul.mubr.bf16.gmra.mrb[0].mxu0 %v5748
  %v5884 = vpop.f32.mrb[0].mxu0
  %v5885 = vadd.f32 0.0, %v5884
  %v5886 = vpop.f32.mrb[0].mxu0
  %v5887 = vpop.f32.mrb[0].mxu0
  %v5888 = vadd.f32 0.0, %v5887
  %v5889 = vpop.f32.mrb[0].mxu0
  %5890 = vmatprep.mubr.bf16.mxu0 0
  %5891 = vmatmul.mubr.bf16.gmra.mrb[0].mxu0 %v5751
  %v5892 = vpop.f32.mrb[0].mxu0
  %v5893 = vadd.f32 0.0, %v5892
  %v5894 = vpop.f32.mrb[0].mxu0
  %v5895 = vpop.f32.mrb[0].mxu0
  %v5896 = vadd.f32 0.0, %v5895
  %v5897 = vpop.f32.mrb[0].mxu0
  %5898 = vmatprep.mubr.bf16.mxu0 0
  %5899 = vmatmul.mubr.bf16.gmra.mrb[0].mxu0 %v5754
  %v5900 = vpop.f32.mrb[0].mxu0
  %v5901 = vadd.f32 0.0, %v5900
  %v5902 = vpop.f32.mrb[0].mxu0
  %v5903 = vpop.f32.mrb[0].mxu0
  %v5904 = vadd.f32 0.0, %v5903
  %v5905 = vpop.f32.mrb[0].mxu0
  %5906 = vmatprep.mubr.bf16.mxu0 0
  %5907 = vmatmul.mubr.bf16.gmra.mrb[0].mxu0 %v5757
  %v5908 = vpop.f32.mrb[0].mxu0
  %v5909 = vadd.f32 0.0, %v5908
  %v5910 = vpop.f32.mrb[0].mxu0
  %v5911 = vpop.f32.mrb[0].mxu0
  %v5912 = vadd.f32 0.0, %v5911
  %v5913 = vpop.f32.mrb[0].mxu0
  %5914 = vmatprep.mubr.bf16.mxu0 0
  %5915 = vmatmul.mubr.bf16.gmra.mrb[0].mxu0 %v5760
  %v5916 = vpop.f32.mrb[0].mxu0
  %v5917 = vadd.f32 0.0, %v5916
  %v5918 = vpop.f32.mrb[0].mxu0
  %v5919 = vpop.f32.mrb[0].mxu0
  %v5920 = vadd.f32 0.0, %v5919
  %v5921 = vpop.f32.mrb[0].mxu0
  %5922 = vdwg.mxu0
  %v5923 = vadd.f32 %v18, %v5797
  %v5924 = vadd.f32 %v19, %v5800
  %v5925 = vadd.f32 %v20, %v5805
  %v5926 = vadd.f32 %v21, %v5808
  %v5927 = vadd.f32 %v22, %v5813
  %v5928 = vadd.f32 %v23, %v5816
  %v5929 = vadd.f32 %v24, %v5821
  %v5930 = vadd.f32 %v25, %v5824
  %v5931 = vadd.f32 %v26, %v5829
  %v5932 = vadd.f32 %v27, %v5832
  %v5933 = vadd.f32 %v28, %v5837
  %v5934 = vadd.f32 %v29, %v5840
  %v5935 = vadd.f32 %v30, %v5845
  %v5936 = vadd.f32 %v31, %v5848
  %v5937 = vadd.f32 %v32, %v5853
  %v5938 = vadd.f32 %v33, %v5856
  %v5939 = vadd.f32 %v34, %v5861
  %v5940 = vadd.f32 %v35, %v5864
  %v5941 = vadd.f32 %v36, %v5869
  %v5942 = vadd.f32 %v37, %v5872
  %v5943 = vadd.f32 %v38, %v5877
  %v5944 = vadd.f32 %v39, %v5880
  %v5945 = vadd.f32 %v40, %v5885
  %v5946 = vadd.f32 %v41, %v5888
  %v5947 = vadd.f32 %v42, %v5893
  %v5948 = vadd.f32 %v43, %v5896
  %v5949 = vadd.f32 %v44, %v5901
  %v5950 = vadd.f32 %v45, %v5904
  %v5951 = vadd.f32 %v46, %v5909
  %v5952 = vadd.f32 %v47, %v5912
  %v5953 = vadd.f32 %v48, %v5917
  %v5954 = vadd.f32 %v49, %v5920
  %5955 = vst.msk [vmem:[%s4] sm:$0xff] %vm82, %v5923
  %5956 = vst.msk [vmem:[%s4 + $0x8] sm:$0xff] %vm82, %v5924
  %5957 = vst.msk [vmem:[%s4 + $0x10] sm:$0xff] %vm82, %v5925
  %5958 = vst.msk [vmem:[%s4 + $0x18] sm:$0xff] %vm82, %v5926
  %5959 = vst.msk [vmem:[%s4 + $0x20] sm:$0xff] %vm82, %v5927
  %5960 = vst.msk [vmem:[%s4 + $0x28] sm:$0xff] %vm82, %v5928
  %5961 = vst.msk [vmem:[%s4 + $0x30] sm:$0xff] %vm82, %v5929
  %5962 = vst.msk [vmem:[%s4 + $0x38] sm:$0xff] %vm82, %v5930
  %5963 = vst.msk [vmem:[%s4 + $0x40] sm:$0xff] %vm82, %v5931
  %5964 = vst.msk [vmem:[%s4 + $0x48] sm:$0xff] %vm82, %v5932
  %5965 = vst.msk [vmem:[%s4 + $0x50] sm:$0xff] %vm82, %v5933
  %5966 = vst.msk [vmem:[%s4 + $0x58] sm:$0xff] %vm82, %v5934
  %5967 = vst.msk [vmem:[%s4 + $0x60] sm:$0xff] %vm82, %v5935
  %5968 = vst.msk [vmem:[%s4 + $0x68] sm:$0xff] %vm82, %v5936
  %5969 = vst.msk [vmem:[%s4 + $0x70] sm:$0xff] %vm82, %v5937
  %5970 = vst.msk [vmem:[%s4 + $0x78] sm:$0xff] %vm82, %v5938
  %5971 = vst.msk [vmem:[%s4 + $0x80] sm:$0xff] %vm82, %v5939
  %5972 = vst.msk [vmem:[%s4 + $0x88] sm:$0xff] %vm82, %v5940
  %5973 = vst.msk [vmem:[%s4 + $0x90] sm:$0xff] %vm82, %v5941
  %5974 = vst.msk [vmem:[%s4 + $0x98] sm:$0xff] %vm82, %v5942
  %5975 = vst.msk [vmem:[%s4 + $0xa0] sm:$0xff] %vm82, %v5943
  %5976 = vst.msk [vmem:[%s4 + $0xa8] sm:$0xff] %vm82, %v5944
  %5977 = vst.msk [vmem:[%s4 + $0xb0] sm:$0xff] %vm82, %v5945
  %5978 = vst.msk [vmem:[%s4 + $0xb8] sm:$0xff] %vm82, %v5946
  %5979 = vst.msk [vmem:[%s4 + $0xc0] sm:$0xff] %vm82, %v5947
  %5980 = vst.msk [vmem:[%s4 + $0xc8] sm:$0xff] %vm82, %v5948
  %5981 = vst.msk [vmem:[%s4 + $0xd0] sm:$0xff] %vm82, %v5949
  %5982 = vst.msk [vmem:[%s4 + $0xd8] sm:$0xff] %vm82, %v5950
  %5983 = vst.msk [vmem:[%s4 + $0xe0] sm:$0xff] %vm82, %v5951
  %5984 = vst.msk [vmem:[%s4 + $0xe8] sm:$0xff] %vm82, %v5952
  %5985 = vst.msk [vmem:[%s4 + $0xf0] sm:$0xff] %vm82, %v5953
  %5986 = vst.msk [vmem:[%s4 + $0xf8] sm:$0xff] %vm82, %v5954
  // Predicated region
  $region18: #{tpu_custom_call.1} parent=0 // pred_check
    _
  $region19: #{tpu_custom_call.1} parent=0 // pred_check_branch
    %5988 = sbr.rel (0) target = $region21
  $region20: #{tpu_custom_call.1} parent=0 // pred_region
    _
  $region21: #{tpu_custom_call.1} parent=0 // pred_fallthru
    _
  // Predicated region
  $region22: #{tpu_custom_call.1} parent=0 // pred_check
    _
  $region23: #{tpu_custom_call.1} parent=0 // pred_check_branch
    %5990 = sbr.rel (0) target = $region25
  $region24: #{tpu_custom_call.1} parent=0 // pred_region
    _
  $region25: #{tpu_custom_call.1} parent=0 // pred_fallthru
    _

</llo_original>
